<compile_context>
chip_gen: v6e
topology: v6e:2x2x1
jax: 0.10.0
libtpu: 0.0.40
codegen_flags: <defaults>
</compile_context>

<pallas_src>
import functools

import jax
import jax.numpy as jnp
from jax.experimental import pallas as pl
from jax.experimental.pallas import tpu as pltpu  # noqa: F401  (TPU backend)


LANES = 128  # TPU lane width; FC output is padded to a lane-dense slab.


def _lstm_cell(gx_t, h, c, whh, bias, H):
    """One LSTM step. gx_t = x_t @ W_ih^T (input projection, bias NOT included
    unless folded by caller). PyTorch gate order: i, f, g, o."""
    gates = gx_t + jnp.dot(h, whh, preferred_element_type=jnp.float32)
    if bias is not None:
        gates = gates + bias
    i_g = jax.nn.sigmoid(gates[:, 0 * H:1 * H])
    f_g = jax.nn.sigmoid(gates[:, 1 * H:2 * H])
    g_g = jnp.tanh(gates[:, 2 * H:3 * H])
    o_g = jax.nn.sigmoid(gates[:, 3 * H:4 * H])
    c_new = f_g * c + i_g * g_g
    h_new = o_g * jnp.tanh(c_new)
    return h_new, c_new


def fused_rnn_kernel(x_ref,                              # (T*B, D)  time-major rows
                     wih0_ref, whh0_ref, b0_ref,         # (D,4H), (H,4H), (1,4H)
                     wih1_ref, whh1_ref, b1_ref,         # (H,4H), (H,4H), (1,4H)
                     wf1_ref, bf1_ref, wf2_ref, bf2_ref, # (H,64),(1,64),(64,128),(1,128)
                     out_ref,                            # (B, 128) lane-dense slab
                     *, seq, batch):
    T, B = seq, batch
    H = whh0_ref.shape[0]

    # Hoist weight/bias loads out of the unrolled recurrence.
    whh0 = whh0_ref[...]
    wih1 = wih1_ref[...]
    whh1 = whh1_ref[...]
    b1 = b1_ref[...]

    # ---- Layer 0 input projection: one batched MXU matmul over all T*B rows
    # (bias folded in) — entirely off the serial recurrence path.
    gx0 = jnp.dot(x_ref[...], wih0_ref[...],
                  preferred_element_type=jnp.float32) + b0_ref[...]     # (T*B, 4H)

    h0 = jnp.zeros((B, H), jnp.float32)
    c0 = jnp.zeros((B, H), jnp.float32)
    h1 = jnp.zeros((B, H), jnp.float32)
    c1 = jnp.zeros((B, H), jnp.float32)

    # Fully-unrolled, interleaved time loop: layer-1 step t depends only on
    # layer-0 step t, so the two recurrences overlap in the scheduler and the
    # serial chain is ~T cells long.
    for t in range(T):
        h0, c0 = _lstm_cell(gx0[t * B:(t + 1) * B, :], h0, c0, whh0, None, H)
        # TODO(synk): inter-layer dropout (p=0.2) is identity at inference time.
        gx1_t = jnp.dot(h0, wih1, preferred_element_type=jnp.float32)
        h1, c1 = _lstm_cell(gx1_t, h1, c1, whh1, b1, H)

    # ---- FC head on final hidden state: Linear(H,64) -> ReLU -> Linear(64,1)
    # TODO(synk): FC dropout (p=0.2) is identity at inference time.
    z = jnp.dot(h1, wf1_ref[...], preferred_element_type=jnp.float32) + bf1_ref[...]
    z = jnp.maximum(z, 0.0)
    # wf2/bf2 are zero-padded to LANES columns so the store is an unmasked,
    # lane-dense vst; the wrapper slices column 0.
    out_ref[...] = jnp.dot(z, wf2_ref[...],
                           preferred_element_type=jnp.float32) + bf2_ref[...]


# ----------------------------------------------------------------------------
# Full model forward (single pallas_call; batch_first input like PyTorch)
# ----------------------------------------------------------------------------
def supermarket_rnn_forward(x_btd, params):
    """x_btd: (B, T, input_size), batch_first like the PyTorch module."""
    x_btd = x_btd.astype(jnp.float32)
    B, T, D = x_btd.shape
    assert len(params["lstm"]) == 2, "fused kernel is specialized to 2 LSTM layers"

    # batch_first -> time-major, flattened to (T*B, D) rows for the batched
    # in-kernel input projection. Row index = t*B + b.
    x_rows = jnp.transpose(x_btd, (1, 0, 2)).reshape(T * B, D)

    l0, l1 = params["lstm"]
    fc = params["fc"]

    out_pad = pl.pallas_call(
        functools.partial(fused_rnn_kernel, seq=T, batch=B),
        out_shape=jax.ShapeDtypeStruct((B, LANES), jnp.float32),
    )(x_rows,
      l0["w_ih_t"], l0["w_hh_t"], l0["b"],
      l1["w_ih_t"], l1["w_hh_t"], l1["b"],
      fc["w1_t"], fc["b1"], fc["w2_t_pad"], fc["b2_pad"])

    return out_pad[:, :1]                                # (B, 1)


# ----------------------------------------------------------------------------
# Pure-JAX reference (same parameterization) for a correctness cross-check.
# ----------------------------------------------------------------------------
def reference_forward(x_btd, params):
    x = x_btd.astype(jnp.float32)
    B, T, D = x.shape
    l0, l1 = params["lstm"]
    fc = params["fc"]
    H = l0["w_hh_t"].shape[0]

    def cell(x_t, h, c, w_ih_t, w_hh_t, b):
        gates = x_t @ w_ih_t + h @ w_hh_t + b
        i_g = jax.nn.sigmoid(gates[:, 0 * H:1 * H])
        f_g = jax.nn.sigmoid(gates[:, 1 * H:2 * H])
        g_g = jnp.tanh(gates[:, 2 * H:3 * H])
        o_g = jax.nn.sigmoid(gates[:, 3 * H:4 * H])
        c_new = f_g * c + i_g * g_g
        return o_g * jnp.tanh(c_new), c_new

    h0 = c0 = jnp.zeros((B, H), jnp.float32)
    h1 = c1 = jnp.zeros((B, H), jnp.float32)
    for t in range(T):
        h0, c0 = cell(x[:, t, :], h0, c0, l0["w_ih_t"], l0["w_hh_t"], l0["b"])
        h1, c1 = cell(h0, h1, c1, l1["w_ih_t"], l1["w_hh_t"], l1["b"])
    z = jnp.maximum(h1 @ fc["w1_t"] + fc["b1"], 0.0)
    return (z @ fc["w2_t_pad"] + fc["b2_pad"])[:, :1]


def init_params(key, input_size, hidden_size, num_layers=2):
    """Deterministic init mimicking PyTorch's uniform(-1/sqrt(H), 1/sqrt(H))."""
    bound = 1.0 / jnp.sqrt(jnp.float32(hidden_size))
    keys = jax.random.split(key, num_layers * 4 + 4)
    ki = iter(range(len(keys)))

    lstm_layers = []
    for layer in range(num_layers):
        d_in = input_size if layer == 0 else hidden_size
        w_ih = jax.random.uniform(keys[next(ki)], (4 * hidden_size, d_in),
                                  jnp.float32, -bound, bound)
        w_hh = jax.random.uniform(keys[next(ki)], (4 * hidden_size, hidden_size),
                                  jnp.float32, -bound, bound)
        b_ih = jax.random.uniform(keys[next(ki)], (4 * hidden_size,),
                                  jnp.float32, -bound, bound)
        b_hh = jax.random.uniform(keys[next(ki)], (4 * hidden_size,),
                                  jnp.float32, -bound, bound)
        lstm_layers.append({
            "w_ih_t": w_ih.T,                          # (d_in, 4H)
            "w_hh_t": w_hh.T,                          # (H, 4H)
            "b": (b_ih + b_hh).reshape(1, -1),         # (1, 4H)
        })

    b1s = 1.0 / jnp.sqrt(jnp.float32(hidden_size))
    w1 = jax.random.uniform(keys[next(ki)], (64, hidden_size), jnp.float32, -b1s, b1s)
    bb1 = jax.random.uniform(keys[next(ki)], (64,), jnp.float32, -b1s, b1s)
    b2s = 1.0 / jnp.sqrt(jnp.float32(64))
    w2 = jax.random.uniform(keys[next(ki)], (1, 64), jnp.float32, -b2s, b2s)
    bb2 = jax.random.uniform(keys[next(ki)], (1,), jnp.float32, -b2s, b2s)

    # Zero-pad the final Linear to 128 output lanes so the kernel's store is
    # lane-dense; only column 0 carries the real output.
    w2_t_pad = jnp.zeros((64, LANES), jnp.float32).at[:, 0:1].set(w2.T)
    b2_pad = jnp.zeros((1, LANES), jnp.float32).at[0, 0].set(bb2[0])

    fc = {
        "w1_t": w1.T,                 # (H, 64)
        "b1": bb1.reshape(1, -1),     # (1, 64)
        "w2_t_pad": w2_t_pad,         # (64, 128)
        "b2_pad": b2_pad,             # (1, 128)
    }
    return {"lstm": lstm_layers, "fc": fc}


if __name__ == "__main__":
    B, T, INPUT_SIZE, HIDDEN_SIZE = 2, 8, 16, 32

    key = jax.random.PRNGKey(0)
    kx, kp = jax.random.split(key)
    x = jax.random.normal(kx, (B, T, INPUT_SIZE), dtype=jnp.float32)
    params = init_params(kp, INPUT_SIZE, HIDDEN_SIZE, num_layers=2)

    fwd = jax.jit(supermarket_rnn_forward)
    out = jax.block_until_ready(fwd(x, params))
    assert out.shape == (B, 1), out.shape

    ref = jax.block_until_ready(reference_forward(x, params))
    assert jnp.allclose(out, ref, rtol=1e-4, atol=1e-4), (out, ref)

    print("KERNEL_OK")
</pallas_src>

<mosaic_0001>
module attributes {stable_mosaic.version = 11 : i64} {
  func.func @fused_rnn_kernel(%arg0: memref<16x16xf32, #tpu.memory_space<vmem>>, %arg1: memref<16x128xf32, #tpu.memory_space<vmem>>, %arg2: memref<32x128xf32, #tpu.memory_space<vmem>>, %arg3: memref<1x128xf32, #tpu.memory_space<vmem>>, %arg4: memref<32x128xf32, #tpu.memory_space<vmem>>, %arg5: memref<32x128xf32, #tpu.memory_space<vmem>>, %arg6: memref<1x128xf32, #tpu.memory_space<vmem>>, %arg7: memref<32x64xf32, #tpu.memory_space<vmem>>, %arg8: memref<1x64xf32, #tpu.memory_space<vmem>>, %arg9: memref<64x128xf32, #tpu.memory_space<vmem>>, %arg10: memref<1x128xf32, #tpu.memory_space<vmem>>, %arg11: memref<2x128xf32, #tpu.memory_space<vmem>>) attributes {dimension_semantics = [], scalar_prefetch = 0 : i64, scratch_operands = 0 : i64, tpu.core_type = #tpu.core_type<tc>} {
    %c0 = arith.constant 0 : index
    %c0_0 = arith.constant 0 : index
    %0 = vector.load %arg2[%c0, %c0_0] : memref<32x128xf32, #tpu.memory_space<vmem>>, vector<32x128xf32>
    %c0_1 = arith.constant 0 : index
    %c0_2 = arith.constant 0 : index
    %1 = vector.load %arg4[%c0_1, %c0_2] : memref<32x128xf32, #tpu.memory_space<vmem>>, vector<32x128xf32>
    %c0_3 = arith.constant 0 : index
    %c0_4 = arith.constant 0 : index
    %2 = vector.load %arg5[%c0_3, %c0_4] : memref<32x128xf32, #tpu.memory_space<vmem>>, vector<32x128xf32>
    %c0_5 = arith.constant 0 : index
    %c0_6 = arith.constant 0 : index
    %3 = vector.load %arg6[%c0_5, %c0_6] : memref<1x128xf32, #tpu.memory_space<vmem>>, vector<1x128xf32>
    %c0_7 = arith.constant 0 : index
    %c0_8 = arith.constant 0 : index
    %4 = vector.load %arg0[%c0_7, %c0_8] : memref<16x16xf32, #tpu.memory_space<vmem>>, vector<16x16xf32>
    %c0_9 = arith.constant 0 : index
    %c0_10 = arith.constant 0 : index
    %5 = vector.load %arg1[%c0_9, %c0_10] : memref<16x128xf32, #tpu.memory_space<vmem>>, vector<16x128xf32>
    %cst = arith.constant dense<0.000000e+00> : vector<16x128xf32>
    %6 = tpu.matmul %4, %5, %cst {dimension_numbers = #tpu.dot_dimension_numbers<[1], [0], [0], [1], [0, 0, 1, 1], [], []>} : vector<16x16xf32>, vector<16x128xf32>, vector<16x128xf32> -> vector<16x128xf32>
    %c0_11 = arith.constant 0 : index
    %c0_12 = arith.constant 0 : index
    %7 = vector.load %arg3[%c0_11, %c0_12] : memref<1x128xf32, #tpu.memory_space<vmem>>, vector<1x128xf32>
    %8 = vector.broadcast %7 : vector<1x128xf32> to vector<16x128xf32>
    %9 = arith.addf %6, %8 : vector<16x128xf32>
    %cst_13 = arith.constant 0.000000e+00 : f32
    %10 = vector.broadcast %cst_13 : f32 to vector<2x32xf32>
    %cst_14 = arith.constant 0.000000e+00 : f32
    %11 = vector.broadcast %cst_14 : f32 to vector<2x32xf32>
    %cst_15 = arith.constant 0.000000e+00 : f32
    %12 = vector.broadcast %cst_15 : f32 to vector<2x32xf32>
    %cst_16 = arith.constant 0.000000e+00 : f32
    %13 = vector.broadcast %cst_16 : f32 to vector<2x32xf32>
    %14 = vector.extract_strided_slice %9 {offsets = [0, 0], sizes = [2, 128], strides = [1, 1]} : vector<16x128xf32> to vector<2x128xf32>
    %cst_17 = arith.constant dense<0.000000e+00> : vector<2x128xf32>
    %15 = tpu.matmul %10, %0, %cst_17 {dimension_numbers = #tpu.dot_dimension_numbers<[1], [0], [0], [1], [0, 0, 1, 1], [], []>} : vector<2x32xf32>, vector<32x128xf32>, vector<2x128xf32> -> vector<2x128xf32>
    %16 = arith.addf %14, %15 : vector<2x128xf32>
    %17 = vector.extract_strided_slice %16 {offsets = [0, 0], sizes = [2, 32], strides = [1, 1]} : vector<2x128xf32> to vector<2x32xf32>
    %18 = arith.negf %17 : vector<2x32xf32>
    %19 = math.exp %18 : vector<2x32xf32>
    %cst_18 = arith.constant 1.000000e+00 : f32
    %20 = vector.broadcast %cst_18 : f32 to vector<2x32xf32>
    %21 = arith.addf %20, %19 : vector<2x32xf32>
    %22 = arith.divf %20, %21 : vector<2x32xf32>
    %23 = vector.extract_strided_slice %16 {offsets = [0, 32], sizes = [2, 32], strides = [1, 1]} : vector<2x128xf32> to vector<2x32xf32>
    %24 = arith.negf %23 : vector<2x32xf32>
    %25 = math.exp %24 : vector<2x32xf32>
    %cst_19 = arith.constant 1.000000e+00 : f32
    %26 = vector.broadcast %cst_19 : f32 to vector<2x32xf32>
    %27 = arith.addf %26, %25 : vector<2x32xf32>
    %28 = arith.divf %26, %27 : vector<2x32xf32>
    %29 = vector.extract_strided_slice %16 {offsets = [0, 64], sizes = [2, 32], strides = [1, 1]} : vector<2x128xf32> to vector<2x32xf32>
    %30 = math.tanh %29 : vector<2x32xf32>
    %31 = vector.extract_strided_slice %16 {offsets = [0, 96], sizes = [2, 32], strides = [1, 1]} : vector<2x128xf32> to vector<2x32xf32>
    %32 = arith.negf %31 : vector<2x32xf32>
    %33 = math.exp %32 : vector<2x32xf32>
    %cst_20 = arith.constant 1.000000e+00 : f32
    %34 = vector.broadcast %cst_20 : f32 to vector<2x32xf32>
    %35 = arith.addf %34, %33 : vector<2x32xf32>
    %36 = arith.divf %34, %35 : vector<2x32xf32>
    %37 = arith.mulf %28, %11 : vector<2x32xf32>
    %38 = arith.mulf %22, %30 : vector<2x32xf32>
    %39 = arith.addf %37, %38 : vector<2x32xf32>
    %40 = math.tanh %39 : vector<2x32xf32>
    %41 = arith.mulf %36, %40 : vector<2x32xf32>
    %cst_21 = arith.constant dense<0.000000e+00> : vector<2x128xf32>
    %42 = tpu.matmul %41, %1, %cst_21 {dimension_numbers = #tpu.dot_dimension_numbers<[1], [0], [0], [1], [0, 0, 1, 1], [], []>} : vector<2x32xf32>, vector<32x128xf32>, vector<2x128xf32> -> vector<2x128xf32>
    %cst_22 = arith.constant dense<0.000000e+00> : vector<2x128xf32>
    %43 = tpu.matmul %12, %2, %cst_22 {dimension_numbers = #tpu.dot_dimension_numbers<[1], [0], [0], [1], [0, 0, 1, 1], [], []>} : vector<2x32xf32>, vector<32x128xf32>, vector<2x128xf32> -> vector<2x128xf32>
    %44 = arith.addf %42, %43 : vector<2x128xf32>
    %45 = vector.broadcast %3 : vector<1x128xf32> to vector<2x128xf32>
    %46 = arith.addf %44, %45 : vector<2x128xf32>
    %47 = vector.extract_strided_slice %46 {offsets = [0, 0], sizes = [2, 32], strides = [1, 1]} : vector<2x128xf32> to vector<2x32xf32>
    %48 = arith.negf %47 : vector<2x32xf32>
    %49 = math.exp %48 : vector<2x32xf32>
    %cst_23 = arith.constant 1.000000e+00 : f32
    %50 = vector.broadcast %cst_23 : f32 to vector<2x32xf32>
    %51 = arith.addf %50, %49 : vector<2x32xf32>
    %52 = arith.divf %50, %51 : vector<2x32xf32>
    %53 = vector.extract_strided_slice %46 {offsets = [0, 32], sizes = [2, 32], strides = [1, 1]} : vector<2x128xf32> to vector<2x32xf32>
    %54 = arith.negf %53 : vector<2x32xf32>
    %55 = math.exp %54 : vector<2x32xf32>
    %cst_24 = arith.constant 1.000000e+00 : f32
    %56 = vector.broadcast %cst_24 : f32 to vector<2x32xf32>
    %57 = arith.addf %56, %55 : vector<2x32xf32>
    %58 = arith.divf %56, %57 : vector<2x32xf32>
    %59 = vector.extract_strided_slice %46 {offsets = [0, 64], sizes = [2, 32], strides = [1, 1]} : vector<2x128xf32> to vector<2x32xf32>
    %60 = math.tanh %59 : vector<2x32xf32>
    %61 = vector.extract_strided_slice %46 {offsets = [0, 96], sizes = [2, 32], strides = [1, 1]} : vector<2x128xf32> to vector<2x32xf32>
    %62 = arith.negf %61 : vector<2x32xf32>
    %63 = math.exp %62 : vector<2x32xf32>
    %cst_25 = arith.constant 1.000000e+00 : f32
    %64 = vector.broadcast %cst_25 : f32 to vector<2x32xf32>
    %65 = arith.addf %64, %63 : vector<2x32xf32>
    %66 = arith.divf %64, %65 : vector<2x32xf32>
    %67 = arith.mulf %58, %13 : vector<2x32xf32>
    %68 = arith.mulf %52, %60 : vector<2x32xf32>
    %69 = arith.addf %67, %68 : vector<2x32xf32>
    %70 = math.tanh %69 : vector<2x32xf32>
    %71 = arith.mulf %66, %70 : vector<2x32xf32>
    %72 = vector.extract_strided_slice %9 {offsets = [2, 0], sizes = [2, 128], strides = [1, 1]} : vector<16x128xf32> to vector<2x128xf32>
    %cst_26 = arith.constant dense<0.000000e+00> : vector<2x128xf32>
    %73 = tpu.matmul %41, %0, %cst_26 {dimension_numbers = #tpu.dot_dimension_numbers<[1], [0], [0], [1], [0, 0, 1, 1], [], []>} : vector<2x32xf32>, vector<32x128xf32>, vector<2x128xf32> -> vector<2x128xf32>
    %74 = arith.addf %72, %73 : vector<2x128xf32>
    %75 = vector.extract_strided_slice %74 {offsets = [0, 0], sizes = [2, 32], strides = [1, 1]} : vector<2x128xf32> to vector<2x32xf32>
    %76 = arith.negf %75 : vector<2x32xf32>
    %77 = math.exp %76 : vector<2x32xf32>
    %cst_27 = arith.constant 1.000000e+00 : f32
    %78 = vector.broadcast %cst_27 : f32 to vector<2x32xf32>
    %79 = arith.addf %78, %77 : vector<2x32xf32>
    %80 = arith.divf %78, %79 : vector<2x32xf32>
    %81 = vector.extract_strided_slice %74 {offsets = [0, 32], sizes = [2, 32], strides = [1, 1]} : vector<2x128xf32> to vector<2x32xf32>
    %82 = arith.negf %81 : vector<2x32xf32>
    %83 = math.exp %82 : vector<2x32xf32>
    %cst_28 = arith.constant 1.000000e+00 : f32
    %84 = vector.broadcast %cst_28 : f32 to vector<2x32xf32>
    %85 = arith.addf %84, %83 : vector<2x32xf32>
    %86 = arith.divf %84, %85 : vector<2x32xf32>
    %87 = vector.extract_strided_slice %74 {offsets = [0, 64], sizes = [2, 32], strides = [1, 1]} : vector<2x128xf32> to vector<2x32xf32>
    %88 = math.tanh %87 : vector<2x32xf32>
    %89 = vector.extract_strided_slice %74 {offsets = [0, 96], sizes = [2, 32], strides = [1, 1]} : vector<2x128xf32> to vector<2x32xf32>
    %90 = arith.negf %89 : vector<2x32xf32>
    %91 = math.exp %90 : vector<2x32xf32>
    %cst_29 = arith.constant 1.000000e+00 : f32
    %92 = vector.broadcast %cst_29 : f32 to vector<2x32xf32>
    %93 = arith.addf %92, %91 : vector<2x32xf32>
    %94 = arith.divf %92, %93 : vector<2x32xf32>
    %95 = arith.mulf %86, %39 : vector<2x32xf32>
    %96 = arith.mulf %80, %88 : vector<2x32xf32>
    %97 = arith.addf %95, %96 : vector<2x32xf32>
    %98 = math.tanh %97 : vector<2x32xf32>
    %99 = arith.mulf %94, %98 : vector<2x32xf32>
    %cst_30 = arith.constant dense<0.000000e+00> : vector<2x128xf32>
    %100 = tpu.matmul %99, %1, %cst_30 {dimension_numbers = #tpu.dot_dimension_numbers<[1], [0], [0], [1], [0, 0, 1, 1], [], []>} : vector<2x32xf32>, vector<32x128xf32>, vector<2x128xf32> -> vector<2x128xf32>
    %cst_31 = arith.constant dense<0.000000e+00> : vector<2x128xf32>
    %101 = tpu.matmul %71, %2, %cst_31 {dimension_numbers = #tpu.dot_dimension_numbers<[1], [0], [0], [1], [0, 0, 1, 1], [], []>} : vector<2x32xf32>, vector<32x128xf32>, vector<2x128xf32> -> vector<2x128xf32>
    %102 = arith.addf %100, %101 : vector<2x128xf32>
    %103 = vector.broadcast %3 : vector<1x128xf32> to vector<2x128xf32>
    %104 = arith.addf %102, %103 : vector<2x128xf32>
    %105 = vector.extract_strided_slice %104 {offsets = [0, 0], sizes = [2, 32], strides = [1, 1]} : vector<2x128xf32> to vector<2x32xf32>
    %106 = arith.negf %105 : vector<2x32xf32>
    %107 = math.exp %106 : vector<2x32xf32>
    %cst_32 = arith.constant 1.000000e+00 : f32
    %108 = vector.broadcast %cst_32 : f32 to vector<2x32xf32>
    %109 = arith.addf %108, %107 : vector<2x32xf32>
    %110 = arith.divf %108, %109 : vector<2x32xf32>
    %111 = vector.extract_strided_slice %104 {offsets = [0, 32], sizes = [2, 32], strides = [1, 1]} : vector<2x128xf32> to vector<2x32xf32>
    %112 = arith.negf %111 : vector<2x32xf32>
    %113 = math.exp %112 : vector<2x32xf32>
    %cst_33 = arith.constant 1.000000e+00 : f32
    %114 = vector.broadcast %cst_33 : f32 to vector<2x32xf32>
    %115 = arith.addf %114, %113 : vector<2x32xf32>
    %116 = arith.divf %114, %115 : vector<2x32xf32>
    %117 = vector.extract_strided_slice %104 {offsets = [0, 64], sizes = [2, 32], strides = [1, 1]} : vector<2x128xf32> to vector<2x32xf32>
    %118 = math.tanh %117 : vector<2x32xf32>
    %119 = vector.extract_strided_slice %104 {offsets = [0, 96], sizes = [2, 32], strides = [1, 1]} : vector<2x128xf32> to vector<2x32xf32>
    %120 = arith.negf %119 : vector<2x32xf32>
    %121 = math.exp %120 : vector<2x32xf32>
    %cst_34 = arith.constant 1.000000e+00 : f32
    %122 = vector.broadcast %cst_34 : f32 to vector<2x32xf32>
    %123 = arith.addf %122, %121 : vector<2x32xf32>
    %124 = arith.divf %122, %123 : vector<2x32xf32>
    %125 = arith.mulf %116, %69 : vector<2x32xf32>
    %126 = arith.mulf %110, %118 : vector<2x32xf32>
    %127 = arith.addf %125, %126 : vector<2x32xf32>
    %128 = math.tanh %127 : vector<2x32xf32>
    %129 = arith.mulf %124, %128 : vector<2x32xf32>
    %130 = vector.extract_strided_slice %9 {offsets = [4, 0], sizes = [2, 128], strides = [1, 1]} : vector<16x128xf32> to vector<2x128xf32>
    %cst_35 = arith.constant dense<0.000000e+00> : vector<2x128xf32>
    %131 = tpu.matmul %99, %0, %cst_35 {dimension_numbers = #tpu.dot_dimension_numbers<[1], [0], [0], [1], [0, 0, 1, 1], [], []>} : vector<2x32xf32>, vector<32x128xf32>, vector<2x128xf32> -> vector<2x128xf32>
    %132 = arith.addf %130, %131 : vector<2x128xf32>
    %133 = vector.extract_strided_slice %132 {offsets = [0, 0], sizes = [2, 32], strides = [1, 1]} : vector<2x128xf32> to vector<2x32xf32>
    %134 = arith.negf %133 : vector<2x32xf32>
    %135 = math.exp %134 : vector<2x32xf32>
    %cst_36 = arith.constant 1.000000e+00 : f32
    %136 = vector.broadcast %cst_36 : f32 to vector<2x32xf32>
    %137 = arith.addf %136, %135 : vector<2x32xf32>
    %138 = arith.divf %136, %137 : vector<2x32xf32>
    %139 = vector.extract_strided_slice %132 {offsets = [0, 32], sizes = [2, 32], strides = [1, 1]} : vector<2x128xf32> to vector<2x32xf32>
    %140 = arith.negf %139 : vector<2x32xf32>
    %141 = math.exp %140 : vector<2x32xf32>
    %cst_37 = arith.constant 1.000000e+00 : f32
    %142 = vector.broadcast %cst_37 : f32 to vector<2x32xf32>
    %143 = arith.addf %142, %141 : vector<2x32xf32>
    %144 = arith.divf %142, %143 : vector<2x32xf32>
    %145 = vector.extract_strided_slice %132 {offsets = [0, 64], sizes = [2, 32], strides = [1, 1]} : vector<2x128xf32> to vector<2x32xf32>
    %146 = math.tanh %145 : vector<2x32xf32>
    %147 = vector.extract_strided_slice %132 {offsets = [0, 96], sizes = [2, 32], strides = [1, 1]} : vector<2x128xf32> to vector<2x32xf32>
    %148 = arith.negf %147 : vector<2x32xf32>
    %149 = math.exp %148 : vector<2x32xf32>
    %cst_38 = arith.constant 1.000000e+00 : f32
    %150 = vector.broadcast %cst_38 : f32 to vector<2x32xf32>
    %151 = arith.addf %150, %149 : vector<2x32xf32>
    %152 = arith.divf %150, %151 : vector<2x32xf32>
    %153 = arith.mulf %144, %97 : vector<2x32xf32>
    %154 = arith.mulf %138, %146 : vector<2x32xf32>
    %155 = arith.addf %153, %154 : vector<2x32xf32>
    %156 = math.tanh %155 : vector<2x32xf32>
    %157 = arith.mulf %152, %156 : vector<2x32xf32>
    %cst_39 = arith.constant dense<0.000000e+00> : vector<2x128xf32>
    %158 = tpu.matmul %157, %1, %cst_39 {dimension_numbers = #tpu.dot_dimension_numbers<[1], [0], [0], [1], [0, 0, 1, 1], [], []>} : vector<2x32xf32>, vector<32x128xf32>, vector<2x128xf32> -> vector<2x128xf32>
    %cst_40 = arith.constant dense<0.000000e+00> : vector<2x128xf32>
    %159 = tpu.matmul %129, %2, %cst_40 {dimension_numbers = #tpu.dot_dimension_numbers<[1], [0], [0], [1], [0, 0, 1, 1], [], []>} : vector<2x32xf32>, vector<32x128xf32>, vector<2x128xf32> -> vector<2x128xf32>
    %160 = arith.addf %158, %159 : vector<2x128xf32>
    %161 = vector.broadcast %3 : vector<1x128xf32> to vector<2x128xf32>
    %162 = arith.addf %160, %161 : vector<2x128xf32>
    %163 = vector.extract_strided_slice %162 {offsets = [0, 0], sizes = [2, 32], strides = [1, 1]} : vector<2x128xf32> to vector<2x32xf32>
    %164 = arith.negf %163 : vector<2x32xf32>
    %165 = math.exp %164 : vector<2x32xf32>
    %cst_41 = arith.constant 1.000000e+00 : f32
    %166 = vector.broadcast %cst_41 : f32 to vector<2x32xf32>
    %167 = arith.addf %166, %165 : vector<2x32xf32>
    %168 = arith.divf %166, %167 : vector<2x32xf32>
    %169 = vector.extract_strided_slice %162 {offsets = [0, 32], sizes = [2, 32], strides = [1, 1]} : vector<2x128xf32> to vector<2x32xf32>
    %170 = arith.negf %169 : vector<2x32xf32>
    %171 = math.exp %170 : vector<2x32xf32>
    %cst_42 = arith.constant 1.000000e+00 : f32
    %172 = vector.broadcast %cst_42 : f32 to vector<2x32xf32>
    %173 = arith.addf %172, %171 : vector<2x32xf32>
    %174 = arith.divf %172, %173 : vector<2x32xf32>
    %175 = vector.extract_strided_slice %162 {offsets = [0, 64], sizes = [2, 32], strides = [1, 1]} : vector<2x128xf32> to vector<2x32xf32>
    %176 = math.tanh %175 : vector<2x32xf32>
    %177 = vector.extract_strided_slice %162 {offsets = [0, 96], sizes = [2, 32], strides = [1, 1]} : vector<2x128xf32> to vector<2x32xf32>
    %178 = arith.negf %177 : vector<2x32xf32>
    %179 = math.exp %178 : vector<2x32xf32>
    %cst_43 = arith.constant 1.000000e+00 : f32
    %180 = vector.broadcast %cst_43 : f32 to vector<2x32xf32>
    %181 = arith.addf %180, %179 : vector<2x32xf32>
    %182 = arith.divf %180, %181 : vector<2x32xf32>
    %183 = arith.mulf %174, %127 : vector<2x32xf32>
    %184 = arith.mulf %168, %176 : vector<2x32xf32>
    %185 = arith.addf %183, %184 : vector<2x32xf32>
    %186 = math.tanh %185 : vector<2x32xf32>
    %187 = arith.mulf %182, %186 : vector<2x32xf32>
    %188 = vector.extract_strided_slice %9 {offsets = [6, 0], sizes = [2, 128], strides = [1, 1]} : vector<16x128xf32> to vector<2x128xf32>
    %cst_44 = arith.constant dense<0.000000e+00> : vector<2x128xf32>
    %189 = tpu.matmul %157, %0, %cst_44 {dimension_numbers = #tpu.dot_dimension_numbers<[1], [0], [0], [1], [0, 0, 1, 1], [], []>} : vector<2x32xf32>, vector<32x128xf32>, vector<2x128xf32> -> vector<2x128xf32>
    %190 = arith.addf %188, %189 : vector<2x128xf32>
    %191 = vector.extract_strided_slice %190 {offsets = [0, 0], sizes = [2, 32], strides = [1, 1]} : vector<2x128xf32> to vector<2x32xf32>
    %192 = arith.negf %191 : vector<2x32xf32>
    %193 = math.exp %192 : vector<2x32xf32>
    %cst_45 = arith.constant 1.000000e+00 : f32
    %194 = vector.broadcast %cst_45 : f32 to vector<2x32xf32>
    %195 = arith.addf %194, %193 : vector<2x32xf32>
    %196 = arith.divf %194, %195 : vector<2x32xf32>
    %197 = vector.extract_strided_slice %190 {offsets = [0, 32], sizes = [2, 32], strides = [1, 1]} : vector<2x128xf32> to vector<2x32xf32>
    %198 = arith.negf %197 : vector<2x32xf32>
    %199 = math.exp %198 : vector<2x32xf32>
    %cst_46 = arith.constant 1.000000e+00 : f32
    %200 = vector.broadcast %cst_46 : f32 to vector<2x32xf32>
    %201 = arith.addf %200, %199 : vector<2x32xf32>
    %202 = arith.divf %200, %201 : vector<2x32xf32>
    %203 = vector.extract_strided_slice %190 {offsets = [0, 64], sizes = [2, 32], strides = [1, 1]} : vector<2x128xf32> to vector<2x32xf32>
    %204 = math.tanh %203 : vector<2x32xf32>
    %205 = vector.extract_strided_slice %190 {offsets = [0, 96], sizes = [2, 32], strides = [1, 1]} : vector<2x128xf32> to vector<2x32xf32>
    %206 = arith.negf %205 : vector<2x32xf32>
    %207 = math.exp %206 : vector<2x32xf32>
    %cst_47 = arith.constant 1.000000e+00 : f32
    %208 = vector.broadcast %cst_47 : f32 to vector<2x32xf32>
    %209 = arith.addf %208, %207 : vector<2x32xf32>
    %210 = arith.divf %208, %209 : vector<2x32xf32>
    %211 = arith.mulf %202, %155 : vector<2x32xf32>
    %212 = arith.mulf %196, %204 : vector<2x32xf32>
    %213 = arith.addf %211, %212 : vector<2x32xf32>
    %214 = math.tanh %213 : vector<2x32xf32>
    %215 = arith.mulf %210, %214 : vector<2x32xf32>
    %cst_48 = arith.constant dense<0.000000e+00> : vector<2x128xf32>
    %216 = tpu.matmul %215, %1, %cst_48 {dimension_numbers = #tpu.dot_dimension_numbers<[1], [0], [0], [1], [0, 0, 1, 1], [], []>} : vector<2x32xf32>, vector<32x128xf32>, vector<2x128xf32> -> vector<2x128xf32>
    %cst_49 = arith.constant dense<0.000000e+00> : vector<2x128xf32>
    %217 = tpu.matmul %187, %2, %cst_49 {dimension_numbers = #tpu.dot_dimension_numbers<[1], [0], [0], [1], [0, 0, 1, 1], [], []>} : vector<2x32xf32>, vector<32x128xf32>, vector<2x128xf32> -> vector<2x128xf32>
    %218 = arith.addf %216, %217 : vector<2x128xf32>
    %219 = vector.broadcast %3 : vector<1x128xf32> to vector<2x128xf32>
    %220 = arith.addf %218, %219 : vector<2x128xf32>
    %221 = vector.extract_strided_slice %220 {offsets = [0, 0], sizes = [2, 32], strides = [1, 1]} : vector<2x128xf32> to vector<2x32xf32>
    %222 = arith.negf %221 : vector<2x32xf32>
    %223 = math.exp %222 : vector<2x32xf32>
    %cst_50 = arith.constant 1.000000e+00 : f32
    %224 = vector.broadcast %cst_50 : f32 to vector<2x32xf32>
    %225 = arith.addf %224, %223 : vector<2x32xf32>
    %226 = arith.divf %224, %225 : vector<2x32xf32>
    %227 = vector.extract_strided_slice %220 {offsets = [0, 32], sizes = [2, 32], strides = [1, 1]} : vector<2x128xf32> to vector<2x32xf32>
    %228 = arith.negf %227 : vector<2x32xf32>
    %229 = math.exp %228 : vector<2x32xf32>
    %cst_51 = arith.constant 1.000000e+00 : f32
    %230 = vector.broadcast %cst_51 : f32 to vector<2x32xf32>
    %231 = arith.addf %230, %229 : vector<2x32xf32>
    %232 = arith.divf %230, %231 : vector<2x32xf32>
    %233 = vector.extract_strided_slice %220 {offsets = [0, 64], sizes = [2, 32], strides = [1, 1]} : vector<2x128xf32> to vector<2x32xf32>
    %234 = math.tanh %233 : vector<2x32xf32>
    %235 = vector.extract_strided_slice %220 {offsets = [0, 96], sizes = [2, 32], strides = [1, 1]} : vector<2x128xf32> to vector<2x32xf32>
    %236 = arith.negf %235 : vector<2x32xf32>
    %237 = math.exp %236 : vector<2x32xf32>
    %cst_52 = arith.constant 1.000000e+00 : f32
    %238 = vector.broadcast %cst_52 : f32 to vector<2x32xf32>
    %239 = arith.addf %238, %237 : vector<2x32xf32>
    %240 = arith.divf %238, %239 : vector<2x32xf32>
    %241 = arith.mulf %232, %185 : vector<2x32xf32>
    %242 = arith.mulf %226, %234 : vector<2x32xf32>
    %243 = arith.addf %241, %242 : vector<2x32xf32>
    %244 = math.tanh %243 : vector<2x32xf32>
    %245 = arith.mulf %240, %244 : vector<2x32xf32>
    %246 = vector.extract_strided_slice %9 {offsets = [8, 0], sizes = [2, 128], strides = [1, 1]} : vector<16x128xf32> to vector<2x128xf32>
    %cst_53 = arith.constant dense<0.000000e+00> : vector<2x128xf32>
    %247 = tpu.matmul %215, %0, %cst_53 {dimension_numbers = #tpu.dot_dimension_numbers<[1], [0], [0], [1], [0, 0, 1, 1], [], []>} : vector<2x32xf32>, vector<32x128xf32>, vector<2x128xf32> -> vector<2x128xf32>
    %248 = arith.addf %246, %247 : vector<2x128xf32>
    %249 = vector.extract_strided_slice %248 {offsets = [0, 0], sizes = [2, 32], strides = [1, 1]} : vector<2x128xf32> to vector<2x32xf32>
    %250 = arith.negf %249 : vector<2x32xf32>
    %251 = math.exp %250 : vector<2x32xf32>
    %cst_54 = arith.constant 1.000000e+00 : f32
    %252 = vector.broadcast %cst_54 : f32 to vector<2x32xf32>
    %253 = arith.addf %252, %251 : vector<2x32xf32>
    %254 = arith.divf %252, %253 : vector<2x32xf32>
    %255 = vector.extract_strided_slice %248 {offsets = [0, 32], sizes = [2, 32], strides = [1, 1]} : vector<2x128xf32> to vector<2x32xf32>
    %256 = arith.negf %255 : vector<2x32xf32>
    %257 = math.exp %256 : vector<2x32xf32>
    %cst_55 = arith.constant 1.000000e+00 : f32
    %258 = vector.broadcast %cst_55 : f32 to vector<2x32xf32>
    %259 = arith.addf %258, %257 : vector<2x32xf32>
    %260 = arith.divf %258, %259 : vector<2x32xf32>
    %261 = vector.extract_strided_slice %248 {offsets = [0, 64], sizes = [2, 32], strides = [1, 1]} : vector<2x128xf32> to vector<2x32xf32>
    %262 = math.tanh %261 : vector<2x32xf32>
    %263 = vector.extract_strided_slice %248 {offsets = [0, 96], sizes = [2, 32], strides = [1, 1]} : vector<2x128xf32> to vector<2x32xf32>
    %264 = arith.negf %263 : vector<2x32xf32>
    %265 = math.exp %264 : vector<2x32xf32>
    %cst_56 = arith.constant 1.000000e+00 : f32
    %266 = vector.broadcast %cst_56 : f32 to vector<2x32xf32>
    %267 = arith.addf %266, %265 : vector<2x32xf32>
    %268 = arith.divf %266, %267 : vector<2x32xf32>
    %269 = arith.mulf %260, %213 : vector<2x32xf32>
    %270 = arith.mulf %254, %262 : vector<2x32xf32>
    %271 = arith.addf %269, %270 : vector<2x32xf32>
    %272 = math.tanh %271 : vector<2x32xf32>
    %273 = arith.mulf %268, %272 : vector<2x32xf32>
    %cst_57 = arith.constant dense<0.000000e+00> : vector<2x128xf32>
    %274 = tpu.matmul %273, %1, %cst_57 {dimension_numbers = #tpu.dot_dimension_numbers<[1], [0], [0], [1], [0, 0, 1, 1], [], []>} : vector<2x32xf32>, vector<32x128xf32>, vector<2x128xf32> -> vector<2x128xf32>
    %cst_58 = arith.constant dense<0.000000e+00> : vector<2x128xf32>
    %275 = tpu.matmul %245, %2, %cst_58 {dimension_numbers = #tpu.dot_dimension_numbers<[1], [0], [0], [1], [0, 0, 1, 1], [], []>} : vector<2x32xf32>, vector<32x128xf32>, vector<2x128xf32> -> vector<2x128xf32>
    %276 = arith.addf %274, %275 : vector<2x128xf32>
    %277 = vector.broadcast %3 : vector<1x128xf32> to vector<2x128xf32>
    %278 = arith.addf %276, %277 : vector<2x128xf32>
    %279 = vector.extract_strided_slice %278 {offsets = [0, 0], sizes = [2, 32], strides = [1, 1]} : vector<2x128xf32> to vector<2x32xf32>
    %280 = arith.negf %279 : vector<2x32xf32>
    %281 = math.exp %280 : vector<2x32xf32>
    %cst_59 = arith.constant 1.000000e+00 : f32
    %282 = vector.broadcast %cst_59 : f32 to vector<2x32xf32>
    %283 = arith.addf %282, %281 : vector<2x32xf32>
    %284 = arith.divf %282, %283 : vector<2x32xf32>
    %285 = vector.extract_strided_slice %278 {offsets = [0, 32], sizes = [2, 32], strides = [1, 1]} : vector<2x128xf32> to vector<2x32xf32>
    %286 = arith.negf %285 : vector<2x32xf32>
    %287 = math.exp %286 : vector<2x32xf32>
    %cst_60 = arith.constant 1.000000e+00 : f32
    %288 = vector.broadcast %cst_60 : f32 to vector<2x32xf32>
    %289 = arith.addf %288, %287 : vector<2x32xf32>
    %290 = arith.divf %288, %289 : vector<2x32xf32>
    %291 = vector.extract_strided_slice %278 {offsets = [0, 64], sizes = [2, 32], strides = [1, 1]} : vector<2x128xf32> to vector<2x32xf32>
    %292 = math.tanh %291 : vector<2x32xf32>
    %293 = vector.extract_strided_slice %278 {offsets = [0, 96], sizes = [2, 32], strides = [1, 1]} : vector<2x128xf32> to vector<2x32xf32>
    %294 = arith.negf %293 : vector<2x32xf32>
    %295 = math.exp %294 : vector<2x32xf32>
    %cst_61 = arith.constant 1.000000e+00 : f32
    %296 = vector.broadcast %cst_61 : f32 to vector<2x32xf32>
    %297 = arith.addf %296, %295 : vector<2x32xf32>
    %298 = arith.divf %296, %297 : vector<2x32xf32>
    %299 = arith.mulf %290, %243 : vector<2x32xf32>
    %300 = arith.mulf %284, %292 : vector<2x32xf32>
    %301 = arith.addf %299, %300 : vector<2x32xf32>
    %302 = math.tanh %301 : vector<2x32xf32>
    %303 = arith.mulf %298, %302 : vector<2x32xf32>
    %304 = vector.extract_strided_slice %9 {offsets = [10, 0], sizes = [2, 128], strides = [1, 1]} : vector<16x128xf32> to vector<2x128xf32>
    %cst_62 = arith.constant dense<0.000000e+00> : vector<2x128xf32>
    %305 = tpu.matmul %273, %0, %cst_62 {dimension_numbers = #tpu.dot_dimension_numbers<[1], [0], [0], [1], [0, 0, 1, 1], [], []>} : vector<2x32xf32>, vector<32x128xf32>, vector<2x128xf32> -> vector<2x128xf32>
    %306 = arith.addf %304, %305 : vector<2x128xf32>
    %307 = vector.extract_strided_slice %306 {offsets = [0, 0], sizes = [2, 32], strides = [1, 1]} : vector<2x128xf32> to vector<2x32xf32>
    %308 = arith.negf %307 : vector<2x32xf32>
    %309 = math.exp %308 : vector<2x32xf32>
    %cst_63 = arith.constant 1.000000e+00 : f32
    %310 = vector.broadcast %cst_63 : f32 to vector<2x32xf32>
    %311 = arith.addf %310, %309 : vector<2x32xf32>
    %312 = arith.divf %310, %311 : vector<2x32xf32>
    %313 = vector.extract_strided_slice %306 {offsets = [0, 32], sizes = [2, 32], strides = [1, 1]} : vector<2x128xf32> to vector<2x32xf32>
    %314 = arith.negf %313 : vector<2x32xf32>
    %315 = math.exp %314 : vector<2x32xf32>
    %cst_64 = arith.constant 1.000000e+00 : f32
    %316 = vector.broadcast %cst_64 : f32 to vector<2x32xf32>
    %317 = arith.addf %316, %315 : vector<2x32xf32>
    %318 = arith.divf %316, %317 : vector<2x32xf32>
    %319 = vector.extract_strided_slice %306 {offsets = [0, 64], sizes = [2, 32], strides = [1, 1]} : vector<2x128xf32> to vector<2x32xf32>
    %320 = math.tanh %319 : vector<2x32xf32>
    %321 = vector.extract_strided_slice %306 {offsets = [0, 96], sizes = [2, 32], strides = [1, 1]} : vector<2x128xf32> to vector<2x32xf32>
    %322 = arith.negf %321 : vector<2x32xf32>
    %323 = math.exp %322 : vector<2x32xf32>
    %cst_65 = arith.constant 1.000000e+00 : f32
    %324 = vector.broadcast %cst_65 : f32 to vector<2x32xf32>
    %325 = arith.addf %324, %323 : vector<2x32xf32>
    %326 = arith.divf %324, %325 : vector<2x32xf32>
    %327 = arith.mulf %318, %271 : vector<2x32xf32>
    %328 = arith.mulf %312, %320 : vector<2x32xf32>
    %329 = arith.addf %327, %328 : vector<2x32xf32>
    %330 = math.tanh %329 : vector<2x32xf32>
    %331 = arith.mulf %326, %330 : vector<2x32xf32>
    %cst_66 = arith.constant dense<0.000000e+00> : vector<2x128xf32>
    %332 = tpu.matmul %331, %1, %cst_66 {dimension_numbers = #tpu.dot_dimension_numbers<[1], [0], [0], [1], [0, 0, 1, 1], [], []>} : vector<2x32xf32>, vector<32x128xf32>, vector<2x128xf32> -> vector<2x128xf32>
    %cst_67 = arith.constant dense<0.000000e+00> : vector<2x128xf32>
    %333 = tpu.matmul %303, %2, %cst_67 {dimension_numbers = #tpu.dot_dimension_numbers<[1], [0], [0], [1], [0, 0, 1, 1], [], []>} : vector<2x32xf32>, vector<32x128xf32>, vector<2x128xf32> -> vector<2x128xf32>
    %334 = arith.addf %332, %333 : vector<2x128xf32>
    %335 = vector.broadcast %3 : vector<1x128xf32> to vector<2x128xf32>
    %336 = arith.addf %334, %335 : vector<2x128xf32>
    %337 = vector.extract_strided_slice %336 {offsets = [0, 0], sizes = [2, 32], strides = [1, 1]} : vector<2x128xf32> to vector<2x32xf32>
    %338 = arith.negf %337 : vector<2x32xf32>
    %339 = math.exp %338 : vector<2x32xf32>
    %cst_68 = arith.constant 1.000000e+00 : f32
    %340 = vector.broadcast %cst_68 : f32 to vector<2x32xf32>
    %341 = arith.addf %340, %339 : vector<2x32xf32>
    %342 = arith.divf %340, %341 : vector<2x32xf32>
    %343 = vector.extract_strided_slice %336 {offsets = [0, 32], sizes = [2, 32], strides = [1, 1]} : vector<2x128xf32> to vector<2x32xf32>
    %344 = arith.negf %343 : vector<2x32xf32>
    %345 = math.exp %344 : vector<2x32xf32>
    %cst_69 = arith.constant 1.000000e+00 : f32
    %346 = vector.broadcast %cst_69 : f32 to vector<2x32xf32>
    %347 = arith.addf %346, %345 : vector<2x32xf32>
    %348 = arith.divf %346, %347 : vector<2x32xf32>
    %349 = vector.extract_strided_slice %336 {offsets = [0, 64], sizes = [2, 32], strides = [1, 1]} : vector<2x128xf32> to vector<2x32xf32>
    %350 = math.tanh %349 : vector<2x32xf32>
    %351 = vector.extract_strided_slice %336 {offsets = [0, 96], sizes = [2, 32], strides = [1, 1]} : vector<2x128xf32> to vector<2x32xf32>
    %352 = arith.negf %351 : vector<2x32xf32>
    %353 = math.exp %352 : vector<2x32xf32>
    %cst_70 = arith.constant 1.000000e+00 : f32
    %354 = vector.broadcast %cst_70 : f32 to vector<2x32xf32>
    %355 = arith.addf %354, %353 : vector<2x32xf32>
    %356 = arith.divf %354, %355 : vector<2x32xf32>
    %357 = arith.mulf %348, %301 : vector<2x32xf32>
    %358 = arith.mulf %342, %350 : vector<2x32xf32>
    %359 = arith.addf %357, %358 : vector<2x32xf32>
    %360 = math.tanh %359 : vector<2x32xf32>
    %361 = arith.mulf %356, %360 : vector<2x32xf32>
    %362 = vector.extract_strided_slice %9 {offsets = [12, 0], sizes = [2, 128], strides = [1, 1]} : vector<16x128xf32> to vector<2x128xf32>
    %cst_71 = arith.constant dense<0.000000e+00> : vector<2x128xf32>
    %363 = tpu.matmul %331, %0, %cst_71 {dimension_numbers = #tpu.dot_dimension_numbers<[1], [0], [0], [1], [0, 0, 1, 1], [], []>} : vector<2x32xf32>, vector<32x128xf32>, vector<2x128xf32> -> vector<2x128xf32>
    %364 = arith.addf %362, %363 : vector<2x128xf32>
    %365 = vector.extract_strided_slice %364 {offsets = [0, 0], sizes = [2, 32], strides = [1, 1]} : vector<2x128xf32> to vector<2x32xf32>
    %366 = arith.negf %365 : vector<2x32xf32>
    %367 = math.exp %366 : vector<2x32xf32>
    %cst_72 = arith.constant 1.000000e+00 : f32
    %368 = vector.broadcast %cst_72 : f32 to vector<2x32xf32>
    %369 = arith.addf %368, %367 : vector<2x32xf32>
    %370 = arith.divf %368, %369 : vector<2x32xf32>
    %371 = vector.extract_strided_slice %364 {offsets = [0, 32], sizes = [2, 32], strides = [1, 1]} : vector<2x128xf32> to vector<2x32xf32>
    %372 = arith.negf %371 : vector<2x32xf32>
    %373 = math.exp %372 : vector<2x32xf32>
    %cst_73 = arith.constant 1.000000e+00 : f32
    %374 = vector.broadcast %cst_73 : f32 to vector<2x32xf32>
    %375 = arith.addf %374, %373 : vector<2x32xf32>
    %376 = arith.divf %374, %375 : vector<2x32xf32>
    %377 = vector.extract_strided_slice %364 {offsets = [0, 64], sizes = [2, 32], strides = [1, 1]} : vector<2x128xf32> to vector<2x32xf32>
    %378 = math.tanh %377 : vector<2x32xf32>
    %379 = vector.extract_strided_slice %364 {offsets = [0, 96], sizes = [2, 32], strides = [1, 1]} : vector<2x128xf32> to vector<2x32xf32>
    %380 = arith.negf %379 : vector<2x32xf32>
    %381 = math.exp %380 : vector<2x32xf32>
    %cst_74 = arith.constant 1.000000e+00 : f32
    %382 = vector.broadcast %cst_74 : f32 to vector<2x32xf32>
    %383 = arith.addf %382, %381 : vector<2x32xf32>
    %384 = arith.divf %382, %383 : vector<2x32xf32>
    %385 = arith.mulf %376, %329 : vector<2x32xf32>
    %386 = arith.mulf %370, %378 : vector<2x32xf32>
    %387 = arith.addf %385, %386 : vector<2x32xf32>
    %388 = math.tanh %387 : vector<2x32xf32>
    %389 = arith.mulf %384, %388 : vector<2x32xf32>
    %cst_75 = arith.constant dense<0.000000e+00> : vector<2x128xf32>
    %390 = tpu.matmul %389, %1, %cst_75 {dimension_numbers = #tpu.dot_dimension_numbers<[1], [0], [0], [1], [0, 0, 1, 1], [], []>} : vector<2x32xf32>, vector<32x128xf32>, vector<2x128xf32> -> vector<2x128xf32>
    %cst_76 = arith.constant dense<0.000000e+00> : vector<2x128xf32>
    %391 = tpu.matmul %361, %2, %cst_76 {dimension_numbers = #tpu.dot_dimension_numbers<[1], [0], [0], [1], [0, 0, 1, 1], [], []>} : vector<2x32xf32>, vector<32x128xf32>, vector<2x128xf32> -> vector<2x128xf32>
    %392 = arith.addf %390, %391 : vector<2x128xf32>
    %393 = vector.broadcast %3 : vector<1x128xf32> to vector<2x128xf32>
    %394 = arith.addf %392, %393 : vector<2x128xf32>
    %395 = vector.extract_strided_slice %394 {offsets = [0, 0], sizes = [2, 32], strides = [1, 1]} : vector<2x128xf32> to vector<2x32xf32>
    %396 = arith.negf %395 : vector<2x32xf32>
    %397 = math.exp %396 : vector<2x32xf32>
    %cst_77 = arith.constant 1.000000e+00 : f32
    %398 = vector.broadcast %cst_77 : f32 to vector<2x32xf32>
    %399 = arith.addf %398, %397 : vector<2x32xf32>
    %400 = arith.divf %398, %399 : vector<2x32xf32>
    %401 = vector.extract_strided_slice %394 {offsets = [0, 32], sizes = [2, 32], strides = [1, 1]} : vector<2x128xf32> to vector<2x32xf32>
    %402 = arith.negf %401 : vector<2x32xf32>
    %403 = math.exp %402 : vector<2x32xf32>
    %cst_78 = arith.constant 1.000000e+00 : f32
    %404 = vector.broadcast %cst_78 : f32 to vector<2x32xf32>
    %405 = arith.addf %404, %403 : vector<2x32xf32>
    %406 = arith.divf %404, %405 : vector<2x32xf32>
    %407 = vector.extract_strided_slice %394 {offsets = [0, 64], sizes = [2, 32], strides = [1, 1]} : vector<2x128xf32> to vector<2x32xf32>
    %408 = math.tanh %407 : vector<2x32xf32>
    %409 = vector.extract_strided_slice %394 {offsets = [0, 96], sizes = [2, 32], strides = [1, 1]} : vector<2x128xf32> to vector<2x32xf32>
    %410 = arith.negf %409 : vector<2x32xf32>
    %411 = math.exp %410 : vector<2x32xf32>
    %cst_79 = arith.constant 1.000000e+00 : f32
    %412 = vector.broadcast %cst_79 : f32 to vector<2x32xf32>
    %413 = arith.addf %412, %411 : vector<2x32xf32>
    %414 = arith.divf %412, %413 : vector<2x32xf32>
    %415 = arith.mulf %406, %359 : vector<2x32xf32>
    %416 = arith.mulf %400, %408 : vector<2x32xf32>
    %417 = arith.addf %415, %416 : vector<2x32xf32>
    %418 = math.tanh %417 : vector<2x32xf32>
    %419 = arith.mulf %414, %418 : vector<2x32xf32>
    %420 = vector.extract_strided_slice %9 {offsets = [14, 0], sizes = [2, 128], strides = [1, 1]} : vector<16x128xf32> to vector<2x128xf32>
    %cst_80 = arith.constant dense<0.000000e+00> : vector<2x128xf32>
    %421 = tpu.matmul %389, %0, %cst_80 {dimension_numbers = #tpu.dot_dimension_numbers<[1], [0], [0], [1], [0, 0, 1, 1], [], []>} : vector<2x32xf32>, vector<32x128xf32>, vector<2x128xf32> -> vector<2x128xf32>
    %422 = arith.addf %420, %421 : vector<2x128xf32>
    %423 = vector.extract_strided_slice %422 {offsets = [0, 0], sizes = [2, 32], strides = [1, 1]} : vector<2x128xf32> to vector<2x32xf32>
    %424 = arith.negf %423 : vector<2x32xf32>
    %425 = math.exp %424 : vector<2x32xf32>
    %cst_81 = arith.constant 1.000000e+00 : f32
    %426 = vector.broadcast %cst_81 : f32 to vector<2x32xf32>
    %427 = arith.addf %426, %425 : vector<2x32xf32>
    %428 = arith.divf %426, %427 : vector<2x32xf32>
    %429 = vector.extract_strided_slice %422 {offsets = [0, 32], sizes = [2, 32], strides = [1, 1]} : vector<2x128xf32> to vector<2x32xf32>
    %430 = arith.negf %429 : vector<2x32xf32>
    %431 = math.exp %430 : vector<2x32xf32>
    %cst_82 = arith.constant 1.000000e+00 : f32
    %432 = vector.broadcast %cst_82 : f32 to vector<2x32xf32>
    %433 = arith.addf %432, %431 : vector<2x32xf32>
    %434 = arith.divf %432, %433 : vector<2x32xf32>
    %435 = vector.extract_strided_slice %422 {offsets = [0, 64], sizes = [2, 32], strides = [1, 1]} : vector<2x128xf32> to vector<2x32xf32>
    %436 = math.tanh %435 : vector<2x32xf32>
    %437 = vector.extract_strided_slice %422 {offsets = [0, 96], sizes = [2, 32], strides = [1, 1]} : vector<2x128xf32> to vector<2x32xf32>
    %438 = arith.negf %437 : vector<2x32xf32>
    %439 = math.exp %438 : vector<2x32xf32>
    %cst_83 = arith.constant 1.000000e+00 : f32
    %440 = vector.broadcast %cst_83 : f32 to vector<2x32xf32>
    %441 = arith.addf %440, %439 : vector<2x32xf32>
    %442 = arith.divf %440, %441 : vector<2x32xf32>
    %443 = arith.mulf %434, %387 : vector<2x32xf32>
    %444 = arith.mulf %428, %436 : vector<2x32xf32>
    %445 = arith.addf %443, %444 : vector<2x32xf32>
    %446 = math.tanh %445 : vector<2x32xf32>
    %447 = arith.mulf %442, %446 : vector<2x32xf32>
    %cst_84 = arith.constant dense<0.000000e+00> : vector<2x128xf32>
    %448 = tpu.matmul %447, %1, %cst_84 {dimension_numbers = #tpu.dot_dimension_numbers<[1], [0], [0], [1], [0, 0, 1, 1], [], []>} : vector<2x32xf32>, vector<32x128xf32>, vector<2x128xf32> -> vector<2x128xf32>
    %cst_85 = arith.constant dense<0.000000e+00> : vector<2x128xf32>
    %449 = tpu.matmul %419, %2, %cst_85 {dimension_numbers = #tpu.dot_dimension_numbers<[1], [0], [0], [1], [0, 0, 1, 1], [], []>} : vector<2x32xf32>, vector<32x128xf32>, vector<2x128xf32> -> vector<2x128xf32>
    %450 = arith.addf %448, %449 : vector<2x128xf32>
    %451 = vector.broadcast %3 : vector<1x128xf32> to vector<2x128xf32>
    %452 = arith.addf %450, %451 : vector<2x128xf32>
    %453 = vector.extract_strided_slice %452 {offsets = [0, 0], sizes = [2, 32], strides = [1, 1]} : vector<2x128xf32> to vector<2x32xf32>
    %454 = arith.negf %453 : vector<2x32xf32>
    %455 = math.exp %454 : vector<2x32xf32>
    %cst_86 = arith.constant 1.000000e+00 : f32
    %456 = vector.broadcast %cst_86 : f32 to vector<2x32xf32>
    %457 = arith.addf %456, %455 : vector<2x32xf32>
    %458 = arith.divf %456, %457 : vector<2x32xf32>
    %459 = vector.extract_strided_slice %452 {offsets = [0, 32], sizes = [2, 32], strides = [1, 1]} : vector<2x128xf32> to vector<2x32xf32>
    %460 = arith.negf %459 : vector<2x32xf32>
    %461 = math.exp %460 : vector<2x32xf32>
    %cst_87 = arith.constant 1.000000e+00 : f32
    %462 = vector.broadcast %cst_87 : f32 to vector<2x32xf32>
    %463 = arith.addf %462, %461 : vector<2x32xf32>
    %464 = arith.divf %462, %463 : vector<2x32xf32>
    %465 = vector.extract_strided_slice %452 {offsets = [0, 64], sizes = [2, 32], strides = [1, 1]} : vector<2x128xf32> to vector<2x32xf32>
    %466 = math.tanh %465 : vector<2x32xf32>
    %467 = vector.extract_strided_slice %452 {offsets = [0, 96], sizes = [2, 32], strides = [1, 1]} : vector<2x128xf32> to vector<2x32xf32>
    %468 = arith.negf %467 : vector<2x32xf32>
    %469 = math.exp %468 : vector<2x32xf32>
    %cst_88 = arith.constant 1.000000e+00 : f32
    %470 = vector.broadcast %cst_88 : f32 to vector<2x32xf32>
    %471 = arith.addf %470, %469 : vector<2x32xf32>
    %472 = arith.divf %470, %471 : vector<2x32xf32>
    %473 = arith.mulf %464, %417 : vector<2x32xf32>
    %474 = arith.mulf %458, %466 : vector<2x32xf32>
    %475 = arith.addf %473, %474 : vector<2x32xf32>
    %476 = math.tanh %475 : vector<2x32xf32>
    %477 = arith.mulf %472, %476 : vector<2x32xf32>
    %c0_89 = arith.constant 0 : index
    %c0_90 = arith.constant 0 : index
    %478 = vector.load %arg7[%c0_89, %c0_90] : memref<32x64xf32, #tpu.memory_space<vmem>>, vector<32x64xf32>
    %cst_91 = arith.constant dense<0.000000e+00> : vector<2x64xf32>
    %479 = tpu.matmul %477, %478, %cst_91 {dimension_numbers = #tpu.dot_dimension_numbers<[1], [0], [0], [1], [0, 0, 1, 1], [], []>} : vector<2x32xf32>, vector<32x64xf32>, vector<2x64xf32> -> vector<2x64xf32>
    %c0_92 = arith.constant 0 : index
    %c0_93 = arith.constant 0 : index
    %480 = vector.load %arg8[%c0_92, %c0_93] : memref<1x64xf32, #tpu.memory_space<vmem>>, vector<1x64xf32>
    %481 = vector.broadcast %480 : vector<1x64xf32> to vector<2x64xf32>
    %482 = arith.addf %479, %481 : vector<2x64xf32>
    %cst_94 = arith.constant 0.000000e+00 : f32
    %483 = vector.broadcast %cst_94 : f32 to vector<2x64xf32>
    %484 = arith.maximumf %482, %483 : vector<2x64xf32>
    %c0_95 = arith.constant 0 : index
    %c0_96 = arith.constant 0 : index
    %485 = vector.load %arg9[%c0_95, %c0_96] : memref<64x128xf32, #tpu.memory_space<vmem>>, vector<64x128xf32>
    %cst_97 = arith.constant dense<0.000000e+00> : vector<2x128xf32>
    %486 = tpu.matmul %484, %485, %cst_97 {dimension_numbers = #tpu.dot_dimension_numbers<[1], [0], [0], [1], [0, 0, 1, 1], [], []>} : vector<2x64xf32>, vector<64x128xf32>, vector<2x128xf32> -> vector<2x128xf32>
    %c0_98 = arith.constant 0 : index
    %c0_99 = arith.constant 0 : index
    %487 = vector.load %arg10[%c0_98, %c0_99] : memref<1x128xf32, #tpu.memory_space<vmem>>, vector<1x128xf32>
    %488 = vector.broadcast %487 : vector<1x128xf32> to vector<2x128xf32>
    %489 = arith.addf %486, %488 : vector<2x128xf32>
    %c0_100 = arith.constant 0 : index
    %c0_101 = arith.constant 0 : index
    %490 = vector.load %arg11[%c0_100, %c0_101] : memref<2x128xf32, #tpu.memory_space<vmem>>, vector<2x128xf32>
    tpu.vector_store %arg11[%c0_100, %c0_101], %489 {strides = array<i32>} : memref<2x128xf32, #tpu.memory_space<vmem>>, vector<2x128xf32>,
    return
  }
}

</mosaic_0001>

<llo_original>
// kernel: supermarket_rnn_forward.1
$region0: #{supermarket_rnn_forward.1}
  #allocation0 [shape = 'u32[]', space=smem, size = 0x4, offset = 0x4, fixed_abs, tag = 'smem constant byte address 0x4 - core index']
  #allocation1 [shape = 'u32[144,128]{1,0:T(1,128)}', space=vmem, size = 0x12000, scoped, tag = 'internal scratch']
  %s0 = inlined_call_operand.vmem [shape: f32[16,16], index: 0, kind: input, shape index: {}]
  %s1 = inlined_call_operand.vmem [shape: f32[16,128], index: 1, kind: input, shape index: {}]
  %s2 = inlined_call_operand.vmem [shape: f32[32,128], index: 2, kind: input, shape index: {}]
  %s3 = inlined_call_operand.hbm [shape: f32[1,128], index: 3, kind: input, shape index: {}]
  %s4 = inlined_call_operand.hbm [shape: f32[32,128], index: 4, kind: input, shape index: {}]
  %s5 = inlined_call_operand.hbm [shape: f32[32,128], index: 5, kind: input, shape index: {}]
  %s6 = inlined_call_operand.vmem [shape: f32[1,128], index: 6, kind: input, shape index: {}]
  %s7 = inlined_call_operand.hbm [shape: f32[32,64], index: 7, kind: input, shape index: {}]
  %s8 = inlined_call_operand.hbm [shape: f32[1,64], index: 8, kind: input, shape index: {}]
  %s9 = inlined_call_operand.hbm [shape: f32[64,128], index: 9, kind: input, shape index: {}]
  %s10 = inlined_call_operand.hbm [shape: f32[1,128], index: 10, kind: input, shape index: {}]
  %s11 = inlined_call_operand.vmem [shape: f32[2,128], index: 11, kind: output, shape index: {}]
  %s12 = sld [smem:[#allocation0]]
  $region82: #{supermarket_rnn_forward.1} parent=0
    _
  %s14 = ssub.s32 1, %s12
  %s15 = scalar_select 0, %s14, %s12
  $region1: #{supermarket_rnn_forward.1} parent=0
    #allocation2 [shape = 'u8[512]{0}', space=vmem, size = 0x400, scoped, tag = 'input window, operand 3, single buffered']
    #allocation3 [shape = 's32[1]{0}', space=sflag, size = 0x4, scoped, tag = 'scoped memory for supermarket_rnn_forward.1']
    #allocation4 [shape = 'u8[16384]{0}', space=vmem, size = 0x4000, scoped, tag = 'input window, operand 4, single buffered']
    #allocation5 [shape = 's32[1]{0}', space=sflag, size = 0x4, scoped, tag = 'scoped memory for supermarket_rnn_forward.1']
    #allocation6 [shape = 'u8[16384]{0}', space=vmem, size = 0x4000, scoped, tag = 'input window, operand 5, single buffered']
    #allocation7 [shape = 'u8[16384]{0}', space=vmem, size = 0x4000, scoped, tag = 'input window, operand 7, single buffered']
    #allocation8 [shape = 's32[1]{0}', space=sflag, size = 0x4, scoped, tag = 'scoped memory for supermarket_rnn_forward.1']
    #allocation9 [shape = 'u8[512]{0}', space=vmem, size = 0x400, scoped, tag = 'input window, operand 8, single buffered']
    #allocation10 [shape = 'u8[32768]{0}', space=vmem, size = 0x8000, scoped, tag = 'input window, operand 9, single buffered']
    #allocation11 [shape = 's32[1]{0}', space=sflag, size = 0x4, scoped, tag = 'scoped memory for supermarket_rnn_forward.1']
    #allocation12 [shape = 'u8[512]{0}', space=vmem, size = 0x400, scoped, tag = 'input window, operand 10, single buffered']
    %16 = vsyncpa [#allocation3], 0
    %17 = vsyncpa [#allocation5], 0
    %18 = vsyncpa [#allocation8], 0
    %19 = vsyncpa [#allocation11], 0
    // Predicated region
    $region2: #{supermarket_rnn_forward.1} parent=1 // pred_check
      _
    $region3: #{supermarket_rnn_forward.1} parent=1 // pred_check_branch
      %21 = sbr.rel (0) target = $region5
    $region4: #{supermarket_rnn_forward.1} parent=1 // pred_region
      _
    $region5: #{supermarket_rnn_forward.1} parent=1 // pred_fallthru
      _
    // Predicated region
    $region6: #{supermarket_rnn_forward.1} parent=1 // pred_check
      _
    $region7: #{supermarket_rnn_forward.1} parent=1 // pred_check_branch
      %23 = sbr.rel (0) target = $region9
    $region8: #{supermarket_rnn_forward.1} parent=1 // pred_region
      _
    $region9: #{supermarket_rnn_forward.1} parent=1 // pred_fallthru
      _
    // Predicated region
    $region10: #{supermarket_rnn_forward.1} parent=1 // pred_check
      _
    $region11: #{supermarket_rnn_forward.1} parent=1 // pred_check_branch
      %25 = sbr.rel (0) target = $region13
    $region12: #{supermarket_rnn_forward.1} parent=1 // pred_region
      _
    $region13: #{supermarket_rnn_forward.1} parent=1 // pred_fallthru
      _
    // Predicated region
    $region14: #{supermarket_rnn_forward.1} parent=1 // pred_check
      _
    $region15: #{supermarket_rnn_forward.1} parent=1 // pred_check_branch
      %27 = sbr.rel (0) target = $region17
    $region16: #{supermarket_rnn_forward.1} parent=1 // pred_region
      %s29 = ssub.s32 16, 16
      %30 = vsyncadd [#allocation3], %s29
      %s32 = sshll.u32 [#allocation2], 4
      %s33 = int_to_ptr.vmem [resolvable:$true] %s32
      %35 = dma.hbm_to_vmem [thread:$0]  %s3, 16, %s33, [#allocation3]
    $region17: #{supermarket_rnn_forward.1} parent=1 // pred_fallthru
      _
    // Predicated region
    $region18: #{supermarket_rnn_forward.1} parent=1 // pred_check
      _
    $region19: #{supermarket_rnn_forward.1} parent=1 // pred_check_branch
      %37 = sbr.rel (0) target = $region21
    $region20: #{supermarket_rnn_forward.1} parent=1 // pred_region
      %s39 = ssub.s32 512, 512
      %40 = vsyncadd [#allocation5], %s39
      %s41 = sshll.u32 [#allocation4], 4
      %s42 = int_to_ptr.vmem [resolvable:$true] %s41
      %47 = dma.hbm_to_vmem [thread:$0]  %s4, 512, %s42, [#allocation5], 128, 128, 8
    $region21: #{supermarket_rnn_forward.1} parent=1 // pred_fallthru
      _
    // Predicated region
    $region22: #{supermarket_rnn_forward.1} parent=1 // pred_check
      _
    $region23: #{supermarket_rnn_forward.1} parent=1 // pred_check_branch
      %49 = sbr.rel (0) target = $region25
    $region24: #{supermarket_rnn_forward.1} parent=1 // pred_region
      %s51 = ssub.s32 512, 512
      %52 = vsyncadd [#allocation5], %s51
      %s53 = sshll.u32 [#allocation6], 4
      %s54 = int_to_ptr.vmem [resolvable:$true] %s53
      %59 = dma.hbm_to_vmem [thread:$0]  %s5, 512, %s54, [#allocation5], 128, 128, 8
    $region25: #{supermarket_rnn_forward.1} parent=1 // pred_fallthru
      _
    // Predicated region
    $region26: #{supermarket_rnn_forward.1} parent=1 // pred_check
      _
    $region27: #{supermarket_rnn_forward.1} parent=1 // pred_check_branch
      %61 = sbr.rel (0) target = $region29
    $region28: #{supermarket_rnn_forward.1} parent=1 // pred_region
      _
    $region29: #{supermarket_rnn_forward.1} parent=1 // pred_fallthru
      _
    // Predicated region
    $region30: #{supermarket_rnn_forward.1} parent=1 // pred_check
      _
    $region31: #{supermarket_rnn_forward.1} parent=1 // pred_check_branch
      %63 = sbr.rel (0) target = $region33
    $region32: #{supermarket_rnn_forward.1} parent=1 // pred_region
      %s65 = ssub.s32 512, 512
      %66 = vsyncadd [#allocation8], %s65
      %s67 = sshll.u32 [#allocation7], 4
      %s68 = int_to_ptr.vmem [resolvable:$true] %s67
      %73 = dma.hbm_to_vmem [thread:$0]  %s7, 512, %s68, [#allocation8], 128, 128, 8
    $region33: #{supermarket_rnn_forward.1} parent=1 // pred_fallthru
      _
    // Predicated region
    $region34: #{supermarket_rnn_forward.1} parent=1 // pred_check
      _
    $region35: #{supermarket_rnn_forward.1} parent=1 // pred_check_branch
      %75 = sbr.rel (0) target = $region37
    $region36: #{supermarket_rnn_forward.1} parent=1 // pred_region
      %s77 = ssub.s32 16, 16
      %78 = vsyncadd [#allocation8], %s77
      %s80 = sshll.u32 [#allocation9], 4
      %s81 = int_to_ptr.vmem [resolvable:$true] %s80
      %83 = dma.hbm_to_vmem [thread:$0]  %s8, 16, %s81, [#allocation8]
    $region37: #{supermarket_rnn_forward.1} parent=1 // pred_fallthru
      _
    // Predicated region
    $region38: #{supermarket_rnn_forward.1} parent=1 // pred_check
      _
    $region39: #{supermarket_rnn_forward.1} parent=1 // pred_check_branch
      %85 = sbr.rel (0) target = $region41
    $region40: #{supermarket_rnn_forward.1} parent=1 // pred_region
      %s87 = ssub.s32 1024, 1024
      %88 = vsyncadd [#allocation11], %s87
      %s89 = sshll.u32 [#allocation10], 4
      %s90 = int_to_ptr.vmem [resolvable:$true] %s89
      %95 = dma.hbm_to_vmem [thread:$0]  %s9, 1024, %s90, [#allocation11], 128, 128, 8
    $region41: #{supermarket_rnn_forward.1} parent=1 // pred_fallthru
      _
    // Predicated region
    $region42: #{supermarket_rnn_forward.1} parent=1 // pred_check
      _
    $region43: #{supermarket_rnn_forward.1} parent=1 // pred_check_branch
      %97 = sbr.rel (0) target = $region45
    $region44: #{supermarket_rnn_forward.1} parent=1 // pred_region
      %s99 = ssub.s32 16, 16
      %100 = vsyncadd [#allocation11], %s99
      %s102 = sshll.u32 [#allocation12], 4
      %s103 = int_to_ptr.vmem [resolvable:$true] %s102
      %105 = dma.hbm_to_vmem [thread:$0]  %s10, 16, %s103, [#allocation11]
    $region45: #{supermarket_rnn_forward.1} parent=1 // pred_fallthru
      _
    // Predicated region
    $region46: #{supermarket_rnn_forward.1} parent=1 // pred_check
      _
    $region47: #{supermarket_rnn_forward.1} parent=1 // pred_check_branch
      %107 = sbr.rel (0) target = $region49
    $region48: #{supermarket_rnn_forward.1} parent=1 // pred_region
      %108 = dma.done [#allocation3], 16
    $region49: #{supermarket_rnn_forward.1} parent=1 // pred_fallthru
      _
    // Predicated region
    $region50: #{supermarket_rnn_forward.1} parent=1 // pred_check
      _
    $region51: #{supermarket_rnn_forward.1} parent=1 // pred_check_branch
      %110 = sbr.rel (0) target = $region53
    $region52: #{supermarket_rnn_forward.1} parent=1 // pred_region
      %111 = dma.done [#allocation5], 512
    $region53: #{supermarket_rnn_forward.1} parent=1 // pred_fallthru
      _
    // Predicated region
    $region54: #{supermarket_rnn_forward.1} parent=1 // pred_check
      _
    $region55: #{supermarket_rnn_forward.1} parent=1 // pred_check_branch
      %113 = sbr.rel (0) target = $region57
    $region56: #{supermarket_rnn_forward.1} parent=1 // pred_region
      %114 = dma.done [#allocation5], 512
    $region57: #{supermarket_rnn_forward.1} parent=1 // pred_fallthru
      _
    // Predicated region
    $region58: #{supermarket_rnn_forward.1} parent=1 // pred_check
      _
    $region59: #{supermarket_rnn_forward.1} parent=1 // pred_check_branch
      %116 = sbr.rel (0) target = $region61
    $region60: #{supermarket_rnn_forward.1} parent=1 // pred_region
      %117 = dma.done [#allocation8], 512
    $region61: #{supermarket_rnn_forward.1} parent=1 // pred_fallthru
      _
    // Predicated region
    $region62: #{supermarket_rnn_forward.1} parent=1 // pred_check
      _
    $region63: #{supermarket_rnn_forward.1} parent=1 // pred_check_branch
      %119 = sbr.rel (0) target = $region65
    $region64: #{supermarket_rnn_forward.1} parent=1 // pred_region
      %120 = dma.done [#allocation8], 16
    $region65: #{supermarket_rnn_forward.1} parent=1 // pred_fallthru
      _
    // Predicated region
    $region66: #{supermarket_rnn_forward.1} parent=1 // pred_check
      _
    $region67: #{supermarket_rnn_forward.1} parent=1 // pred_check_branch
      %122 = sbr.rel (0) target = $region69
    $region68: #{supermarket_rnn_forward.1} parent=1 // pred_region
      %123 = dma.done [#allocation11], 1024
    $region69: #{supermarket_rnn_forward.1} parent=1 // pred_fallthru
      _
    // Predicated region
    $region70: #{supermarket_rnn_forward.1} parent=1 // pred_check
      _
    $region71: #{supermarket_rnn_forward.1} parent=1 // pred_check_branch
      %125 = sbr.rel (0) target = $region73
    $region72: #{supermarket_rnn_forward.1} parent=1 // pred_region
      %126 = dma.done [#allocation11], 16
    $region73: #{supermarket_rnn_forward.1} parent=1 // pred_fallthru
      _
    %v127 = vld [vmem:[%s2] sm:$0xff]
    %v128 = vld [vmem:[%s2 + $0x8] sm:$0xff]
    %v129 = vld [vmem:[%s2 + $0x10] sm:$0xff]
    %v130 = vld [vmem:[%s2 + $0x18] sm:$0xff]
    %v131 = vld [vmem:[#allocation4] sm:$0xff]
    %v132 = vld [vmem:[#allocation4 + $0x8] sm:$0xff]
    %v133 = vld [vmem:[#allocation4 + $0x10] sm:$0xff]
    %v134 = vld [vmem:[#allocation4 + $0x18] sm:$0xff]
    %v135 = vld [vmem:[#allocation6] sm:$0xff]
    %v136 = vld [vmem:[#allocation6 + $0x8] sm:$0xff]
    %v137 = vld [vmem:[#allocation6 + $0x10] sm:$0xff]
    %v138 = vld [vmem:[#allocation6 + $0x18] sm:$0xff]
    %v139 = vld [vmem:[%s6] sm:$0x1]
    %v140 = vld [vmem:[%s0] sm:$0xff]
    %v141 = vld [vmem:[%s0 + $0x8] sm:$0xff]
    %v142 = vld [vmem:[%s1] sm:$0xff]
    %v143 = vld [vmem:[%s1 + $0x8] sm:$0xff]
    %v144 = vld [vmem:[#allocation2] sm:$0x1]
    %v146 = vlaneseq
    %v147 = vshrl.u32 %v146, 7
    %v148 = vsub.s32 0, %v147
    %v149 = vrot.slane %v144, %v148
    %vm151 = vcmask 130048
    %v153 = vsel %vm151, %v140, 0
    %v156 = vsel %vm151, %v141, 0
    %158 = vmatprep.subr.mxu0 0.0
    %159 = vmatpush1.msra.mxu0 0.0
    %160 = vmatprep.subr.mxu0 0.0
    %161 = vmatpush1.msra.mxu0 0.0
    %162 = vmatprep.subr.mxu0 0.0
    %163 = vmatpush1.msra.mxu0 0.0
    %164 = vmatprep.subr.mxu0 0.0
    %165 = vmatpush1.msra.mxu0 0.0
    %166 = vmatprep.subr.mxu0 0.0
    %167 = vmatpush1.msra.mxu0 0.0
    %168 = vmatprep.subr.mxu0 0.0
    %169 = vmatpush1.msra.mxu0 0.0
    %170 = vmatprep.subr.mxu0 0.0
    %171 = vmatpush1.msra.mxu0 0.0
    %172 = vmatprep.subr.mxu0 0.0
    %173 = vmatpush1.msra.mxu0 0.0
    %174 = vmatprep.subr.mxu0 0.0
    %175 = vmatpush1.msra.mxu0 0.0
    %176 = vmatprep.subr.mxu0 0.0
    %177 = vmatpush1.msra.mxu0 0.0
    %178 = vmatprep.subr.mxu0 0.0
    %179 = vmatpush1.msra.mxu0 0.0
    %180 = vmatprep.subr.mxu0 0.0
    %181 = vmatpush1.msra.mxu0 0.0
    %182 = vmatprep.subr.mxu0 0.0
    %183 = vmatpush1.msra.mxu0 0.0
    %184 = vmatprep.subr.mxu0 0.0
    %185 = vmatpush1.msra.mxu0 0.0
    %186 = vmatprep.subr.mxu0 0.0
    %187 = vmatpush1.msra.mxu0 %v143
    %188 = vmatprep.subr.mxu0 0.0
    %189 = vmatpush1.msra.mxu0 %v142
    %190 = vmatprep.subr.mxu0 0.0
    %191 = vmatpush2.msra.mxu0 0.0
    %192 = vmatprep.subr.mxu0 0.0
    %193 = vmatpush2.msra.mxu0 0.0
    %194 = vmatprep.subr.mxu0 0.0
    %195 = vmatpush2.msra.mxu0 0.0
    %196 = vmatprep.subr.mxu0 0.0
    %197 = vmatpush2.msra.mxu0 0.0
    %198 = vmatprep.subr.mxu0 0.0
    %199 = vmatpush2.msra.mxu0 0.0
    %200 = vmatprep.subr.mxu0 0.0
    %201 = vmatpush2.msra.mxu0 0.0
    %202 = vmatprep.subr.mxu0 0.0
    %203 = vmatpush2.msra.mxu0 0.0
    %204 = vmatprep.subr.mxu0 0.0
    %205 = vmatpush2.msra.mxu0 0.0
    %206 = vmatprep.subr.mxu0 0.0
    %207 = vmatpush2.msra.mxu0 0.0
    %208 = vmatprep.subr.mxu0 0.0
    %209 = vmatpush2.msra.mxu0 0.0
    %210 = vmatprep.subr.mxu0 0.0
    %211 = vmatpush2.msra.mxu0 0.0
    %212 = vmatprep.subr.mxu0 0.0
    %213 = vmatpush2.msra.mxu0 0.0
    %214 = vmatprep.subr.mxu0 0.0
    %215 = vmatpush2.msra.mxu0 0.0
    %216 = vmatprep.subr.mxu0 0.0
    %217 = vmatpush2.msra.mxu0 0.0
    %218 = vmatprep.subr.mxu0 0.0
    %219 = vmatpush2.msra.mxu0 0.0
    %220 = vmatprep.subr.mxu0 0.0
    %221 = vmatpush2.msra.mxu0 0.0
    %222 = vmatprep.mubr.f32.mxu0 0.0
    %223 = vmatmul.mubr.f32.gmra.mxu0 %v153
    %v224 = vpop.f32.mrf.mxu0
    %v225 = vadd.f32 %v149, %v224
    %v226 = vpop.f32.mrf.mxu0
    %227 = vmatprep.mubr.f32.mxu0 0.0
    %228 = vmatmul.mubr.f32.gmra.mxu0 %v156
    %v229 = vpop.f32.mrf.mxu0
    %v230 = vadd.f32 %v149, %v229
    %v231 = vpop.f32.mrf.mxu0
    %232 = vdwg.mxu0
    %vm233 = vcmask 261120
    %v235 = vsel %vm233, 0.0, 0
    %237 = vmatprep.subr.mxu0 0.0
    %238 = vmatpush1.msra.mxu0 0.0
    %239 = vmatprep.subr.mxu0 0.0
    %240 = vmatpush1.msra.mxu0 0.0
    %241 = vmatprep.subr.mxu0 0.0
    %242 = vmatpush1.msra.mxu0 0.0
    %243 = vmatprep.subr.mxu0 0.0
    %244 = vmatpush1.msra.mxu0 0.0
    %245 = vmatprep.subr.mxu0 0.0
    %246 = vmatpush1.msra.mxu0 0.0
    %247 = vmatprep.subr.mxu0 0.0
    %248 = vmatpush1.msra.mxu0 0.0
    %249 = vmatprep.subr.mxu0 0.0
    %250 = vmatpush1.msra.mxu0 0.0
    %251 = vmatprep.subr.mxu0 0.0
    %252 = vmatpush1.msra.mxu0 0.0
    %253 = vmatprep.subr.mxu0 0.0
    %254 = vmatpush1.msra.mxu0 0.0
    %255 = vmatprep.subr.mxu0 0.0
    %256 = vmatpush1.msra.mxu0 0.0
    %257 = vmatprep.subr.mxu0 0.0
    %258 = vmatpush1.msra.mxu0 0.0
    %259 = vmatprep.subr.mxu0 0.0
    %260 = vmatpush1.msra.mxu0 0.0
    %261 = vmatprep.subr.mxu0 0.0
    %262 = vmatpush1.msra.mxu0 %v130
    %263 = vmatprep.subr.mxu0 0.0
    %264 = vmatpush1.msra.mxu0 %v129
    %265 = vmatprep.subr.mxu0 0.0
    %266 = vmatpush1.msra.mxu0 %v128
    %267 = vmatprep.subr.mxu0 0.0
    %268 = vmatpush1.msra.mxu0 %v127
    %269 = vmatprep.subr.mxu0 0.0
    %270 = vmatpush2.msra.mxu0 0.0
    %271 = vmatprep.subr.mxu0 0.0
    %272 = vmatpush2.msra.mxu0 0.0
    %273 = vmatprep.subr.mxu0 0.0
    %274 = vmatpush2.msra.mxu0 0.0
    %275 = vmatprep.subr.mxu0 0.0
    %276 = vmatpush2.msra.mxu0 0.0
    %277 = vmatprep.subr.mxu0 0.0
    %278 = vmatpush2.msra.mxu0 0.0
    %279 = vmatprep.subr.mxu0 0.0
    %280 = vmatpush2.msra.mxu0 0.0
    %281 = vmatprep.subr.mxu0 0.0
    %282 = vmatpush2.msra.mxu0 0.0
    %283 = vmatprep.subr.mxu0 0.0
    %284 = vmatpush2.msra.mxu0 0.0
    %285 = vmatprep.subr.mxu0 0.0
    %286 = vmatpush2.msra.mxu0 0.0
    %287 = vmatprep.subr.mxu0 0.0
    %288 = vmatpush2.msra.mxu0 0.0
    %289 = vmatprep.subr.mxu0 0.0
    %290 = vmatpush2.msra.mxu0 0.0
    %291 = vmatprep.subr.mxu0 0.0
    %292 = vmatpush2.msra.mxu0 0.0
    %293 = vmatprep.subr.mxu0 0.0
    %294 = vmatpush2.msra.mxu0 0.0
    %295 = vmatprep.subr.mxu0 0.0
    %296 = vmatpush2.msra.mxu0 0.0
    %297 = vmatprep.subr.mxu0 0.0
    %298 = vmatpush2.msra.mxu0 0.0
    %299 = vmatprep.subr.mxu0 0.0
    %300 = vmatpush2.msra.mxu0 0.0
    %301 = vmatprep.mubr.f32.mxu0 0.0
    %302 = vmatmul.mubr.f32.gmra.mxu0 %v235
    %v303 = vpop.f32.mrf.mxu0
    %v304 = vadd.f32 0.0, %v303
    %v305 = vpop.f32.mrf.mxu0
    %306 = vdwg.mxu0
    %v307 = vadd.f32 %v225, %v304
    %v308 = vxor.u32 %v307, 2147483648
    %v309 = vmul.f32 %v308, 1.442695
    %v310 = vpow.pop %v309
    %v311 = vadd.f32 %v310, 1.0
    %v312 = vrcp.pop %v311
    %v313 = vmul.f32 1.0, %v312
    %v314 = vtanh.pop %v307
    %v315 = vmul.f32 %v313, 0.0
    %317 = vrot.lane.b32.xlu0 %v314, 64
    %v318 = vpop.permute.xlu0 %317
    %v320 = vmul.f32 %v313, %v318
    %322 = vrot.lane.b32.xlu0 %v320, 32
    %v323 = vpop.permute.xlu0 %322
    %v325 = vadd.f32 %v315, %v323
    %v326 = vtanh.pop %v325
    %328 = vrot.lane.b32.xlu0 %v326, 64
    %v329 = vpop.permute.xlu0 %328
    %v331 = vmul.f32 %v313, %v329
    %332 = vmatprep.subr.mxu0 0.0
    %333 = vmatpush1.msra.mxu0 0.0
    %334 = vmatprep.subr.mxu0 0.0
    %335 = vmatpush1.msra.mxu0 0.0
    %336 = vmatprep.subr.mxu0 0.0
    %337 = vmatpush1.msra.mxu0 0.0
    %338 = vmatprep.subr.mxu0 0.0
    %339 = vmatpush1.msra.mxu0 0.0
    %340 = vmatprep.subr.mxu0 0.0
    %341 = vmatpush1.msra.mxu0 0.0
    %342 = vmatprep.subr.mxu0 0.0
    %343 = vmatpush1.msra.mxu0 0.0
    %344 = vmatprep.subr.mxu0 0.0
    %345 = vmatpush1.msra.mxu0 0.0
    %346 = vmatprep.subr.mxu0 0.0
    %347 = vmatpush1.msra.mxu0 0.0
    %348 = vmatprep.subr.mxu0 0.0
    %349 = vmatpush1.msra.mxu0 0.0
    %350 = vmatprep.subr.mxu0 0.0
    %351 = vmatpush1.msra.mxu0 0.0
    %352 = vmatprep.subr.mxu0 0.0
    %353 = vmatpush1.msra.mxu0 0.0
    %354 = vmatprep.subr.mxu0 0.0
    %355 = vmatpush1.msra.mxu0 0.0
    %356 = vmatprep.subr.mxu0 0.0
    %357 = vmatpush1.msra.mxu0 %v138
    %358 = vmatprep.subr.mxu0 0.0
    %359 = vmatpush1.msra.mxu0 %v137
    %360 = vmatprep.subr.mxu0 0.0
    %361 = vmatpush1.msra.mxu0 %v136
    %362 = vmatprep.subr.mxu0 0.0
    %363 = vmatpush1.msra.mxu0 %v135
    %364 = vmatprep.subr.mxu0 0.0
    %365 = vmatpush2.msra.mxu0 0.0
    %366 = vmatprep.subr.mxu0 0.0
    %367 = vmatpush2.msra.mxu0 0.0
    %368 = vmatprep.subr.mxu0 0.0
    %369 = vmatpush2.msra.mxu0 0.0
    %370 = vmatprep.subr.mxu0 0.0
    %371 = vmatpush2.msra.mxu0 0.0
    %372 = vmatprep.subr.mxu0 0.0
    %373 = vmatpush2.msra.mxu0 0.0
    %374 = vmatprep.subr.mxu0 0.0
    %375 = vmatpush2.msra.mxu0 0.0
    %376 = vmatprep.subr.mxu0 0.0
    %377 = vmatpush2.msra.mxu0 0.0
    %378 = vmatprep.subr.mxu0 0.0
    %379 = vmatpush2.msra.mxu0 0.0
    %380 = vmatprep.subr.mxu0 0.0
    %381 = vmatpush2.msra.mxu0 0.0
    %382 = vmatprep.subr.mxu0 0.0
    %383 = vmatpush2.msra.mxu0 0.0
    %384 = vmatprep.subr.mxu0 0.0
    %385 = vmatpush2.msra.mxu0 0.0
    %386 = vmatprep.subr.mxu0 0.0
    %387 = vmatpush2.msra.mxu0 0.0
    %388 = vmatprep.subr.mxu0 0.0
    %389 = vmatpush2.msra.mxu0 0.0
    %390 = vmatprep.subr.mxu0 0.0
    %391 = vmatpush2.msra.mxu0 0.0
    %392 = vmatprep.subr.mxu0 0.0
    %393 = vmatpush2.msra.mxu0 0.0
    %394 = vmatprep.subr.mxu0 0.0
    %395 = vmatpush2.msra.mxu0 0.0
    %396 = vmatprep.mubr.f32.mxu0 0.0
    %397 = vmatmul.mubr.f32.gmra.mxu0 %v235
    %v398 = vpop.f32.mrf.mxu0
    %v399 = vadd.f32 0.0, %v398
    %v400 = vpop.f32.mrf.mxu0
    %401 = vdwg.mxu0
    %403 = vrot.lane.b32.xlu0 %v331, 32
    %v404 = vpop.permute.xlu0 %403
    %v405 = vsel %vm233, %v404, 0
    %407 = vmatprep.subr.mxu0 0.0
    %408 = vmatpush1.msra.mxu0 0.0
    %409 = vmatprep.subr.mxu0 0.0
    %410 = vmatpush1.msra.mxu0 0.0
    %411 = vmatprep.subr.mxu0 0.0
    %412 = vmatpush1.msra.mxu0 0.0
    %413 = vmatprep.subr.mxu0 0.0
    %414 = vmatpush1.msra.mxu0 0.0
    %415 = vmatprep.subr.mxu0 0.0
    %416 = vmatpush1.msra.mxu0 0.0
    %417 = vmatprep.subr.mxu0 0.0
    %418 = vmatpush1.msra.mxu0 0.0
    %419 = vmatprep.subr.mxu0 0.0
    %420 = vmatpush1.msra.mxu0 0.0
    %421 = vmatprep.subr.mxu0 0.0
    %422 = vmatpush1.msra.mxu0 0.0
    %423 = vmatprep.subr.mxu0 0.0
    %424 = vmatpush1.msra.mxu0 0.0
    %425 = vmatprep.subr.mxu0 0.0
    %426 = vmatpush1.msra.mxu0 0.0
    %427 = vmatprep.subr.mxu0 0.0
    %428 = vmatpush1.msra.mxu0 0.0
    %429 = vmatprep.subr.mxu0 0.0
    %430 = vmatpush1.msra.mxu0 0.0
    %431 = vmatprep.subr.mxu0 0.0
    %432 = vmatpush1.msra.mxu0 %v134
    %433 = vmatprep.subr.mxu0 0.0
    %434 = vmatpush1.msra.mxu0 %v133
    %435 = vmatprep.subr.mxu0 0.0
    %436 = vmatpush1.msra.mxu0 %v132
    %437 = vmatprep.subr.mxu0 0.0
    %438 = vmatpush1.msra.mxu0 %v131
    %439 = vmatprep.subr.mxu0 0.0
    %440 = vmatpush2.msra.mxu0 0.0
    %441 = vmatprep.subr.mxu0 0.0
    %442 = vmatpush2.msra.mxu0 0.0
    %443 = vmatprep.subr.mxu0 0.0
    %444 = vmatpush2.msra.mxu0 0.0
    %445 = vmatprep.subr.mxu0 0.0
    %446 = vmatpush2.msra.mxu0 0.0
    %447 = vmatprep.subr.mxu0 0.0
    %448 = vmatpush2.msra.mxu0 0.0
    %449 = vmatprep.subr.mxu0 0.0
    %450 = vmatpush2.msra.mxu0 0.0
    %451 = vmatprep.subr.mxu0 0.0
    %452 = vmatpush2.msra.mxu0 0.0
    %453 = vmatprep.subr.mxu0 0.0
    %454 = vmatpush2.msra.mxu0 0.0
    %455 = vmatprep.subr.mxu0 0.0
    %456 = vmatpush2.msra.mxu0 0.0
    %457 = vmatprep.subr.mxu0 0.0
    %458 = vmatpush2.msra.mxu0 0.0
    %459 = vmatprep.subr.mxu0 0.0
    %460 = vmatpush2.msra.mxu0 0.0
    %461 = vmatprep.subr.mxu0 0.0
    %462 = vmatpush2.msra.mxu0 0.0
    %463 = vmatprep.subr.mxu0 0.0
    %464 = vmatpush2.msra.mxu0 0.0
    %465 = vmatprep.subr.mxu0 0.0
    %466 = vmatpush2.msra.mxu0 0.0
    %467 = vmatprep.subr.mxu0 0.0
    %468 = vmatpush2.msra.mxu0 0.0
    %469 = vmatprep.subr.mxu0 0.0
    %470 = vmatpush2.msra.mxu0 0.0
    %471 = vmatprep.mubr.f32.mxu0 0.0
    %472 = vmatmul.mubr.f32.gmra.mxu0 %v405
    %v473 = vpop.f32.mrf.mxu0
    %v474 = vadd.f32 %v399, %v473
    %v475 = vpop.f32.mrf.mxu0
    %476 = vdwg.mxu0
    %v478 = vlaneseq
    %v479 = vshrl.u32 %v478, 7
    %v480 = vsub.s32 0, %v479
    %v481 = vrot.slane %v139, %v480
    %v483 = vadd.f32 %v474, %v481
    %v484 = vxor.u32 %v483, 2147483648
    %v485 = vmul.f32 %v484, 1.442695
    %v486 = vpow.pop %v485
    %v487 = vadd.f32 %v486, 1.0
    %v488 = vrcp.pop %v487
    %v489 = vmul.f32 1.0, %v488
    %v490 = vtanh.pop %v483
    %v491 = vmul.f32 %v489, 0.0
    %493 = vrot.lane.b32.xlu0 %v490, 64
    %v494 = vpop.permute.xlu0 %493
    %v496 = vmul.f32 %v489, %v494
    %498 = vrot.lane.b32.xlu0 %v496, 32
    %v499 = vpop.permute.xlu0 %498
    %v501 = vadd.f32 %v491, %v499
    %v502 = vtanh.pop %v501
    %504 = vrot.lane.b32.xlu0 %v502, 64
    %v505 = vpop.permute.xlu0 %504
    %v507 = vmul.f32 %v489, %v505
    %508 = vmatprep.subr.mxu0 0.0
    %509 = vmatpush1.msra.mxu0 0.0
    %510 = vmatprep.subr.mxu0 0.0
    %511 = vmatpush1.msra.mxu0 0.0
    %512 = vmatprep.subr.mxu0 0.0
    %513 = vmatpush1.msra.mxu0 0.0
    %514 = vmatprep.subr.mxu0 0.0
    %515 = vmatpush1.msra.mxu0 0.0
    %516 = vmatprep.subr.mxu0 0.0
    %517 = vmatpush1.msra.mxu0 0.0
    %518 = vmatprep.subr.mxu0 0.0
    %519 = vmatpush1.msra.mxu0 0.0
    %520 = vmatprep.subr.mxu0 0.0
    %521 = vmatpush1.msra.mxu0 0.0
    %522 = vmatprep.subr.mxu0 0.0
    %523 = vmatpush1.msra.mxu0 0.0
    %524 = vmatprep.subr.mxu0 0.0
    %525 = vmatpush1.msra.mxu0 0.0
    %526 = vmatprep.subr.mxu0 0.0
    %527 = vmatpush1.msra.mxu0 0.0
    %528 = vmatprep.subr.mxu0 0.0
    %529 = vmatpush1.msra.mxu0 0.0
    %530 = vmatprep.subr.mxu0 0.0
    %531 = vmatpush1.msra.mxu0 0.0
    %532 = vmatprep.subr.mxu0 0.0
    %533 = vmatpush1.msra.mxu0 %v130
    %534 = vmatprep.subr.mxu0 0.0
    %535 = vmatpush1.msra.mxu0 %v129
    %536 = vmatprep.subr.mxu0 0.0
    %537 = vmatpush1.msra.mxu0 %v128
    %538 = vmatprep.subr.mxu0 0.0
    %539 = vmatpush1.msra.mxu0 %v127
    %540 = vmatprep.subr.mxu0 0.0
    %541 = vmatpush2.msra.mxu0 0.0
    %542 = vmatprep.subr.mxu0 0.0
    %543 = vmatpush2.msra.mxu0 0.0
    %544 = vmatprep.subr.mxu0 0.0
    %545 = vmatpush2.msra.mxu0 0.0
    %546 = vmatprep.subr.mxu0 0.0
    %547 = vmatpush2.msra.mxu0 0.0
    %548 = vmatprep.subr.mxu0 0.0
    %549 = vmatpush2.msra.mxu0 0.0
    %550 = vmatprep.subr.mxu0 0.0
    %551 = vmatpush2.msra.mxu0 0.0
    %552 = vmatprep.subr.mxu0 0.0
    %553 = vmatpush2.msra.mxu0 0.0
    %554 = vmatprep.subr.mxu0 0.0
    %555 = vmatpush2.msra.mxu0 0.0
    %556 = vmatprep.subr.mxu0 0.0
    %557 = vmatpush2.msra.mxu0 0.0
    %558 = vmatprep.subr.mxu0 0.0
    %559 = vmatpush2.msra.mxu0 0.0
    %560 = vmatprep.subr.mxu0 0.0
    %561 = vmatpush2.msra.mxu0 0.0
    %562 = vmatprep.subr.mxu0 0.0
    %563 = vmatpush2.msra.mxu0 0.0
    %564 = vmatprep.subr.mxu0 0.0
    %565 = vmatpush2.msra.mxu0 0.0
    %566 = vmatprep.subr.mxu0 0.0
    %567 = vmatpush2.msra.mxu0 0.0
    %568 = vmatprep.subr.mxu0 0.0
    %569 = vmatpush2.msra.mxu0 0.0
    %570 = vmatprep.subr.mxu0 0.0
    %571 = vmatpush2.msra.mxu0 0.0
    %572 = vmatprep.mubr.f32.mxu0 0.0
    %573 = vmatmul.mubr.f32.gmra.mxu0 %v405
    %v574 = vpop.f32.mrf.mxu0
    %v575 = vadd.f32 0.0, %v574
    %v576 = vpop.f32.mrf.mxu0
    %577 = vdwg.mxu0
    %v579 = vrot.slane %v575, 6
    %v581 = vadd.f32 %v225, %v579
    %v582 = vxor.u32 %v581, 2147483648
    %v583 = vmul.f32 %v582, 1.442695
    %v584 = vpow.pop %v583
    %v585 = vadd.f32 %v584, 1.0
    %v586 = vrcp.pop %v585
    %v587 = vmul.f32 1.0, %v586
    %v588 = vtanh.pop %v581
    %v590 = vrot.slane %v325, 6
    %v592 = vmul.f32 %v587, %v590
    %594 = vrot.lane.b32.xlu0 %v588, 64
    %v595 = vpop.permute.xlu0 %594
    %v597 = vmul.f32 %v587, %v595
    %599 = vrot.lane.b32.xlu0 %v597, 32
    %v600 = vpop.permute.xlu0 %599
    %v602 = vadd.f32 %v592, %v600
    %v603 = vtanh.pop %v602
    %605 = vrot.lane.b32.xlu0 %v603, 64
    %v606 = vpop.permute.xlu0 %605
    %v608 = vmul.f32 %v587, %v606
    %610 = vrot.lane.b32.xlu0 %v507, 32
    %v611 = vpop.permute.xlu0 %610
    %v612 = vsel %vm233, %v611, 0
    %614 = vmatprep.subr.mxu0 0.0
    %615 = vmatpush1.msra.mxu0 0.0
    %616 = vmatprep.subr.mxu0 0.0
    %617 = vmatpush1.msra.mxu0 0.0
    %618 = vmatprep.subr.mxu0 0.0
    %619 = vmatpush1.msra.mxu0 0.0
    %620 = vmatprep.subr.mxu0 0.0
    %621 = vmatpush1.msra.mxu0 0.0
    %622 = vmatprep.subr.mxu0 0.0
    %623 = vmatpush1.msra.mxu0 0.0
    %624 = vmatprep.subr.mxu0 0.0
    %625 = vmatpush1.msra.mxu0 0.0
    %626 = vmatprep.subr.mxu0 0.0
    %627 = vmatpush1.msra.mxu0 0.0
    %628 = vmatprep.subr.mxu0 0.0
    %629 = vmatpush1.msra.mxu0 0.0
    %630 = vmatprep.subr.mxu0 0.0
    %631 = vmatpush1.msra.mxu0 0.0
    %632 = vmatprep.subr.mxu0 0.0
    %633 = vmatpush1.msra.mxu0 0.0
    %634 = vmatprep.subr.mxu0 0.0
    %635 = vmatpush1.msra.mxu0 0.0
    %636 = vmatprep.subr.mxu0 0.0
    %637 = vmatpush1.msra.mxu0 0.0
    %638 = vmatprep.subr.mxu0 0.0
    %639 = vmatpush1.msra.mxu0 %v138
    %640 = vmatprep.subr.mxu0 0.0
    %641 = vmatpush1.msra.mxu0 %v137
    %642 = vmatprep.subr.mxu0 0.0
    %643 = vmatpush1.msra.mxu0 %v136
    %644 = vmatprep.subr.mxu0 0.0
    %645 = vmatpush1.msra.mxu0 %v135
    %646 = vmatprep.subr.mxu0 0.0
    %647 = vmatpush2.msra.mxu0 0.0
    %648 = vmatprep.subr.mxu0 0.0
    %649 = vmatpush2.msra.mxu0 0.0
    %650 = vmatprep.subr.mxu0 0.0
    %651 = vmatpush2.msra.mxu0 0.0
    %652 = vmatprep.subr.mxu0 0.0
    %653 = vmatpush2.msra.mxu0 0.0
    %654 = vmatprep.subr.mxu0 0.0
    %655 = vmatpush2.msra.mxu0 0.0
    %656 = vmatprep.subr.mxu0 0.0
    %657 = vmatpush2.msra.mxu0 0.0
    %658 = vmatprep.subr.mxu0 0.0
    %659 = vmatpush2.msra.mxu0 0.0
    %660 = vmatprep.subr.mxu0 0.0
    %661 = vmatpush2.msra.mxu0 0.0
    %662 = vmatprep.subr.mxu0 0.0
    %663 = vmatpush2.msra.mxu0 0.0
    %664 = vmatprep.subr.mxu0 0.0
    %665 = vmatpush2.msra.mxu0 0.0
    %666 = vmatprep.subr.mxu0 0.0
    %667 = vmatpush2.msra.mxu0 0.0
    %668 = vmatprep.subr.mxu0 0.0
    %669 = vmatpush2.msra.mxu0 0.0
    %670 = vmatprep.subr.mxu0 0.0
    %671 = vmatpush2.msra.mxu0 0.0
    %672 = vmatprep.subr.mxu0 0.0
    %673 = vmatpush2.msra.mxu0 0.0
    %674 = vmatprep.subr.mxu0 0.0
    %675 = vmatpush2.msra.mxu0 0.0
    %676 = vmatprep.subr.mxu0 0.0
    %677 = vmatpush2.msra.mxu0 0.0
    %678 = vmatprep.mubr.f32.mxu0 0.0
    %679 = vmatmul.mubr.f32.gmra.mxu0 %v612
    %v680 = vpop.f32.mrf.mxu0
    %v681 = vadd.f32 0.0, %v680
    %v682 = vpop.f32.mrf.mxu0
    %683 = vdwg.mxu0
    %v685 = vrot.slane %v608, 2
    %686 = vrot.lane.b32.xlu0 %v685, 32
    %v687 = vpop.permute.xlu0 %686
    %v688 = vsel %vm233, %v687, 0
    %690 = vmatprep.subr.mxu0 0.0
    %691 = vmatpush1.msra.mxu0 0.0
    %692 = vmatprep.subr.mxu0 0.0
    %693 = vmatpush1.msra.mxu0 0.0
    %694 = vmatprep.subr.mxu0 0.0
    %695 = vmatpush1.msra.mxu0 0.0
    %696 = vmatprep.subr.mxu0 0.0
    %697 = vmatpush1.msra.mxu0 0.0
    %698 = vmatprep.subr.mxu0 0.0
    %699 = vmatpush1.msra.mxu0 0.0
    %700 = vmatprep.subr.mxu0 0.0
    %701 = vmatpush1.msra.mxu0 0.0
    %702 = vmatprep.subr.mxu0 0.0
    %703 = vmatpush1.msra.mxu0 0.0
    %704 = vmatprep.subr.mxu0 0.0
    %705 = vmatpush1.msra.mxu0 0.0
    %706 = vmatprep.subr.mxu0 0.0
    %707 = vmatpush1.msra.mxu0 0.0
    %708 = vmatprep.subr.mxu0 0.0
    %709 = vmatpush1.msra.mxu0 0.0
    %710 = vmatprep.subr.mxu0 0.0
    %711 = vmatpush1.msra.mxu0 0.0
    %712 = vmatprep.subr.mxu0 0.0
    %713 = vmatpush1.msra.mxu0 0.0
    %714 = vmatprep.subr.mxu0 0.0
    %715 = vmatpush1.msra.mxu0 %v134
    %716 = vmatprep.subr.mxu0 0.0
    %717 = vmatpush1.msra.mxu0 %v133
    %718 = vmatprep.subr.mxu0 0.0
    %719 = vmatpush1.msra.mxu0 %v132
    %720 = vmatprep.subr.mxu0 0.0
    %721 = vmatpush1.msra.mxu0 %v131
    %722 = vmatprep.subr.mxu0 0.0
    %723 = vmatpush2.msra.mxu0 0.0
    %724 = vmatprep.subr.mxu0 0.0
    %725 = vmatpush2.msra.mxu0 0.0
    %726 = vmatprep.subr.mxu0 0.0
    %727 = vmatpush2.msra.mxu0 0.0
    %728 = vmatprep.subr.mxu0 0.0
    %729 = vmatpush2.msra.mxu0 0.0
    %730 = vmatprep.subr.mxu0 0.0
    %731 = vmatpush2.msra.mxu0 0.0
    %732 = vmatprep.subr.mxu0 0.0
    %733 = vmatpush2.msra.mxu0 0.0
    %734 = vmatprep.subr.mxu0 0.0
    %735 = vmatpush2.msra.mxu0 0.0
    %736 = vmatprep.subr.mxu0 0.0
    %737 = vmatpush2.msra.mxu0 0.0
    %738 = vmatprep.subr.mxu0 0.0
    %739 = vmatpush2.msra.mxu0 0.0
    %740 = vmatprep.subr.mxu0 0.0
    %741 = vmatpush2.msra.mxu0 0.0
    %742 = vmatprep.subr.mxu0 0.0
    %743 = vmatpush2.msra.mxu0 0.0
    %744 = vmatprep.subr.mxu0 0.0
    %745 = vmatpush2.msra.mxu0 0.0
    %746 = vmatprep.subr.mxu0 0.0
    %747 = vmatpush2.msra.mxu0 0.0
    %748 = vmatprep.subr.mxu0 0.0
    %749 = vmatpush2.msra.mxu0 0.0
    %750 = vmatprep.subr.mxu0 0.0
    %751 = vmatpush2.msra.mxu0 0.0
    %752 = vmatprep.subr.mxu0 0.0
    %753 = vmatpush2.msra.mxu0 0.0
    %754 = vmatprep.mubr.f32.mxu0 0.0
    %755 = vmatmul.mubr.f32.gmra.mxu0 %v688
    %v756 = vpop.f32.mrf.mxu0
    %v757 = vadd.f32 %v681, %v756
    %v758 = vpop.f32.mrf.mxu0
    %759 = vdwg.mxu0
    %v760 = vadd.f32 %v757, %v481
    %v761 = vxor.u32 %v760, 2147483648
    %v762 = vmul.f32 %v761, 1.442695
    %v763 = vpow.pop %v762
    %v764 = vadd.f32 %v763, 1.0
    %v765 = vrcp.pop %v764
    %v766 = vmul.f32 1.0, %v765
    %v767 = vtanh.pop %v760
    %v768 = vmul.f32 %v766, %v501
    %770 = vrot.lane.b32.xlu0 %v767, 64
    %v771 = vpop.permute.xlu0 %770
    %v773 = vmul.f32 %v766, %v771
    %775 = vrot.lane.b32.xlu0 %v773, 32
    %v776 = vpop.permute.xlu0 %775
    %v778 = vadd.f32 %v768, %v776
    %v779 = vtanh.pop %v778
    %781 = vrot.lane.b32.xlu0 %v779, 64
    %v782 = vpop.permute.xlu0 %781
    %v784 = vmul.f32 %v766, %v782
    %785 = vmatprep.subr.mxu0 0.0
    %786 = vmatpush1.msra.mxu0 0.0
    %787 = vmatprep.subr.mxu0 0.0
    %788 = vmatpush1.msra.mxu0 0.0
    %789 = vmatprep.subr.mxu0 0.0
    %790 = vmatpush1.msra.mxu0 0.0
    %791 = vmatprep.subr.mxu0 0.0
    %792 = vmatpush1.msra.mxu0 0.0
    %793 = vmatprep.subr.mxu0 0.0
    %794 = vmatpush1.msra.mxu0 0.0
    %795 = vmatprep.subr.mxu0 0.0
    %796 = vmatpush1.msra.mxu0 0.0
    %797 = vmatprep.subr.mxu0 0.0
    %798 = vmatpush1.msra.mxu0 0.0
    %799 = vmatprep.subr.mxu0 0.0
    %800 = vmatpush1.msra.mxu0 0.0
    %801 = vmatprep.subr.mxu0 0.0
    %802 = vmatpush1.msra.mxu0 0.0
    %803 = vmatprep.subr.mxu0 0.0
    %804 = vmatpush1.msra.mxu0 0.0
    %805 = vmatprep.subr.mxu0 0.0
    %806 = vmatpush1.msra.mxu0 0.0
    %807 = vmatprep.subr.mxu0 0.0
    %808 = vmatpush1.msra.mxu0 0.0
    %809 = vmatprep.subr.mxu0 0.0
    %810 = vmatpush1.msra.mxu0 %v130
    %811 = vmatprep.subr.mxu0 0.0
    %812 = vmatpush1.msra.mxu0 %v129
    %813 = vmatprep.subr.mxu0 0.0
    %814 = vmatpush1.msra.mxu0 %v128
    %815 = vmatprep.subr.mxu0 0.0
    %816 = vmatpush1.msra.mxu0 %v127
    %817 = vmatprep.subr.mxu0 0.0
    %818 = vmatpush2.msra.mxu0 0.0
    %819 = vmatprep.subr.mxu0 0.0
    %820 = vmatpush2.msra.mxu0 0.0
    %821 = vmatprep.subr.mxu0 0.0
    %822 = vmatpush2.msra.mxu0 0.0
    %823 = vmatprep.subr.mxu0 0.0
    %824 = vmatpush2.msra.mxu0 0.0
    %825 = vmatprep.subr.mxu0 0.0
    %826 = vmatpush2.msra.mxu0 0.0
    %827 = vmatprep.subr.mxu0 0.0
    %828 = vmatpush2.msra.mxu0 0.0
    %829 = vmatprep.subr.mxu0 0.0
    %830 = vmatpush2.msra.mxu0 0.0
    %831 = vmatprep.subr.mxu0 0.0
    %832 = vmatpush2.msra.mxu0 0.0
    %833 = vmatprep.subr.mxu0 0.0
    %834 = vmatpush2.msra.mxu0 0.0
    %835 = vmatprep.subr.mxu0 0.0
    %836 = vmatpush2.msra.mxu0 0.0
    %837 = vmatprep.subr.mxu0 0.0
    %838 = vmatpush2.msra.mxu0 0.0
    %839 = vmatprep.subr.mxu0 0.0
    %840 = vmatpush2.msra.mxu0 0.0
    %841 = vmatprep.subr.mxu0 0.0
    %842 = vmatpush2.msra.mxu0 0.0
    %843 = vmatprep.subr.mxu0 0.0
    %844 = vmatpush2.msra.mxu0 0.0
    %845 = vmatprep.subr.mxu0 0.0
    %846 = vmatpush2.msra.mxu0 0.0
    %847 = vmatprep.subr.mxu0 0.0
    %848 = vmatpush2.msra.mxu0 0.0
    %849 = vmatprep.mubr.f32.mxu0 0.0
    %850 = vmatmul.mubr.f32.gmra.mxu0 %v688
    %v851 = vpop.f32.mrf.mxu0
    %v852 = vadd.f32 0.0, %v851
    %v853 = vpop.f32.mrf.mxu0
    %854 = vdwg.mxu0
    %v856 = vrot.slane %v852, 4
    %v858 = vadd.f32 %v225, %v856
    %v859 = vxor.u32 %v858, 2147483648
    %v860 = vmul.f32 %v859, 1.442695
    %v861 = vpow.pop %v860
    %v862 = vadd.f32 %v861, 1.0
    %v863 = vrcp.pop %v862
    %v864 = vmul.f32 1.0, %v863
    %v865 = vtanh.pop %v858
    %v867 = vrot.slane %v602, 6
    %v869 = vmul.f32 %v864, %v867
    %871 = vrot.lane.b32.xlu0 %v865, 64
    %v872 = vpop.permute.xlu0 %871
    %v874 = vmul.f32 %v864, %v872
    %876 = vrot.lane.b32.xlu0 %v874, 32
    %v877 = vpop.permute.xlu0 %876
    %v879 = vadd.f32 %v869, %v877
    %v880 = vtanh.pop %v879
    %882 = vrot.lane.b32.xlu0 %v880, 64
    %v883 = vpop.permute.xlu0 %882
    %v885 = vmul.f32 %v864, %v883
    %887 = vrot.lane.b32.xlu0 %v784, 32
    %v888 = vpop.permute.xlu0 %887
    %v889 = vsel %vm233, %v888, 0
    %891 = vmatprep.subr.mxu0 0.0
    %892 = vmatpush1.msra.mxu0 0.0
    %893 = vmatprep.subr.mxu0 0.0
    %894 = vmatpush1.msra.mxu0 0.0
    %895 = vmatprep.subr.mxu0 0.0
    %896 = vmatpush1.msra.mxu0 0.0
    %897 = vmatprep.subr.mxu0 0.0
    %898 = vmatpush1.msra.mxu0 0.0
    %899 = vmatprep.subr.mxu0 0.0
    %900 = vmatpush1.msra.mxu0 0.0
    %901 = vmatprep.subr.mxu0 0.0
    %902 = vmatpush1.msra.mxu0 0.0
    %903 = vmatprep.subr.mxu0 0.0
    %904 = vmatpush1.msra.mxu0 0.0
    %905 = vmatprep.subr.mxu0 0.0
    %906 = vmatpush1.msra.mxu0 0.0
    %907 = vmatprep.subr.mxu0 0.0
    %908 = vmatpush1.msra.mxu0 0.0
    %909 = vmatprep.subr.mxu0 0.0
    %910 = vmatpush1.msra.mxu0 0.0
    %911 = vmatprep.subr.mxu0 0.0
    %912 = vmatpush1.msra.mxu0 0.0
    %913 = vmatprep.subr.mxu0 0.0
    %914 = vmatpush1.msra.mxu0 0.0
    %915 = vmatprep.subr.mxu0 0.0
    %916 = vmatpush1.msra.mxu0 %v138
    %917 = vmatprep.subr.mxu0 0.0
    %918 = vmatpush1.msra.mxu0 %v137
    %919 = vmatprep.subr.mxu0 0.0
    %920 = vmatpush1.msra.mxu0 %v136
    %921 = vmatprep.subr.mxu0 0.0
    %922 = vmatpush1.msra.mxu0 %v135
    %923 = vmatprep.subr.mxu0 0.0
    %924 = vmatpush2.msra.mxu0 0.0
    %925 = vmatprep.subr.mxu0 0.0
    %926 = vmatpush2.msra.mxu0 0.0
    %927 = vmatprep.subr.mxu0 0.0
    %928 = vmatpush2.msra.mxu0 0.0
    %929 = vmatprep.subr.mxu0 0.0
    %930 = vmatpush2.msra.mxu0 0.0
    %931 = vmatprep.subr.mxu0 0.0
    %932 = vmatpush2.msra.mxu0 0.0
    %933 = vmatprep.subr.mxu0 0.0
    %934 = vmatpush2.msra.mxu0 0.0
    %935 = vmatprep.subr.mxu0 0.0
    %936 = vmatpush2.msra.mxu0 0.0
    %937 = vmatprep.subr.mxu0 0.0
    %938 = vmatpush2.msra.mxu0 0.0
    %939 = vmatprep.subr.mxu0 0.0
    %940 = vmatpush2.msra.mxu0 0.0
    %941 = vmatprep.subr.mxu0 0.0
    %942 = vmatpush2.msra.mxu0 0.0
    %943 = vmatprep.subr.mxu0 0.0
    %944 = vmatpush2.msra.mxu0 0.0
    %945 = vmatprep.subr.mxu0 0.0
    %946 = vmatpush2.msra.mxu0 0.0
    %947 = vmatprep.subr.mxu0 0.0
    %948 = vmatpush2.msra.mxu0 0.0
    %949 = vmatprep.subr.mxu0 0.0
    %950 = vmatpush2.msra.mxu0 0.0
    %951 = vmatprep.subr.mxu0 0.0
    %952 = vmatpush2.msra.mxu0 0.0
    %953 = vmatprep.subr.mxu0 0.0
    %954 = vmatpush2.msra.mxu0 0.0
    %955 = vmatprep.mubr.f32.mxu0 0.0
    %956 = vmatmul.mubr.f32.gmra.mxu0 %v889
    %v957 = vpop.f32.mrf.mxu0
    %v958 = vadd.f32 0.0, %v957
    %v959 = vpop.f32.mrf.mxu0
    %960 = vdwg.mxu0
    %v962 = vrot.slane %v885, 4
    %963 = vrot.lane.b32.xlu0 %v962, 32
    %v964 = vpop.permute.xlu0 %963
    %v965 = vsel %vm233, %v964, 0
    %967 = vmatprep.subr.mxu0 0.0
    %968 = vmatpush1.msra.mxu0 0.0
    %969 = vmatprep.subr.mxu0 0.0
    %970 = vmatpush1.msra.mxu0 0.0
    %971 = vmatprep.subr.mxu0 0.0
    %972 = vmatpush1.msra.mxu0 0.0
    %973 = vmatprep.subr.mxu0 0.0
    %974 = vmatpush1.msra.mxu0 0.0
    %975 = vmatprep.subr.mxu0 0.0
    %976 = vmatpush1.msra.mxu0 0.0
    %977 = vmatprep.subr.mxu0 0.0
    %978 = vmatpush1.msra.mxu0 0.0
    %979 = vmatprep.subr.mxu0 0.0
    %980 = vmatpush1.msra.mxu0 0.0
    %981 = vmatprep.subr.mxu0 0.0
    %982 = vmatpush1.msra.mxu0 0.0
    %983 = vmatprep.subr.mxu0 0.0
    %984 = vmatpush1.msra.mxu0 0.0
    %985 = vmatprep.subr.mxu0 0.0
    %986 = vmatpush1.msra.mxu0 0.0
    %987 = vmatprep.subr.mxu0 0.0
    %988 = vmatpush1.msra.mxu0 0.0
    %989 = vmatprep.subr.mxu0 0.0
    %990 = vmatpush1.msra.mxu0 0.0
    %991 = vmatprep.subr.mxu0 0.0
    %992 = vmatpush1.msra.mxu0 %v134
    %993 = vmatprep.subr.mxu0 0.0
    %994 = vmatpush1.msra.mxu0 %v133
    %995 = vmatprep.subr.mxu0 0.0
    %996 = vmatpush1.msra.mxu0 %v132
    %997 = vmatprep.subr.mxu0 0.0
    %998 = vmatpush1.msra.mxu0 %v131
    %999 = vmatprep.subr.mxu0 0.0
    %1000 = vmatpush2.msra.mxu0 0.0
    %1001 = vmatprep.subr.mxu0 0.0
    %1002 = vmatpush2.msra.mxu0 0.0
    %1003 = vmatprep.subr.mxu0 0.0
    %1004 = vmatpush2.msra.mxu0 0.0
    %1005 = vmatprep.subr.mxu0 0.0
    %1006 = vmatpush2.msra.mxu0 0.0
    %1007 = vmatprep.subr.mxu0 0.0
    %1008 = vmatpush2.msra.mxu0 0.0
    %1009 = vmatprep.subr.mxu0 0.0
    %1010 = vmatpush2.msra.mxu0 0.0
    %1011 = vmatprep.subr.mxu0 0.0
    %1012 = vmatpush2.msra.mxu0 0.0
    %1013 = vmatprep.subr.mxu0 0.0
    %1014 = vmatpush2.msra.mxu0 0.0
    %1015 = vmatprep.subr.mxu0 0.0
    %1016 = vmatpush2.msra.mxu0 0.0
    %1017 = vmatprep.subr.mxu0 0.0
    %1018 = vmatpush2.msra.mxu0 0.0
    %1019 = vmatprep.subr.mxu0 0.0
    %1020 = vmatpush2.msra.mxu0 0.0
    %1021 = vmatprep.subr.mxu0 0.0
    %1022 = vmatpush2.msra.mxu0 0.0
    %1023 = vmatprep.subr.mxu0 0.0
    %1024 = vmatpush2.msra.mxu0 0.0
    %1025 = vmatprep.subr.mxu0 0.0
    %1026 = vmatpush2.msra.mxu0 0.0
    %1027 = vmatprep.subr.mxu0 0.0
    %1028 = vmatpush2.msra.mxu0 0.0
    %1029 = vmatprep.subr.mxu0 0.0
    %1030 = vmatpush2.msra.mxu0 0.0
    %1031 = vmatprep.mubr.f32.mxu0 0.0
    %1032 = vmatmul.mubr.f32.gmra.mxu0 %v965
    %v1033 = vpop.f32.mrf.mxu0
    %v1034 = vadd.f32 %v958, %v1033
    %v1035 = vpop.f32.mrf.mxu0
    %1036 = vdwg.mxu0
    %v1037 = vadd.f32 %v1034, %v481
    %v1038 = vxor.u32 %v1037, 2147483648
    %v1039 = vmul.f32 %v1038, 1.442695
    %v1040 = vpow.pop %v1039
    %v1041 = vadd.f32 %v1040, 1.0
    %v1042 = vrcp.pop %v1041
    %v1043 = vmul.f32 1.0, %v1042
    %v1044 = vtanh.pop %v1037
    %v1045 = vmul.f32 %v1043, %v778
    %1047 = vrot.lane.b32.xlu0 %v1044, 64
    %v1048 = vpop.permute.xlu0 %1047
    %v1050 = vmul.f32 %v1043, %v1048
    %1052 = vrot.lane.b32.xlu0 %v1050, 32
    %v1053 = vpop.permute.xlu0 %1052
    %v1055 = vadd.f32 %v1045, %v1053
    %v1056 = vtanh.pop %v1055
    %1058 = vrot.lane.b32.xlu0 %v1056, 64
    %v1059 = vpop.permute.xlu0 %1058
    %v1061 = vmul.f32 %v1043, %v1059
    %1062 = vmatprep.subr.mxu0 0.0
    %1063 = vmatpush1.msra.mxu0 0.0
    %1064 = vmatprep.subr.mxu0 0.0
    %1065 = vmatpush1.msra.mxu0 0.0
    %1066 = vmatprep.subr.mxu0 0.0
    %1067 = vmatpush1.msra.mxu0 0.0
    %1068 = vmatprep.subr.mxu0 0.0
    %1069 = vmatpush1.msra.mxu0 0.0
    %1070 = vmatprep.subr.mxu0 0.0
    %1071 = vmatpush1.msra.mxu0 0.0
    %1072 = vmatprep.subr.mxu0 0.0
    %1073 = vmatpush1.msra.mxu0 0.0
    %1074 = vmatprep.subr.mxu0 0.0
    %1075 = vmatpush1.msra.mxu0 0.0
    %1076 = vmatprep.subr.mxu0 0.0
    %1077 = vmatpush1.msra.mxu0 0.0
    %1078 = vmatprep.subr.mxu0 0.0
    %1079 = vmatpush1.msra.mxu0 0.0
    %1080 = vmatprep.subr.mxu0 0.0
    %1081 = vmatpush1.msra.mxu0 0.0
    %1082 = vmatprep.subr.mxu0 0.0
    %1083 = vmatpush1.msra.mxu0 0.0
    %1084 = vmatprep.subr.mxu0 0.0
    %1085 = vmatpush1.msra.mxu0 0.0
    %1086 = vmatprep.subr.mxu0 0.0
    %1087 = vmatpush1.msra.mxu0 %v130
    %1088 = vmatprep.subr.mxu0 0.0
    %1089 = vmatpush1.msra.mxu0 %v129
    %1090 = vmatprep.subr.mxu0 0.0
    %1091 = vmatpush1.msra.mxu0 %v128
    %1092 = vmatprep.subr.mxu0 0.0
    %1093 = vmatpush1.msra.mxu0 %v127
    %1094 = vmatprep.subr.mxu0 0.0
    %1095 = vmatpush2.msra.mxu0 0.0
    %1096 = vmatprep.subr.mxu0 0.0
    %1097 = vmatpush2.msra.mxu0 0.0
    %1098 = vmatprep.subr.mxu0 0.0
    %1099 = vmatpush2.msra.mxu0 0.0
    %1100 = vmatprep.subr.mxu0 0.0
    %1101 = vmatpush2.msra.mxu0 0.0
    %1102 = vmatprep.subr.mxu0 0.0
    %1103 = vmatpush2.msra.mxu0 0.0
    %1104 = vmatprep.subr.mxu0 0.0
    %1105 = vmatpush2.msra.mxu0 0.0
    %1106 = vmatprep.subr.mxu0 0.0
    %1107 = vmatpush2.msra.mxu0 0.0
    %1108 = vmatprep.subr.mxu0 0.0
    %1109 = vmatpush2.msra.mxu0 0.0
    %1110 = vmatprep.subr.mxu0 0.0
    %1111 = vmatpush2.msra.mxu0 0.0
    %1112 = vmatprep.subr.mxu0 0.0
    %1113 = vmatpush2.msra.mxu0 0.0
    %1114 = vmatprep.subr.mxu0 0.0
    %1115 = vmatpush2.msra.mxu0 0.0
    %1116 = vmatprep.subr.mxu0 0.0
    %1117 = vmatpush2.msra.mxu0 0.0
    %1118 = vmatprep.subr.mxu0 0.0
    %1119 = vmatpush2.msra.mxu0 0.0
    %1120 = vmatprep.subr.mxu0 0.0
    %1121 = vmatpush2.msra.mxu0 0.0
    %1122 = vmatprep.subr.mxu0 0.0
    %1123 = vmatpush2.msra.mxu0 0.0
    %1124 = vmatprep.subr.mxu0 0.0
    %1125 = vmatpush2.msra.mxu0 0.0
    %1126 = vmatprep.mubr.f32.mxu0 0.0
    %1127 = vmatmul.mubr.f32.gmra.mxu0 %v965
    %v1128 = vpop.f32.mrf.mxu0
    %v1129 = vadd.f32 0.0, %v1128
    %v1130 = vpop.f32.mrf.mxu0
    %1131 = vdwg.mxu0
    %v1133 = vrot.slane %v1129, 2
    %v1135 = vadd.f32 %v225, %v1133
    %v1136 = vxor.u32 %v1135, 2147483648
    %v1137 = vmul.f32 %v1136, 1.442695
    %v1138 = vpow.pop %v1137
    %v1139 = vadd.f32 %v1138, 1.0
    %v1140 = vrcp.pop %v1139
    %v1141 = vmul.f32 1.0, %v1140
    %v1142 = vtanh.pop %v1135
    %v1144 = vrot.slane %v879, 6
    %v1146 = vmul.f32 %v1141, %v1144
    %1148 = vrot.lane.b32.xlu0 %v1142, 64
    %v1149 = vpop.permute.xlu0 %1148
    %v1151 = vmul.f32 %v1141, %v1149
    %1153 = vrot.lane.b32.xlu0 %v1151, 32
    %v1154 = vpop.permute.xlu0 %1153
    %v1156 = vadd.f32 %v1146, %v1154
    %v1157 = vtanh.pop %v1156
    %1159 = vrot.lane.b32.xlu0 %v1157, 64
    %v1160 = vpop.permute.xlu0 %1159
    %v1162 = vmul.f32 %v1141, %v1160
    %1164 = vrot.lane.b32.xlu0 %v1061, 32
    %v1165 = vpop.permute.xlu0 %1164
    %v1166 = vsel %vm233, %v1165, 0
    %1168 = vmatprep.subr.mxu0 0.0
    %1169 = vmatpush1.msra.mxu0 0.0
    %1170 = vmatprep.subr.mxu0 0.0
    %1171 = vmatpush1.msra.mxu0 0.0
    %1172 = vmatprep.subr.mxu0 0.0
    %1173 = vmatpush1.msra.mxu0 0.0
    %1174 = vmatprep.subr.mxu0 0.0
    %1175 = vmatpush1.msra.mxu0 0.0
    %1176 = vmatprep.subr.mxu0 0.0
    %1177 = vmatpush1.msra.mxu0 0.0
    %1178 = vmatprep.subr.mxu0 0.0
    %1179 = vmatpush1.msra.mxu0 0.0
    %1180 = vmatprep.subr.mxu0 0.0
    %1181 = vmatpush1.msra.mxu0 0.0
    %1182 = vmatprep.subr.mxu0 0.0
    %1183 = vmatpush1.msra.mxu0 0.0
    %1184 = vmatprep.subr.mxu0 0.0
    %1185 = vmatpush1.msra.mxu0 0.0
    %1186 = vmatprep.subr.mxu0 0.0
    %1187 = vmatpush1.msra.mxu0 0.0
    %1188 = vmatprep.subr.mxu0 0.0
    %1189 = vmatpush1.msra.mxu0 0.0
    %1190 = vmatprep.subr.mxu0 0.0
    %1191 = vmatpush1.msra.mxu0 0.0
    %1192 = vmatprep.subr.mxu0 0.0
    %1193 = vmatpush1.msra.mxu0 %v138
    %1194 = vmatprep.subr.mxu0 0.0
    %1195 = vmatpush1.msra.mxu0 %v137
    %1196 = vmatprep.subr.mxu0 0.0
    %1197 = vmatpush1.msra.mxu0 %v136
    %1198 = vmatprep.subr.mxu0 0.0
    %1199 = vmatpush1.msra.mxu0 %v135
    %1200 = vmatprep.subr.mxu0 0.0
    %1201 = vmatpush2.msra.mxu0 0.0
    %1202 = vmatprep.subr.mxu0 0.0
    %1203 = vmatpush2.msra.mxu0 0.0
    %1204 = vmatprep.subr.mxu0 0.0
    %1205 = vmatpush2.msra.mxu0 0.0
    %1206 = vmatprep.subr.mxu0 0.0
    %1207 = vmatpush2.msra.mxu0 0.0
    %1208 = vmatprep.subr.mxu0 0.0
    %1209 = vmatpush2.msra.mxu0 0.0
    %1210 = vmatprep.subr.mxu0 0.0
    %1211 = vmatpush2.msra.mxu0 0.0
    %1212 = vmatprep.subr.mxu0 0.0
    %1213 = vmatpush2.msra.mxu0 0.0
    %1214 = vmatprep.subr.mxu0 0.0
    %1215 = vmatpush2.msra.mxu0 0.0
    %1216 = vmatprep.subr.mxu0 0.0
    %1217 = vmatpush2.msra.mxu0 0.0
    %1218 = vmatprep.subr.mxu0 0.0
    %1219 = vmatpush2.msra.mxu0 0.0
    %1220 = vmatprep.subr.mxu0 0.0
    %1221 = vmatpush2.msra.mxu0 0.0
    %1222 = vmatprep.subr.mxu0 0.0
    %1223 = vmatpush2.msra.mxu0 0.0
    %1224 = vmatprep.subr.mxu0 0.0
    %1225 = vmatpush2.msra.mxu0 0.0
    %1226 = vmatprep.subr.mxu0 0.0
    %1227 = vmatpush2.msra.mxu0 0.0
    %1228 = vmatprep.subr.mxu0 0.0
    %1229 = vmatpush2.msra.mxu0 0.0
    %1230 = vmatprep.subr.mxu0 0.0
    %1231 = vmatpush2.msra.mxu0 0.0
    %1232 = vmatprep.mubr.f32.mxu0 0.0
    %1233 = vmatmul.mubr.f32.gmra.mxu0 %v1166
    %v1234 = vpop.f32.mrf.mxu0
    %v1235 = vadd.f32 0.0, %v1234
    %v1236 = vpop.f32.mrf.mxu0
    %1237 = vdwg.mxu0
    %v1239 = vrot.slane %v1162, 6
    %1240 = vrot.lane.b32.xlu0 %v1239, 32
    %v1241 = vpop.permute.xlu0 %1240
    %v1242 = vsel %vm233, %v1241, 0
    %1244 = vmatprep.subr.mxu0 0.0
    %1245 = vmatpush1.msra.mxu0 0.0
    %1246 = vmatprep.subr.mxu0 0.0
    %1247 = vmatpush1.msra.mxu0 0.0
    %1248 = vmatprep.subr.mxu0 0.0
    %1249 = vmatpush1.msra.mxu0 0.0
    %1250 = vmatprep.subr.mxu0 0.0
    %1251 = vmatpush1.msra.mxu0 0.0
    %1252 = vmatprep.subr.mxu0 0.0
    %1253 = vmatpush1.msra.mxu0 0.0
    %1254 = vmatprep.subr.mxu0 0.0
    %1255 = vmatpush1.msra.mxu0 0.0
    %1256 = vmatprep.subr.mxu0 0.0
    %1257 = vmatpush1.msra.mxu0 0.0
    %1258 = vmatprep.subr.mxu0 0.0
    %1259 = vmatpush1.msra.mxu0 0.0
    %1260 = vmatprep.subr.mxu0 0.0
    %1261 = vmatpush1.msra.mxu0 0.0
    %1262 = vmatprep.subr.mxu0 0.0
    %1263 = vmatpush1.msra.mxu0 0.0
    %1264 = vmatprep.subr.mxu0 0.0
    %1265 = vmatpush1.msra.mxu0 0.0
    %1266 = vmatprep.subr.mxu0 0.0
    %1267 = vmatpush1.msra.mxu0 0.0
    %1268 = vmatprep.subr.mxu0 0.0
    %1269 = vmatpush1.msra.mxu0 %v134
    %1270 = vmatprep.subr.mxu0 0.0
    %1271 = vmatpush1.msra.mxu0 %v133
    %1272 = vmatprep.subr.mxu0 0.0
    %1273 = vmatpush1.msra.mxu0 %v132
    %1274 = vmatprep.subr.mxu0 0.0
    %1275 = vmatpush1.msra.mxu0 %v131
    %1276 = vmatprep.subr.mxu0 0.0
    %1277 = vmatpush2.msra.mxu0 0.0
    %1278 = vmatprep.subr.mxu0 0.0
    %1279 = vmatpush2.msra.mxu0 0.0
    %1280 = vmatprep.subr.mxu0 0.0
    %1281 = vmatpush2.msra.mxu0 0.0
    %1282 = vmatprep.subr.mxu0 0.0
    %1283 = vmatpush2.msra.mxu0 0.0
    %1284 = vmatprep.subr.mxu0 0.0
    %1285 = vmatpush2.msra.mxu0 0.0
    %1286 = vmatprep.subr.mxu0 0.0
    %1287 = vmatpush2.msra.mxu0 0.0
    %1288 = vmatprep.subr.mxu0 0.0
    %1289 = vmatpush2.msra.mxu0 0.0
    %1290 = vmatprep.subr.mxu0 0.0
    %1291 = vmatpush2.msra.mxu0 0.0
    %1292 = vmatprep.subr.mxu0 0.0
    %1293 = vmatpush2.msra.mxu0 0.0
    %1294 = vmatprep.subr.mxu0 0.0
    %1295 = vmatpush2.msra.mxu0 0.0
    %1296 = vmatprep.subr.mxu0 0.0
    %1297 = vmatpush2.msra.mxu0 0.0
    %1298 = vmatprep.subr.mxu0 0.0
    %1299 = vmatpush2.msra.mxu0 0.0
    %1300 = vmatprep.subr.mxu0 0.0
    %1301 = vmatpush2.msra.mxu0 0.0
    %1302 = vmatprep.subr.mxu0 0.0
    %1303 = vmatpush2.msra.mxu0 0.0
    %1304 = vmatprep.subr.mxu0 0.0
    %1305 = vmatpush2.msra.mxu0 0.0
    %1306 = vmatprep.subr.mxu0 0.0
    %1307 = vmatpush2.msra.mxu0 0.0
    %1308 = vmatprep.mubr.f32.mxu0 0.0
    %1309 = vmatmul.mubr.f32.gmra.mxu0 %v1242
    %v1310 = vpop.f32.mrf.mxu0
    %v1311 = vadd.f32 %v1235, %v1310
    %v1312 = vpop.f32.mrf.mxu0
    %1313 = vdwg.mxu0
    %v1314 = vadd.f32 %v1311, %v481
    %v1315 = vxor.u32 %v1314, 2147483648
    %v1316 = vmul.f32 %v1315, 1.442695
    %v1317 = vpow.pop %v1316
    %v1318 = vadd.f32 %v1317, 1.0
    %v1319 = vrcp.pop %v1318
    %v1320 = vmul.f32 1.0, %v1319
    %v1321 = vtanh.pop %v1314
    %v1322 = vmul.f32 %v1320, %v1055
    %1324 = vrot.lane.b32.xlu0 %v1321, 64
    %v1325 = vpop.permute.xlu0 %1324
    %v1327 = vmul.f32 %v1320, %v1325
    %1329 = vrot.lane.b32.xlu0 %v1327, 32
    %v1330 = vpop.permute.xlu0 %1329
    %v1332 = vadd.f32 %v1322, %v1330
    %v1333 = vtanh.pop %v1332
    %1335 = vrot.lane.b32.xlu0 %v1333, 64
    %v1336 = vpop.permute.xlu0 %1335
    %v1338 = vmul.f32 %v1320, %v1336
    %1339 = vmatprep.subr.mxu0 0.0
    %1340 = vmatpush1.msra.mxu0 0.0
    %1341 = vmatprep.subr.mxu0 0.0
    %1342 = vmatpush1.msra.mxu0 0.0
    %1343 = vmatprep.subr.mxu0 0.0
    %1344 = vmatpush1.msra.mxu0 0.0
    %1345 = vmatprep.subr.mxu0 0.0
    %1346 = vmatpush1.msra.mxu0 0.0
    %1347 = vmatprep.subr.mxu0 0.0
    %1348 = vmatpush1.msra.mxu0 0.0
    %1349 = vmatprep.subr.mxu0 0.0
    %1350 = vmatpush1.msra.mxu0 0.0
    %1351 = vmatprep.subr.mxu0 0.0
    %1352 = vmatpush1.msra.mxu0 0.0
    %1353 = vmatprep.subr.mxu0 0.0
    %1354 = vmatpush1.msra.mxu0 0.0
    %1355 = vmatprep.subr.mxu0 0.0
    %1356 = vmatpush1.msra.mxu0 0.0
    %1357 = vmatprep.subr.mxu0 0.0
    %1358 = vmatpush1.msra.mxu0 0.0
    %1359 = vmatprep.subr.mxu0 0.0
    %1360 = vmatpush1.msra.mxu0 0.0
    %1361 = vmatprep.subr.mxu0 0.0
    %1362 = vmatpush1.msra.mxu0 0.0
    %1363 = vmatprep.subr.mxu0 0.0
    %1364 = vmatpush1.msra.mxu0 %v130
    %1365 = vmatprep.subr.mxu0 0.0
    %1366 = vmatpush1.msra.mxu0 %v129
    %1367 = vmatprep.subr.mxu0 0.0
    %1368 = vmatpush1.msra.mxu0 %v128
    %1369 = vmatprep.subr.mxu0 0.0
    %1370 = vmatpush1.msra.mxu0 %v127
    %1371 = vmatprep.subr.mxu0 0.0
    %1372 = vmatpush2.msra.mxu0 0.0
    %1373 = vmatprep.subr.mxu0 0.0
    %1374 = vmatpush2.msra.mxu0 0.0
    %1375 = vmatprep.subr.mxu0 0.0
    %1376 = vmatpush2.msra.mxu0 0.0
    %1377 = vmatprep.subr.mxu0 0.0
    %1378 = vmatpush2.msra.mxu0 0.0
    %1379 = vmatprep.subr.mxu0 0.0
    %1380 = vmatpush2.msra.mxu0 0.0
    %1381 = vmatprep.subr.mxu0 0.0
    %1382 = vmatpush2.msra.mxu0 0.0
    %1383 = vmatprep.subr.mxu0 0.0
    %1384 = vmatpush2.msra.mxu0 0.0
    %1385 = vmatprep.subr.mxu0 0.0
    %1386 = vmatpush2.msra.mxu0 0.0
    %1387 = vmatprep.subr.mxu0 0.0
    %1388 = vmatpush2.msra.mxu0 0.0
    %1389 = vmatprep.subr.mxu0 0.0
    %1390 = vmatpush2.msra.mxu0 0.0
    %1391 = vmatprep.subr.mxu0 0.0
    %1392 = vmatpush2.msra.mxu0 0.0
    %1393 = vmatprep.subr.mxu0 0.0
    %1394 = vmatpush2.msra.mxu0 0.0
    %1395 = vmatprep.subr.mxu0 0.0
    %1396 = vmatpush2.msra.mxu0 0.0
    %1397 = vmatprep.subr.mxu0 0.0
    %1398 = vmatpush2.msra.mxu0 0.0
    %1399 = vmatprep.subr.mxu0 0.0
    %1400 = vmatpush2.msra.mxu0 0.0
    %1401 = vmatprep.subr.mxu0 0.0
    %1402 = vmatpush2.msra.mxu0 0.0
    %1403 = vmatprep.mubr.f32.mxu0 0.0
    %1404 = vmatmul.mubr.f32.gmra.mxu0 %v1242
    %v1405 = vpop.f32.mrf.mxu0
    %v1406 = vadd.f32 0.0, %v1405
    %v1407 = vpop.f32.mrf.mxu0
    %1408 = vdwg.mxu0
    %v1409 = vadd.f32 %v230, %v1406
    %v1410 = vxor.u32 %v1409, 2147483648
    %v1411 = vmul.f32 %v1410, 1.442695
    %v1412 = vpow.pop %v1411
    %v1413 = vadd.f32 %v1412, 1.0
    %v1414 = vrcp.pop %v1413
    %v1415 = vmul.f32 1.0, %v1414
    %v1416 = vtanh.pop %v1409
    %v1418 = vrot.slane %v1156, 6
    %v1420 = vmul.f32 %v1415, %v1418
    %1422 = vrot.lane.b32.xlu0 %v1416, 64
    %v1423 = vpop.permute.xlu0 %1422
    %v1425 = vmul.f32 %v1415, %v1423
    %1427 = vrot.lane.b32.xlu0 %v1425, 32
    %v1428 = vpop.permute.xlu0 %1427
    %v1430 = vadd.f32 %v1420, %v1428
    %v1431 = vtanh.pop %v1430
    %1433 = vrot.lane.b32.xlu0 %v1431, 64
    %v1434 = vpop.permute.xlu0 %1433
    %v1436 = vmul.f32 %v1415, %v1434
    %1438 = vrot.lane.b32.xlu0 %v1338, 32
    %v1439 = vpop.permute.xlu0 %1438
    %v1440 = vsel %vm233, %v1439, 0
    %1442 = vmatprep.subr.mxu0 0.0
    %1443 = vmatpush1.msra.mxu0 0.0
    %1444 = vmatprep.subr.mxu0 0.0
    %1445 = vmatpush1.msra.mxu0 0.0
    %1446 = vmatprep.subr.mxu0 0.0
    %1447 = vmatpush1.msra.mxu0 0.0
    %1448 = vmatprep.subr.mxu0 0.0
    %1449 = vmatpush1.msra.mxu0 0.0
    %1450 = vmatprep.subr.mxu0 0.0
    %1451 = vmatpush1.msra.mxu0 0.0
    %1452 = vmatprep.subr.mxu0 0.0
    %1453 = vmatpush1.msra.mxu0 0.0
    %1454 = vmatprep.subr.mxu0 0.0
    %1455 = vmatpush1.msra.mxu0 0.0
    %1456 = vmatprep.subr.mxu0 0.0
    %1457 = vmatpush1.msra.mxu0 0.0
    %1458 = vmatprep.subr.mxu0 0.0
    %1459 = vmatpush1.msra.mxu0 0.0
    %1460 = vmatprep.subr.mxu0 0.0
    %1461 = vmatpush1.msra.mxu0 0.0
    %1462 = vmatprep.subr.mxu0 0.0
    %1463 = vmatpush1.msra.mxu0 0.0
    %1464 = vmatprep.subr.mxu0 0.0
    %1465 = vmatpush1.msra.mxu0 0.0
    %1466 = vmatprep.subr.mxu0 0.0
    %1467 = vmatpush1.msra.mxu0 %v138
    %1468 = vmatprep.subr.mxu0 0.0
    %1469 = vmatpush1.msra.mxu0 %v137
    %1470 = vmatprep.subr.mxu0 0.0
    %1471 = vmatpush1.msra.mxu0 %v136
    %1472 = vmatprep.subr.mxu0 0.0
    %1473 = vmatpush1.msra.mxu0 %v135
    %1474 = vmatprep.subr.mxu0 0.0
    %1475 = vmatpush2.msra.mxu0 0.0
    %1476 = vmatprep.subr.mxu0 0.0
    %1477 = vmatpush2.msra.mxu0 0.0
    %1478 = vmatprep.subr.mxu0 0.0
    %1479 = vmatpush2.msra.mxu0 0.0
    %1480 = vmatprep.subr.mxu0 0.0
    %1481 = vmatpush2.msra.mxu0 0.0
    %1482 = vmatprep.subr.mxu0 0.0
    %1483 = vmatpush2.msra.mxu0 0.0
    %1484 = vmatprep.subr.mxu0 0.0
    %1485 = vmatpush2.msra.mxu0 0.0
    %1486 = vmatprep.subr.mxu0 0.0
    %1487 = vmatpush2.msra.mxu0 0.0
    %1488 = vmatprep.subr.mxu0 0.0
    %1489 = vmatpush2.msra.mxu0 0.0
    %1490 = vmatprep.subr.mxu0 0.0
    %1491 = vmatpush2.msra.mxu0 0.0
    %1492 = vmatprep.subr.mxu0 0.0
    %1493 = vmatpush2.msra.mxu0 0.0
    %1494 = vmatprep.subr.mxu0 0.0
    %1495 = vmatpush2.msra.mxu0 0.0
    %1496 = vmatprep.subr.mxu0 0.0
    %1497 = vmatpush2.msra.mxu0 0.0
    %1498 = vmatprep.subr.mxu0 0.0
    %1499 = vmatpush2.msra.mxu0 0.0
    %1500 = vmatprep.subr.mxu0 0.0
    %1501 = vmatpush2.msra.mxu0 0.0
    %1502 = vmatprep.subr.mxu0 0.0
    %1503 = vmatpush2.msra.mxu0 0.0
    %1504 = vmatprep.subr.mxu0 0.0
    %1505 = vmatpush2.msra.mxu0 0.0
    %1506 = vmatprep.mubr.f32.mxu0 0.0
    %1507 = vmatmul.mubr.f32.gmra.mxu0 %v1440
    %v1508 = vpop.f32.mrf.mxu0
    %v1509 = vadd.f32 0.0, %v1508
    %v1510 = vpop.f32.mrf.mxu0
    %1511 = vdwg.mxu0
    %1513 = vrot.lane.b32.xlu0 %v1436, 32
    %v1514 = vpop.permute.xlu0 %1513
    %v1515 = vsel %vm233, %v1514, 0
    %1517 = vmatprep.subr.mxu0 0.0
    %1518 = vmatpush1.msra.mxu0 0.0
    %1519 = vmatprep.subr.mxu0 0.0
    %1520 = vmatpush1.msra.mxu0 0.0
    %1521 = vmatprep.subr.mxu0 0.0
    %1522 = vmatpush1.msra.mxu0 0.0
    %1523 = vmatprep.subr.mxu0 0.0
    %1524 = vmatpush1.msra.mxu0 0.0
    %1525 = vmatprep.subr.mxu0 0.0
    %1526 = vmatpush1.msra.mxu0 0.0
    %1527 = vmatprep.subr.mxu0 0.0
    %1528 = vmatpush1.msra.mxu0 0.0
    %1529 = vmatprep.subr.mxu0 0.0
    %1530 = vmatpush1.msra.mxu0 0.0
    %1531 = vmatprep.subr.mxu0 0.0
    %1532 = vmatpush1.msra.mxu0 0.0
    %1533 = vmatprep.subr.mxu0 0.0
    %1534 = vmatpush1.msra.mxu0 0.0
    %1535 = vmatprep.subr.mxu0 0.0
    %1536 = vmatpush1.msra.mxu0 0.0
    %1537 = vmatprep.subr.mxu0 0.0
    %1538 = vmatpush1.msra.mxu0 0.0
    %1539 = vmatprep.subr.mxu0 0.0
    %1540 = vmatpush1.msra.mxu0 0.0
    %1541 = vmatprep.subr.mxu0 0.0
    %1542 = vmatpush1.msra.mxu0 %v134
    %1543 = vmatprep.subr.mxu0 0.0
    %1544 = vmatpush1.msra.mxu0 %v133
    %1545 = vmatprep.subr.mxu0 0.0
    %1546 = vmatpush1.msra.mxu0 %v132
    %1547 = vmatprep.subr.mxu0 0.0
    %1548 = vmatpush1.msra.mxu0 %v131
    %1549 = vmatprep.subr.mxu0 0.0
    %1550 = vmatpush2.msra.mxu0 0.0
    %1551 = vmatprep.subr.mxu0 0.0
    %1552 = vmatpush2.msra.mxu0 0.0
    %1553 = vmatprep.subr.mxu0 0.0
    %1554 = vmatpush2.msra.mxu0 0.0
    %1555 = vmatprep.subr.mxu0 0.0
    %1556 = vmatpush2.msra.mxu0 0.0
    %1557 = vmatprep.subr.mxu0 0.0
    %1558 = vmatpush2.msra.mxu0 0.0
    %1559 = vmatprep.subr.mxu0 0.0
    %1560 = vmatpush2.msra.mxu0 0.0
    %1561 = vmatprep.subr.mxu0 0.0
    %1562 = vmatpush2.msra.mxu0 0.0
    %1563 = vmatprep.subr.mxu0 0.0
    %1564 = vmatpush2.msra.mxu0 0.0
    %1565 = vmatprep.subr.mxu0 0.0
    %1566 = vmatpush2.msra.mxu0 0.0
    %1567 = vmatprep.subr.mxu0 0.0
    %1568 = vmatpush2.msra.mxu0 0.0
    %1569 = vmatprep.subr.mxu0 0.0
    %1570 = vmatpush2.msra.mxu0 0.0
    %1571 = vmatprep.subr.mxu0 0.0
    %1572 = vmatpush2.msra.mxu0 0.0
    %1573 = vmatprep.subr.mxu0 0.0
    %1574 = vmatpush2.msra.mxu0 0.0
    %1575 = vmatprep.subr.mxu0 0.0
    %1576 = vmatpush2.msra.mxu0 0.0
    %1577 = vmatprep.subr.mxu0 0.0
    %1578 = vmatpush2.msra.mxu0 0.0
    %1579 = vmatprep.subr.mxu0 0.0
    %1580 = vmatpush2.msra.mxu0 0.0
    %1581 = vmatprep.mubr.f32.mxu0 0.0
    %1582 = vmatmul.mubr.f32.gmra.mxu0 %v1515
    %v1583 = vpop.f32.mrf.mxu0
    %v1584 = vadd.f32 %v1509, %v1583
    %v1585 = vpop.f32.mrf.mxu0
    %1586 = vdwg.mxu0
    %v1587 = vadd.f32 %v1584, %v481
    %v1588 = vxor.u32 %v1587, 2147483648
    %v1589 = vmul.f32 %v1588, 1.442695
    %v1590 = vpow.pop %v1589
    %v1591 = vadd.f32 %v1590, 1.0
    %v1592 = vrcp.pop %v1591
    %v1593 = vmul.f32 1.0, %v1592
    %v1594 = vtanh.pop %v1587
    %v1595 = vmul.f32 %v1593, %v1332
    %1597 = vrot.lane.b32.xlu0 %v1594, 64
    %v1598 = vpop.permute.xlu0 %1597
    %v1600 = vmul.f32 %v1593, %v1598
    %1602 = vrot.lane.b32.xlu0 %v1600, 32
    %v1603 = vpop.permute.xlu0 %1602
    %v1605 = vadd.f32 %v1595, %v1603
    %v1606 = vtanh.pop %v1605
    %1608 = vrot.lane.b32.xlu0 %v1606, 64
    %v1609 = vpop.permute.xlu0 %1608
    %v1611 = vmul.f32 %v1593, %v1609
    %1612 = vmatprep.subr.mxu0 0.0
    %1613 = vmatpush1.msra.mxu0 0.0
    %1614 = vmatprep.subr.mxu0 0.0
    %1615 = vmatpush1.msra.mxu0 0.0
    %1616 = vmatprep.subr.mxu0 0.0
    %1617 = vmatpush1.msra.mxu0 0.0
    %1618 = vmatprep.subr.mxu0 0.0
    %1619 = vmatpush1.msra.mxu0 0.0
    %1620 = vmatprep.subr.mxu0 0.0
    %1621 = vmatpush1.msra.mxu0 0.0
    %1622 = vmatprep.subr.mxu0 0.0
    %1623 = vmatpush1.msra.mxu0 0.0
    %1624 = vmatprep.subr.mxu0 0.0
    %1625 = vmatpush1.msra.mxu0 0.0
    %1626 = vmatprep.subr.mxu0 0.0
    %1627 = vmatpush1.msra.mxu0 0.0
    %1628 = vmatprep.subr.mxu0 0.0
    %1629 = vmatpush1.msra.mxu0 0.0
    %1630 = vmatprep.subr.mxu0 0.0
    %1631 = vmatpush1.msra.mxu0 0.0
    %1632 = vmatprep.subr.mxu0 0.0
    %1633 = vmatpush1.msra.mxu0 0.0
    %1634 = vmatprep.subr.mxu0 0.0
    %1635 = vmatpush1.msra.mxu0 0.0
    %1636 = vmatprep.subr.mxu0 0.0
    %1637 = vmatpush1.msra.mxu0 %v130
    %1638 = vmatprep.subr.mxu0 0.0
    %1639 = vmatpush1.msra.mxu0 %v129
    %1640 = vmatprep.subr.mxu0 0.0
    %1641 = vmatpush1.msra.mxu0 %v128
    %1642 = vmatprep.subr.mxu0 0.0
    %1643 = vmatpush1.msra.mxu0 %v127
    %1644 = vmatprep.subr.mxu0 0.0
    %1645 = vmatpush2.msra.mxu0 0.0
    %1646 = vmatprep.subr.mxu0 0.0
    %1647 = vmatpush2.msra.mxu0 0.0
    %1648 = vmatprep.subr.mxu0 0.0
    %1649 = vmatpush2.msra.mxu0 0.0
    %1650 = vmatprep.subr.mxu0 0.0
    %1651 = vmatpush2.msra.mxu0 0.0
    %1652 = vmatprep.subr.mxu0 0.0
    %1653 = vmatpush2.msra.mxu0 0.0
    %1654 = vmatprep.subr.mxu0 0.0
    %1655 = vmatpush2.msra.mxu0 0.0
    %1656 = vmatprep.subr.mxu0 0.0
    %1657 = vmatpush2.msra.mxu0 0.0
    %1658 = vmatprep.subr.mxu0 0.0
    %1659 = vmatpush2.msra.mxu0 0.0
    %1660 = vmatprep.subr.mxu0 0.0
    %1661 = vmatpush2.msra.mxu0 0.0
    %1662 = vmatprep.subr.mxu0 0.0
    %1663 = vmatpush2.msra.mxu0 0.0
    %1664 = vmatprep.subr.mxu0 0.0
    %1665 = vmatpush2.msra.mxu0 0.0
    %1666 = vmatprep.subr.mxu0 0.0
    %1667 = vmatpush2.msra.mxu0 0.0
    %1668 = vmatprep.subr.mxu0 0.0
    %1669 = vmatpush2.msra.mxu0 0.0
    %1670 = vmatprep.subr.mxu0 0.0
    %1671 = vmatpush2.msra.mxu0 0.0
    %1672 = vmatprep.subr.mxu0 0.0
    %1673 = vmatpush2.msra.mxu0 0.0
    %1674 = vmatprep.subr.mxu0 0.0
    %1675 = vmatpush2.msra.mxu0 0.0
    %1676 = vmatprep.mubr.f32.mxu0 0.0
    %1677 = vmatmul.mubr.f32.gmra.mxu0 %v1515
    %v1678 = vpop.f32.mrf.mxu0
    %v1679 = vadd.f32 0.0, %v1678
    %v1680 = vpop.f32.mrf.mxu0
    %1681 = vdwg.mxu0
    %v1683 = vrot.slane %v1679, 6
    %v1685 = vadd.f32 %v230, %v1683
    %v1686 = vxor.u32 %v1685, 2147483648
    %v1687 = vmul.f32 %v1686, 1.442695
    %v1688 = vpow.pop %v1687
    %v1689 = vadd.f32 %v1688, 1.0
    %v1690 = vrcp.pop %v1689
    %v1691 = vmul.f32 1.0, %v1690
    %v1692 = vtanh.pop %v1685
    %v1694 = vrot.slane %v1430, 6
    %v1696 = vmul.f32 %v1691, %v1694
    %1698 = vrot.lane.b32.xlu0 %v1692, 64
    %v1699 = vpop.permute.xlu0 %1698
    %v1701 = vmul.f32 %v1691, %v1699
    %1703 = vrot.lane.b32.xlu0 %v1701, 32
    %v1704 = vpop.permute.xlu0 %1703
    %v1706 = vadd.f32 %v1696, %v1704
    %v1707 = vtanh.pop %v1706
    %1709 = vrot.lane.b32.xlu0 %v1707, 64
    %v1710 = vpop.permute.xlu0 %1709
    %v1712 = vmul.f32 %v1691, %v1710
    %1714 = vrot.lane.b32.xlu0 %v1611, 32
    %v1715 = vpop.permute.xlu0 %1714
    %v1716 = vsel %vm233, %v1715, 0
    %1718 = vmatprep.subr.mxu0 0.0
    %1719 = vmatpush1.msra.mxu0 0.0
    %1720 = vmatprep.subr.mxu0 0.0
    %1721 = vmatpush1.msra.mxu0 0.0
    %1722 = vmatprep.subr.mxu0 0.0
    %1723 = vmatpush1.msra.mxu0 0.0
    %1724 = vmatprep.subr.mxu0 0.0
    %1725 = vmatpush1.msra.mxu0 0.0
    %1726 = vmatprep.subr.mxu0 0.0
    %1727 = vmatpush1.msra.mxu0 0.0
    %1728 = vmatprep.subr.mxu0 0.0
    %1729 = vmatpush1.msra.mxu0 0.0
    %1730 = vmatprep.subr.mxu0 0.0
    %1731 = vmatpush1.msra.mxu0 0.0
    %1732 = vmatprep.subr.mxu0 0.0
    %1733 = vmatpush1.msra.mxu0 0.0
    %1734 = vmatprep.subr.mxu0 0.0
    %1735 = vmatpush1.msra.mxu0 0.0
    %1736 = vmatprep.subr.mxu0 0.0
    %1737 = vmatpush1.msra.mxu0 0.0
    %1738 = vmatprep.subr.mxu0 0.0
    %1739 = vmatpush1.msra.mxu0 0.0
    %1740 = vmatprep.subr.mxu0 0.0
    %1741 = vmatpush1.msra.mxu0 0.0
    %1742 = vmatprep.subr.mxu0 0.0
    %1743 = vmatpush1.msra.mxu0 %v138
    %1744 = vmatprep.subr.mxu0 0.0
    %1745 = vmatpush1.msra.mxu0 %v137
    %1746 = vmatprep.subr.mxu0 0.0
    %1747 = vmatpush1.msra.mxu0 %v136
    %1748 = vmatprep.subr.mxu0 0.0
    %1749 = vmatpush1.msra.mxu0 %v135
    %1750 = vmatprep.subr.mxu0 0.0
    %1751 = vmatpush2.msra.mxu0 0.0
    %1752 = vmatprep.subr.mxu0 0.0
    %1753 = vmatpush2.msra.mxu0 0.0
    %1754 = vmatprep.subr.mxu0 0.0
    %1755 = vmatpush2.msra.mxu0 0.0
    %1756 = vmatprep.subr.mxu0 0.0
    %1757 = vmatpush2.msra.mxu0 0.0
    %1758 = vmatprep.subr.mxu0 0.0
    %1759 = vmatpush2.msra.mxu0 0.0
    %1760 = vmatprep.subr.mxu0 0.0
    %1761 = vmatpush2.msra.mxu0 0.0
    %1762 = vmatprep.subr.mxu0 0.0
    %1763 = vmatpush2.msra.mxu0 0.0
    %1764 = vmatprep.subr.mxu0 0.0
    %1765 = vmatpush2.msra.mxu0 0.0
    %1766 = vmatprep.subr.mxu0 0.0
    %1767 = vmatpush2.msra.mxu0 0.0
    %1768 = vmatprep.subr.mxu0 0.0
    %1769 = vmatpush2.msra.mxu0 0.0
    %1770 = vmatprep.subr.mxu0 0.0
    %1771 = vmatpush2.msra.mxu0 0.0
    %1772 = vmatprep.subr.mxu0 0.0
    %1773 = vmatpush2.msra.mxu0 0.0
    %1774 = vmatprep.subr.mxu0 0.0
    %1775 = vmatpush2.msra.mxu0 0.0
    %1776 = vmatprep.subr.mxu0 0.0
    %1777 = vmatpush2.msra.mxu0 0.0
    %1778 = vmatprep.subr.mxu0 0.0
    %1779 = vmatpush2.msra.mxu0 0.0
    %1780 = vmatprep.subr.mxu0 0.0
    %1781 = vmatpush2.msra.mxu0 0.0
    %1782 = vmatprep.mubr.f32.mxu0 0.0
    %1783 = vmatmul.mubr.f32.gmra.mxu0 %v1716
    %v1784 = vpop.f32.mrf.mxu0
    %v1785 = vadd.f32 0.0, %v1784
    %v1786 = vpop.f32.mrf.mxu0
    %1787 = vdwg.mxu0
    %v1789 = vrot.slane %v1712, 2
    %1790 = vrot.lane.b32.xlu0 %v1789, 32
    %v1791 = vpop.permute.xlu0 %1790
    %v1792 = vsel %vm233, %v1791, 0
    %1794 = vmatprep.subr.mxu0 0.0
    %1795 = vmatpush1.msra.mxu0 0.0
    %1796 = vmatprep.subr.mxu0 0.0
    %1797 = vmatpush1.msra.mxu0 0.0
    %1798 = vmatprep.subr.mxu0 0.0
    %1799 = vmatpush1.msra.mxu0 0.0
    %1800 = vmatprep.subr.mxu0 0.0
    %1801 = vmatpush1.msra.mxu0 0.0
    %1802 = vmatprep.subr.mxu0 0.0
    %1803 = vmatpush1.msra.mxu0 0.0
    %1804 = vmatprep.subr.mxu0 0.0
    %1805 = vmatpush1.msra.mxu0 0.0
    %1806 = vmatprep.subr.mxu0 0.0
    %1807 = vmatpush1.msra.mxu0 0.0
    %1808 = vmatprep.subr.mxu0 0.0
    %1809 = vmatpush1.msra.mxu0 0.0
    %1810 = vmatprep.subr.mxu0 0.0
    %1811 = vmatpush1.msra.mxu0 0.0
    %1812 = vmatprep.subr.mxu0 0.0
    %1813 = vmatpush1.msra.mxu0 0.0
    %1814 = vmatprep.subr.mxu0 0.0
    %1815 = vmatpush1.msra.mxu0 0.0
    %1816 = vmatprep.subr.mxu0 0.0
    %1817 = vmatpush1.msra.mxu0 0.0
    %1818 = vmatprep.subr.mxu0 0.0
    %1819 = vmatpush1.msra.mxu0 %v134
    %1820 = vmatprep.subr.mxu0 0.0
    %1821 = vmatpush1.msra.mxu0 %v133
    %1822 = vmatprep.subr.mxu0 0.0
    %1823 = vmatpush1.msra.mxu0 %v132
    %1824 = vmatprep.subr.mxu0 0.0
    %1825 = vmatpush1.msra.mxu0 %v131
    %1826 = vmatprep.subr.mxu0 0.0
    %1827 = vmatpush2.msra.mxu0 0.0
    %1828 = vmatprep.subr.mxu0 0.0
    %1829 = vmatpush2.msra.mxu0 0.0
    %1830 = vmatprep.subr.mxu0 0.0
    %1831 = vmatpush2.msra.mxu0 0.0
    %1832 = vmatprep.subr.mxu0 0.0
    %1833 = vmatpush2.msra.mxu0 0.0
    %1834 = vmatprep.subr.mxu0 0.0
    %1835 = vmatpush2.msra.mxu0 0.0
    %1836 = vmatprep.subr.mxu0 0.0
    %1837 = vmatpush2.msra.mxu0 0.0
    %1838 = vmatprep.subr.mxu0 0.0
    %1839 = vmatpush2.msra.mxu0 0.0
    %1840 = vmatprep.subr.mxu0 0.0
    %1841 = vmatpush2.msra.mxu0 0.0
    %1842 = vmatprep.subr.mxu0 0.0
    %1843 = vmatpush2.msra.mxu0 0.0
    %1844 = vmatprep.subr.mxu0 0.0
    %1845 = vmatpush2.msra.mxu0 0.0
    %1846 = vmatprep.subr.mxu0 0.0
    %1847 = vmatpush2.msra.mxu0 0.0
    %1848 = vmatprep.subr.mxu0 0.0
    %1849 = vmatpush2.msra.mxu0 0.0
    %1850 = vmatprep.subr.mxu0 0.0
    %1851 = vmatpush2.msra.mxu0 0.0
    %1852 = vmatprep.subr.mxu0 0.0
    %1853 = vmatpush2.msra.mxu0 0.0
    %1854 = vmatprep.subr.mxu0 0.0
    %1855 = vmatpush2.msra.mxu0 0.0
    %1856 = vmatprep.subr.mxu0 0.0
    %1857 = vmatpush2.msra.mxu0 0.0
    %1858 = vmatprep.mubr.f32.mxu0 0.0
    %1859 = vmatmul.mubr.f32.gmra.mxu0 %v1792
    %v1860 = vpop.f32.mrf.mxu0
    %v1861 = vadd.f32 %v1785, %v1860
    %v1862 = vpop.f32.mrf.mxu0
    %1863 = vdwg.mxu0
    %v1864 = vadd.f32 %v1861, %v481
    %v1865 = vxor.u32 %v1864, 2147483648
    %v1866 = vmul.f32 %v1865, 1.442695
    %v1867 = vpow.pop %v1866
    %v1868 = vadd.f32 %v1867, 1.0
    %v1869 = vrcp.pop %v1868
    %v1870 = vmul.f32 1.0, %v1869
    %v1871 = vtanh.pop %v1864
    %v1872 = vmul.f32 %v1870, %v1605
    %1874 = vrot.lane.b32.xlu0 %v1871, 64
    %v1875 = vpop.permute.xlu0 %1874
    %v1877 = vmul.f32 %v1870, %v1875
    %1879 = vrot.lane.b32.xlu0 %v1877, 32
    %v1880 = vpop.permute.xlu0 %1879
    %v1882 = vadd.f32 %v1872, %v1880
    %v1883 = vtanh.pop %v1882
    %1885 = vrot.lane.b32.xlu0 %v1883, 64
    %v1886 = vpop.permute.xlu0 %1885
    %v1888 = vmul.f32 %v1870, %v1886
    %1889 = vmatprep.subr.mxu0 0.0
    %1890 = vmatpush1.msra.mxu0 0.0
    %1891 = vmatprep.subr.mxu0 0.0
    %1892 = vmatpush1.msra.mxu0 0.0
    %1893 = vmatprep.subr.mxu0 0.0
    %1894 = vmatpush1.msra.mxu0 0.0
    %1895 = vmatprep.subr.mxu0 0.0
    %1896 = vmatpush1.msra.mxu0 0.0
    %1897 = vmatprep.subr.mxu0 0.0
    %1898 = vmatpush1.msra.mxu0 0.0
    %1899 = vmatprep.subr.mxu0 0.0
    %1900 = vmatpush1.msra.mxu0 0.0
    %1901 = vmatprep.subr.mxu0 0.0
    %1902 = vmatpush1.msra.mxu0 0.0
    %1903 = vmatprep.subr.mxu0 0.0
    %1904 = vmatpush1.msra.mxu0 0.0
    %1905 = vmatprep.subr.mxu0 0.0
    %1906 = vmatpush1.msra.mxu0 0.0
    %1907 = vmatprep.subr.mxu0 0.0
    %1908 = vmatpush1.msra.mxu0 0.0
    %1909 = vmatprep.subr.mxu0 0.0
    %1910 = vmatpush1.msra.mxu0 0.0
    %1911 = vmatprep.subr.mxu0 0.0
    %1912 = vmatpush1.msra.mxu0 0.0
    %1913 = vmatprep.subr.mxu0 0.0
    %1914 = vmatpush1.msra.mxu0 %v130
    %1915 = vmatprep.subr.mxu0 0.0
    %1916 = vmatpush1.msra.mxu0 %v129
    %1917 = vmatprep.subr.mxu0 0.0
    %1918 = vmatpush1.msra.mxu0 %v128
    %1919 = vmatprep.subr.mxu0 0.0
    %1920 = vmatpush1.msra.mxu0 %v127
    %1921 = vmatprep.subr.mxu0 0.0
    %1922 = vmatpush2.msra.mxu0 0.0
    %1923 = vmatprep.subr.mxu0 0.0
    %1924 = vmatpush2.msra.mxu0 0.0
    %1925 = vmatprep.subr.mxu0 0.0
    %1926 = vmatpush2.msra.mxu0 0.0
    %1927 = vmatprep.subr.mxu0 0.0
    %1928 = vmatpush2.msra.mxu0 0.0
    %1929 = vmatprep.subr.mxu0 0.0
    %1930 = vmatpush2.msra.mxu0 0.0
    %1931 = vmatprep.subr.mxu0 0.0
    %1932 = vmatpush2.msra.mxu0 0.0
    %1933 = vmatprep.subr.mxu0 0.0
    %1934 = vmatpush2.msra.mxu0 0.0
    %1935 = vmatprep.subr.mxu0 0.0
    %1936 = vmatpush2.msra.mxu0 0.0
    %1937 = vmatprep.subr.mxu0 0.0
    %1938 = vmatpush2.msra.mxu0 0.0
    %1939 = vmatprep.subr.mxu0 0.0
    %1940 = vmatpush2.msra.mxu0 0.0
    %1941 = vmatprep.subr.mxu0 0.0
    %1942 = vmatpush2.msra.mxu0 0.0
    %1943 = vmatprep.subr.mxu0 0.0
    %1944 = vmatpush2.msra.mxu0 0.0
    %1945 = vmatprep.subr.mxu0 0.0
    %1946 = vmatpush2.msra.mxu0 0.0
    %1947 = vmatprep.subr.mxu0 0.0
    %1948 = vmatpush2.msra.mxu0 0.0
    %1949 = vmatprep.subr.mxu0 0.0
    %1950 = vmatpush2.msra.mxu0 0.0
    %1951 = vmatprep.subr.mxu0 0.0
    %1952 = vmatpush2.msra.mxu0 0.0
    %1953 = vmatprep.mubr.f32.mxu0 0.0
    %1954 = vmatmul.mubr.f32.gmra.mxu0 %v1792
    %v1955 = vpop.f32.mrf.mxu0
    %v1956 = vadd.f32 0.0, %v1955
    %v1957 = vpop.f32.mrf.mxu0
    %1958 = vdwg.mxu0
    %v1960 = vrot.slane %v1956, 4
    %v1962 = vadd.f32 %v230, %v1960
    %v1963 = vxor.u32 %v1962, 2147483648
    %v1964 = vmul.f32 %v1963, 1.442695
    %v1965 = vpow.pop %v1964
    %v1966 = vadd.f32 %v1965, 1.0
    %v1967 = vrcp.pop %v1966
    %v1968 = vmul.f32 1.0, %v1967
    %v1969 = vtanh.pop %v1962
    %v1971 = vrot.slane %v1706, 6
    %v1973 = vmul.f32 %v1968, %v1971
    %1975 = vrot.lane.b32.xlu0 %v1969, 64
    %v1976 = vpop.permute.xlu0 %1975
    %v1978 = vmul.f32 %v1968, %v1976
    %1980 = vrot.lane.b32.xlu0 %v1978, 32
    %v1981 = vpop.permute.xlu0 %1980
    %v1983 = vadd.f32 %v1973, %v1981
    %v1984 = vtanh.pop %v1983
    %1986 = vrot.lane.b32.xlu0 %v1984, 64
    %v1987 = vpop.permute.xlu0 %1986
    %v1989 = vmul.f32 %v1968, %v1987
    %1991 = vrot.lane.b32.xlu0 %v1888, 32
    %v1992 = vpop.permute.xlu0 %1991
    %v1993 = vsel %vm233, %v1992, 0
    %1995 = vmatprep.subr.mxu0 0.0
    %1996 = vmatpush1.msra.mxu0 0.0
    %1997 = vmatprep.subr.mxu0 0.0
    %1998 = vmatpush1.msra.mxu0 0.0
    %1999 = vmatprep.subr.mxu0 0.0
    %2000 = vmatpush1.msra.mxu0 0.0
    %2001 = vmatprep.subr.mxu0 0.0
    %2002 = vmatpush1.msra.mxu0 0.0
    %2003 = vmatprep.subr.mxu0 0.0
    %2004 = vmatpush1.msra.mxu0 0.0
    %2005 = vmatprep.subr.mxu0 0.0
    %2006 = vmatpush1.msra.mxu0 0.0
    %2007 = vmatprep.subr.mxu0 0.0
    %2008 = vmatpush1.msra.mxu0 0.0
    %2009 = vmatprep.subr.mxu0 0.0
    %2010 = vmatpush1.msra.mxu0 0.0
    %2011 = vmatprep.subr.mxu0 0.0
    %2012 = vmatpush1.msra.mxu0 0.0
    %2013 = vmatprep.subr.mxu0 0.0
    %2014 = vmatpush1.msra.mxu0 0.0
    %2015 = vmatprep.subr.mxu0 0.0
    %2016 = vmatpush1.msra.mxu0 0.0
    %2017 = vmatprep.subr.mxu0 0.0
    %2018 = vmatpush1.msra.mxu0 0.0
    %2019 = vmatprep.subr.mxu0 0.0
    %2020 = vmatpush1.msra.mxu0 %v138
    %2021 = vmatprep.subr.mxu0 0.0
    %2022 = vmatpush1.msra.mxu0 %v137
    %2023 = vmatprep.subr.mxu0 0.0
    %2024 = vmatpush1.msra.mxu0 %v136
    %2025 = vmatprep.subr.mxu0 0.0
    %2026 = vmatpush1.msra.mxu0 %v135
    %2027 = vmatprep.subr.mxu0 0.0
    %2028 = vmatpush2.msra.mxu0 0.0
    %2029 = vmatprep.subr.mxu0 0.0
    %2030 = vmatpush2.msra.mxu0 0.0
    %2031 = vmatprep.subr.mxu0 0.0
    %2032 = vmatpush2.msra.mxu0 0.0
    %2033 = vmatprep.subr.mxu0 0.0
    %2034 = vmatpush2.msra.mxu0 0.0
    %2035 = vmatprep.subr.mxu0 0.0
    %2036 = vmatpush2.msra.mxu0 0.0
    %2037 = vmatprep.subr.mxu0 0.0
    %2038 = vmatpush2.msra.mxu0 0.0
    %2039 = vmatprep.subr.mxu0 0.0
    %2040 = vmatpush2.msra.mxu0 0.0
    %2041 = vmatprep.subr.mxu0 0.0
    %2042 = vmatpush2.msra.mxu0 0.0
    %2043 = vmatprep.subr.mxu0 0.0
    %2044 = vmatpush2.msra.mxu0 0.0
    %2045 = vmatprep.subr.mxu0 0.0
    %2046 = vmatpush2.msra.mxu0 0.0
    %2047 = vmatprep.subr.mxu0 0.0
    %2048 = vmatpush2.msra.mxu0 0.0
    %2049 = vmatprep.subr.mxu0 0.0
    %2050 = vmatpush2.msra.mxu0 0.0
    %2051 = vmatprep.subr.mxu0 0.0
    %2052 = vmatpush2.msra.mxu0 0.0
    %2053 = vmatprep.subr.mxu0 0.0
    %2054 = vmatpush2.msra.mxu0 0.0
    %2055 = vmatprep.subr.mxu0 0.0
    %2056 = vmatpush2.msra.mxu0 0.0
    %2057 = vmatprep.subr.mxu0 0.0
    %2058 = vmatpush2.msra.mxu0 0.0
    %2059 = vmatprep.mubr.f32.mxu0 0.0
    %2060 = vmatmul.mubr.f32.gmra.mxu0 %v1993
    %v2061 = vpop.f32.mrf.mxu0
    %v2062 = vadd.f32 0.0, %v2061
    %v2063 = vpop.f32.mrf.mxu0
    %2064 = vdwg.mxu0
    %v2066 = vrot.slane %v1989, 4
    %2067 = vrot.lane.b32.xlu0 %v2066, 32
    %v2068 = vpop.permute.xlu0 %2067
    %v2069 = vsel %vm233, %v2068, 0
    %2071 = vmatprep.subr.mxu0 0.0
    %2072 = vmatpush1.msra.mxu0 0.0
    %2073 = vmatprep.subr.mxu0 0.0
    %2074 = vmatpush1.msra.mxu0 0.0
    %2075 = vmatprep.subr.mxu0 0.0
    %2076 = vmatpush1.msra.mxu0 0.0
    %2077 = vmatprep.subr.mxu0 0.0
    %2078 = vmatpush1.msra.mxu0 0.0
    %2079 = vmatprep.subr.mxu0 0.0
    %2080 = vmatpush1.msra.mxu0 0.0
    %2081 = vmatprep.subr.mxu0 0.0
    %2082 = vmatpush1.msra.mxu0 0.0
    %2083 = vmatprep.subr.mxu0 0.0
    %2084 = vmatpush1.msra.mxu0 0.0
    %2085 = vmatprep.subr.mxu0 0.0
    %2086 = vmatpush1.msra.mxu0 0.0
    %2087 = vmatprep.subr.mxu0 0.0
    %2088 = vmatpush1.msra.mxu0 0.0
    %2089 = vmatprep.subr.mxu0 0.0
    %2090 = vmatpush1.msra.mxu0 0.0
    %2091 = vmatprep.subr.mxu0 0.0
    %2092 = vmatpush1.msra.mxu0 0.0
    %2093 = vmatprep.subr.mxu0 0.0
    %2094 = vmatpush1.msra.mxu0 0.0
    %2095 = vmatprep.subr.mxu0 0.0
    %2096 = vmatpush1.msra.mxu0 %v134
    %2097 = vmatprep.subr.mxu0 0.0
    %2098 = vmatpush1.msra.mxu0 %v133
    %2099 = vmatprep.subr.mxu0 0.0
    %2100 = vmatpush1.msra.mxu0 %v132
    %2101 = vmatprep.subr.mxu0 0.0
    %2102 = vmatpush1.msra.mxu0 %v131
    %2103 = vmatprep.subr.mxu0 0.0
    %2104 = vmatpush2.msra.mxu0 0.0
    %2105 = vmatprep.subr.mxu0 0.0
    %2106 = vmatpush2.msra.mxu0 0.0
    %2107 = vmatprep.subr.mxu0 0.0
    %2108 = vmatpush2.msra.mxu0 0.0
    %2109 = vmatprep.subr.mxu0 0.0
    %2110 = vmatpush2.msra.mxu0 0.0
    %2111 = vmatprep.subr.mxu0 0.0
    %2112 = vmatpush2.msra.mxu0 0.0
    %2113 = vmatprep.subr.mxu0 0.0
    %2114 = vmatpush2.msra.mxu0 0.0
    %2115 = vmatprep.subr.mxu0 0.0
    %2116 = vmatpush2.msra.mxu0 0.0
    %2117 = vmatprep.subr.mxu0 0.0
    %2118 = vmatpush2.msra.mxu0 0.0
    %2119 = vmatprep.subr.mxu0 0.0
    %2120 = vmatpush2.msra.mxu0 0.0
    %2121 = vmatprep.subr.mxu0 0.0
    %2122 = vmatpush2.msra.mxu0 0.0
    %2123 = vmatprep.subr.mxu0 0.0
    %2124 = vmatpush2.msra.mxu0 0.0
    %2125 = vmatprep.subr.mxu0 0.0
    %2126 = vmatpush2.msra.mxu0 0.0
    %2127 = vmatprep.subr.mxu0 0.0
    %2128 = vmatpush2.msra.mxu0 0.0
    %2129 = vmatprep.subr.mxu0 0.0
    %2130 = vmatpush2.msra.mxu0 0.0
    %2131 = vmatprep.subr.mxu0 0.0
    %2132 = vmatpush2.msra.mxu0 0.0
    %2133 = vmatprep.subr.mxu0 0.0
    %2134 = vmatpush2.msra.mxu0 0.0
    %2135 = vmatprep.mubr.f32.mxu0 0.0
    %2136 = vmatmul.mubr.f32.gmra.mxu0 %v2069
    %v2137 = vpop.f32.mrf.mxu0
    %v2138 = vadd.f32 %v2062, %v2137
    %v2139 = vpop.f32.mrf.mxu0
    %2140 = vdwg.mxu0
    %v2141 = vadd.f32 %v2138, %v481
    %v2142 = vxor.u32 %v2141, 2147483648
    %v2143 = vmul.f32 %v2142, 1.442695
    %v2144 = vpow.pop %v2143
    %v2145 = vadd.f32 %v2144, 1.0
    %v2146 = vrcp.pop %v2145
    %v2147 = vmul.f32 1.0, %v2146
    %v2148 = vtanh.pop %v2141
    %v2149 = vmul.f32 %v2147, %v1882
    %2151 = vrot.lane.b32.xlu0 %v2148, 64
    %v2152 = vpop.permute.xlu0 %2151
    %v2154 = vmul.f32 %v2147, %v2152
    %2156 = vrot.lane.b32.xlu0 %v2154, 32
    %v2157 = vpop.permute.xlu0 %2156
    %v2159 = vadd.f32 %v2149, %v2157
    %v2160 = vtanh.pop %v2159
    %2162 = vrot.lane.b32.xlu0 %v2160, 64
    %v2163 = vpop.permute.xlu0 %2162
    %v2165 = vmul.f32 %v2147, %v2163
    %2166 = vmatprep.subr.mxu0 0.0
    %2167 = vmatpush1.msra.mxu0 0.0
    %2168 = vmatprep.subr.mxu0 0.0
    %2169 = vmatpush1.msra.mxu0 0.0
    %2170 = vmatprep.subr.mxu0 0.0
    %2171 = vmatpush1.msra.mxu0 0.0
    %2172 = vmatprep.subr.mxu0 0.0
    %2173 = vmatpush1.msra.mxu0 0.0
    %2174 = vmatprep.subr.mxu0 0.0
    %2175 = vmatpush1.msra.mxu0 0.0
    %2176 = vmatprep.subr.mxu0 0.0
    %2177 = vmatpush1.msra.mxu0 0.0
    %2178 = vmatprep.subr.mxu0 0.0
    %2179 = vmatpush1.msra.mxu0 0.0
    %2180 = vmatprep.subr.mxu0 0.0
    %2181 = vmatpush1.msra.mxu0 0.0
    %2182 = vmatprep.subr.mxu0 0.0
    %2183 = vmatpush1.msra.mxu0 0.0
    %2184 = vmatprep.subr.mxu0 0.0
    %2185 = vmatpush1.msra.mxu0 0.0
    %2186 = vmatprep.subr.mxu0 0.0
    %2187 = vmatpush1.msra.mxu0 0.0
    %2188 = vmatprep.subr.mxu0 0.0
    %2189 = vmatpush1.msra.mxu0 0.0
    %2190 = vmatprep.subr.mxu0 0.0
    %2191 = vmatpush1.msra.mxu0 %v130
    %2192 = vmatprep.subr.mxu0 0.0
    %2193 = vmatpush1.msra.mxu0 %v129
    %2194 = vmatprep.subr.mxu0 0.0
    %2195 = vmatpush1.msra.mxu0 %v128
    %2196 = vmatprep.subr.mxu0 0.0
    %2197 = vmatpush1.msra.mxu0 %v127
    %2198 = vmatprep.subr.mxu0 0.0
    %2199 = vmatpush2.msra.mxu0 0.0
    %2200 = vmatprep.subr.mxu0 0.0
    %2201 = vmatpush2.msra.mxu0 0.0
    %2202 = vmatprep.subr.mxu0 0.0
    %2203 = vmatpush2.msra.mxu0 0.0
    %2204 = vmatprep.subr.mxu0 0.0
    %2205 = vmatpush2.msra.mxu0 0.0
    %2206 = vmatprep.subr.mxu0 0.0
    %2207 = vmatpush2.msra.mxu0 0.0
    %2208 = vmatprep.subr.mxu0 0.0
    %2209 = vmatpush2.msra.mxu0 0.0
    %2210 = vmatprep.subr.mxu0 0.0
    %2211 = vmatpush2.msra.mxu0 0.0
    %2212 = vmatprep.subr.mxu0 0.0
    %2213 = vmatpush2.msra.mxu0 0.0
    %2214 = vmatprep.subr.mxu0 0.0
    %2215 = vmatpush2.msra.mxu0 0.0
    %2216 = vmatprep.subr.mxu0 0.0
    %2217 = vmatpush2.msra.mxu0 0.0
    %2218 = vmatprep.subr.mxu0 0.0
    %2219 = vmatpush2.msra.mxu0 0.0
    %2220 = vmatprep.subr.mxu0 0.0
    %2221 = vmatpush2.msra.mxu0 0.0
    %2222 = vmatprep.subr.mxu0 0.0
    %2223 = vmatpush2.msra.mxu0 0.0
    %2224 = vmatprep.subr.mxu0 0.0
    %2225 = vmatpush2.msra.mxu0 0.0
    %2226 = vmatprep.subr.mxu0 0.0
    %2227 = vmatpush2.msra.mxu0 0.0
    %2228 = vmatprep.subr.mxu0 0.0
    %2229 = vmatpush2.msra.mxu0 0.0
    %2230 = vmatprep.mubr.f32.mxu0 0.0
    %2231 = vmatmul.mubr.f32.gmra.mxu0 %v2069
    %v2232 = vpop.f32.mrf.mxu0
    %v2233 = vadd.f32 0.0, %v2232
    %v2234 = vpop.f32.mrf.mxu0
    %2235 = vdwg.mxu0
    %v2237 = vrot.slane %v2233, 2
    %v2239 = vadd.f32 %v230, %v2237
    %v2240 = vxor.u32 %v2239, 2147483648
    %v2241 = vmul.f32 %v2240, 1.442695
    %v2242 = vpow.pop %v2241
    %v2243 = vadd.f32 %v2242, 1.0
    %v2244 = vrcp.pop %v2243
    %v2245 = vmul.f32 1.0, %v2244
    %v2246 = vtanh.pop %v2239
    %v2248 = vrot.slane %v1983, 6
    %v2250 = vmul.f32 %v2245, %v2248
    %2252 = vrot.lane.b32.xlu0 %v2246, 64
    %v2253 = vpop.permute.xlu0 %2252
    %v2255 = vmul.f32 %v2245, %v2253
    %2257 = vrot.lane.b32.xlu0 %v2255, 32
    %v2258 = vpop.permute.xlu0 %2257
    %v2260 = vadd.f32 %v2250, %v2258
    %v2261 = vtanh.pop %v2260
    %2263 = vrot.lane.b32.xlu0 %v2261, 64
    %v2264 = vpop.permute.xlu0 %2263
    %v2266 = vmul.f32 %v2245, %v2264
    %2268 = vrot.lane.b32.xlu0 %v2165, 32
    %v2269 = vpop.permute.xlu0 %2268
    %v2270 = vsel %vm233, %v2269, 0
    %2272 = vmatprep.subr.mxu0 0.0
    %2273 = vmatpush1.msra.mxu0 0.0
    %2274 = vmatprep.subr.mxu0 0.0
    %2275 = vmatpush1.msra.mxu0 0.0
    %2276 = vmatprep.subr.mxu0 0.0
    %2277 = vmatpush1.msra.mxu0 0.0
    %2278 = vmatprep.subr.mxu0 0.0
    %2279 = vmatpush1.msra.mxu0 0.0
    %2280 = vmatprep.subr.mxu0 0.0
    %2281 = vmatpush1.msra.mxu0 0.0
    %2282 = vmatprep.subr.mxu0 0.0
    %2283 = vmatpush1.msra.mxu0 0.0
    %2284 = vmatprep.subr.mxu0 0.0
    %2285 = vmatpush1.msra.mxu0 0.0
    %2286 = vmatprep.subr.mxu0 0.0
    %2287 = vmatpush1.msra.mxu0 0.0
    %2288 = vmatprep.subr.mxu0 0.0
    %2289 = vmatpush1.msra.mxu0 0.0
    %2290 = vmatprep.subr.mxu0 0.0
    %2291 = vmatpush1.msra.mxu0 0.0
    %2292 = vmatprep.subr.mxu0 0.0
    %2293 = vmatpush1.msra.mxu0 0.0
    %2294 = vmatprep.subr.mxu0 0.0
    %2295 = vmatpush1.msra.mxu0 0.0
    %2296 = vmatprep.subr.mxu0 0.0
    %2297 = vmatpush1.msra.mxu0 %v138
    %2298 = vmatprep.subr.mxu0 0.0
    %2299 = vmatpush1.msra.mxu0 %v137
    %2300 = vmatprep.subr.mxu0 0.0
    %2301 = vmatpush1.msra.mxu0 %v136
    %2302 = vmatprep.subr.mxu0 0.0
    %2303 = vmatpush1.msra.mxu0 %v135
    %2304 = vmatprep.subr.mxu0 0.0
    %2305 = vmatpush2.msra.mxu0 0.0
    %2306 = vmatprep.subr.mxu0 0.0
    %2307 = vmatpush2.msra.mxu0 0.0
    %2308 = vmatprep.subr.mxu0 0.0
    %2309 = vmatpush2.msra.mxu0 0.0
    %2310 = vmatprep.subr.mxu0 0.0
    %2311 = vmatpush2.msra.mxu0 0.0
    %2312 = vmatprep.subr.mxu0 0.0
    %2313 = vmatpush2.msra.mxu0 0.0
    %2314 = vmatprep.subr.mxu0 0.0
    %2315 = vmatpush2.msra.mxu0 0.0
    %2316 = vmatprep.subr.mxu0 0.0
    %2317 = vmatpush2.msra.mxu0 0.0
    %2318 = vmatprep.subr.mxu0 0.0
    %2319 = vmatpush2.msra.mxu0 0.0
    %2320 = vmatprep.subr.mxu0 0.0
    %2321 = vmatpush2.msra.mxu0 0.0
    %2322 = vmatprep.subr.mxu0 0.0
    %2323 = vmatpush2.msra.mxu0 0.0
    %2324 = vmatprep.subr.mxu0 0.0
    %2325 = vmatpush2.msra.mxu0 0.0
    %2326 = vmatprep.subr.mxu0 0.0
    %2327 = vmatpush2.msra.mxu0 0.0
    %2328 = vmatprep.subr.mxu0 0.0
    %2329 = vmatpush2.msra.mxu0 0.0
    %2330 = vmatprep.subr.mxu0 0.0
    %2331 = vmatpush2.msra.mxu0 0.0
    %2332 = vmatprep.subr.mxu0 0.0
    %2333 = vmatpush2.msra.mxu0 0.0
    %2334 = vmatprep.subr.mxu0 0.0
    %2335 = vmatpush2.msra.mxu0 0.0
    %2336 = vmatprep.mubr.f32.mxu0 0.0
    %2337 = vmatmul.mubr.f32.gmra.mxu0 %v2270
    %v2338 = vpop.f32.mrf.mxu0
    %v2339 = vadd.f32 0.0, %v2338
    %v2340 = vpop.f32.mrf.mxu0
    %2341 = vdwg.mxu0
    %v2343 = vrot.slane %v2266, 6
    %2344 = vrot.lane.b32.xlu0 %v2343, 32
    %v2345 = vpop.permute.xlu0 %2344
    %v2346 = vsel %vm233, %v2345, 0
    %2348 = vmatprep.subr.mxu0 0.0
    %2349 = vmatpush1.msra.mxu0 0.0
    %2350 = vmatprep.subr.mxu0 0.0
    %2351 = vmatpush1.msra.mxu0 0.0
    %2352 = vmatprep.subr.mxu0 0.0
    %2353 = vmatpush1.msra.mxu0 0.0
    %2354 = vmatprep.subr.mxu0 0.0
    %2355 = vmatpush1.msra.mxu0 0.0
    %2356 = vmatprep.subr.mxu0 0.0
    %2357 = vmatpush1.msra.mxu0 0.0
    %2358 = vmatprep.subr.mxu0 0.0
    %2359 = vmatpush1.msra.mxu0 0.0
    %2360 = vmatprep.subr.mxu0 0.0
    %2361 = vmatpush1.msra.mxu0 0.0
    %2362 = vmatprep.subr.mxu0 0.0
    %2363 = vmatpush1.msra.mxu0 0.0
    %2364 = vmatprep.subr.mxu0 0.0
    %2365 = vmatpush1.msra.mxu0 0.0
    %2366 = vmatprep.subr.mxu0 0.0
    %2367 = vmatpush1.msra.mxu0 0.0
    %2368 = vmatprep.subr.mxu0 0.0
    %2369 = vmatpush1.msra.mxu0 0.0
    %2370 = vmatprep.subr.mxu0 0.0
    %2371 = vmatpush1.msra.mxu0 0.0
    %2372 = vmatprep.subr.mxu0 0.0
    %2373 = vmatpush1.msra.mxu0 %v134
    %2374 = vmatprep.subr.mxu0 0.0
    %2375 = vmatpush1.msra.mxu0 %v133
    %2376 = vmatprep.subr.mxu0 0.0
    %2377 = vmatpush1.msra.mxu0 %v132
    %2378 = vmatprep.subr.mxu0 0.0
    %2379 = vmatpush1.msra.mxu0 %v131
    %2380 = vmatprep.subr.mxu0 0.0
    %2381 = vmatpush2.msra.mxu0 0.0
    %2382 = vmatprep.subr.mxu0 0.0
    %2383 = vmatpush2.msra.mxu0 0.0
    %2384 = vmatprep.subr.mxu0 0.0
    %2385 = vmatpush2.msra.mxu0 0.0
    %2386 = vmatprep.subr.mxu0 0.0
    %2387 = vmatpush2.msra.mxu0 0.0
    %2388 = vmatprep.subr.mxu0 0.0
    %2389 = vmatpush2.msra.mxu0 0.0
    %2390 = vmatprep.subr.mxu0 0.0
    %2391 = vmatpush2.msra.mxu0 0.0
    %2392 = vmatprep.subr.mxu0 0.0
    %2393 = vmatpush2.msra.mxu0 0.0
    %2394 = vmatprep.subr.mxu0 0.0
    %2395 = vmatpush2.msra.mxu0 0.0
    %2396 = vmatprep.subr.mxu0 0.0
    %2397 = vmatpush2.msra.mxu0 0.0
    %2398 = vmatprep.subr.mxu0 0.0
    %2399 = vmatpush2.msra.mxu0 0.0
    %2400 = vmatprep.subr.mxu0 0.0
    %2401 = vmatpush2.msra.mxu0 0.0
    %2402 = vmatprep.subr.mxu0 0.0
    %2403 = vmatpush2.msra.mxu0 0.0
    %2404 = vmatprep.subr.mxu0 0.0
    %2405 = vmatpush2.msra.mxu0 0.0
    %2406 = vmatprep.subr.mxu0 0.0
    %2407 = vmatpush2.msra.mxu0 0.0
    %2408 = vmatprep.subr.mxu0 0.0
    %2409 = vmatpush2.msra.mxu0 0.0
    %2410 = vmatprep.subr.mxu0 0.0
    %2411 = vmatpush2.msra.mxu0 0.0
    %2412 = vmatprep.mubr.f32.mxu0 0.0
    %2413 = vmatmul.mubr.f32.gmra.mxu0 %v2346
    %v2414 = vpop.f32.mrf.mxu0
    %v2415 = vadd.f32 %v2339, %v2414
    %v2416 = vpop.f32.mrf.mxu0
    %2417 = vdwg.mxu0
    %v2418 = vadd.f32 %v2415, %v481
    %v2419 = vxor.u32 %v2418, 2147483648
    %v2420 = vmul.f32 %v2419, 1.442695
    %v2421 = vpow.pop %v2420
    %v2422 = vadd.f32 %v2421, 1.0
    %v2423 = vrcp.pop %v2422
    %v2424 = vmul.f32 1.0, %v2423
    %v2425 = vtanh.pop %v2418
    %v2426 = vmul.f32 %v2424, %v2159
    %2428 = vrot.lane.b32.xlu0 %v2425, 64
    %v2429 = vpop.permute.xlu0 %2428
    %v2431 = vmul.f32 %v2424, %v2429
    %2433 = vrot.lane.b32.xlu0 %v2431, 32
    %v2434 = vpop.permute.xlu0 %2433
    %v2436 = vadd.f32 %v2426, %v2434
    %v2437 = vtanh.pop %v2436
    %2439 = vrot.lane.b32.xlu0 %v2437, 64
    %v2440 = vpop.permute.xlu0 %2439
    %v2442 = vmul.f32 %v2424, %v2440
    %v2443 = vld [vmem:[#allocation7] sm:$0xff]
    %v2444 = vld [vmem:[#allocation7 + $0x8] sm:$0xff]
    %v2445 = vld [vmem:[#allocation7 + $0x10] sm:$0xff]
    %v2446 = vld [vmem:[#allocation7 + $0x18] sm:$0xff]
    %v2447 = vld [vmem:[#allocation9] sm:$0x1]
    %v2449 = vlaneseq
    %v2450 = vshrl.u32 %v2449, 7
    %v2451 = vsub.s32 0, %v2450
    %v2452 = vrot.slane %v2447, %v2451
    %2455 = vrot.lane.b32.xlu0 %v2442, 32
    %v2456 = vpop.permute.xlu0 %2455
    %v2457 = vsel %vm233, %v2456, 0
    %2459 = vmatprep.subr.mxu0 0.0
    %2460 = vmatpush1.msra.mxu0 0.0
    %2461 = vmatprep.subr.mxu0 0.0
    %2462 = vmatpush1.msra.mxu0 0.0
    %2463 = vmatprep.subr.mxu0 0.0
    %2464 = vmatpush1.msra.mxu0 0.0
    %2465 = vmatprep.subr.mxu0 0.0
    %2466 = vmatpush1.msra.mxu0 0.0
    %2467 = vmatprep.subr.mxu0 0.0
    %2468 = vmatpush1.msra.mxu0 0.0
    %2469 = vmatprep.subr.mxu0 0.0
    %2470 = vmatpush1.msra.mxu0 0.0
    %2471 = vmatprep.subr.mxu0 0.0
    %2472 = vmatpush1.msra.mxu0 0.0
    %2473 = vmatprep.subr.mxu0 0.0
    %2474 = vmatpush1.msra.mxu0 0.0
    %2475 = vmatprep.subr.mxu0 0.0
    %2476 = vmatpush1.msra.mxu0 0.0
    %2477 = vmatprep.subr.mxu0 0.0
    %2478 = vmatpush1.msra.mxu0 0.0
    %2479 = vmatprep.subr.mxu0 0.0
    %2480 = vmatpush1.msra.mxu0 0.0
    %2481 = vmatprep.subr.mxu0 0.0
    %2482 = vmatpush1.msra.mxu0 0.0
    %2483 = vmatprep.subr.mxu0 0.0
    %2484 = vmatpush1.msra.mxu0 %v2446
    %2485 = vmatprep.subr.mxu0 0.0
    %2486 = vmatpush1.msra.mxu0 %v2445
    %2487 = vmatprep.subr.mxu0 0.0
    %2488 = vmatpush1.msra.mxu0 %v2444
    %2489 = vmatprep.subr.mxu0 0.0
    %2490 = vmatpush1.msra.mxu0 %v2443
    %2491 = vmatprep.subr.mxu0 0.0
    %2492 = vmatpush2.msra.mxu0 0.0
    %2493 = vmatprep.subr.mxu0 0.0
    %2494 = vmatpush2.msra.mxu0 0.0
    %2495 = vmatprep.subr.mxu0 0.0
    %2496 = vmatpush2.msra.mxu0 0.0
    %2497 = vmatprep.subr.mxu0 0.0
    %2498 = vmatpush2.msra.mxu0 0.0
    %2499 = vmatprep.subr.mxu0 0.0
    %2500 = vmatpush2.msra.mxu0 0.0
    %2501 = vmatprep.subr.mxu0 0.0
    %2502 = vmatpush2.msra.mxu0 0.0
    %2503 = vmatprep.subr.mxu0 0.0
    %2504 = vmatpush2.msra.mxu0 0.0
    %2505 = vmatprep.subr.mxu0 0.0
    %2506 = vmatpush2.msra.mxu0 0.0
    %2507 = vmatprep.subr.mxu0 0.0
    %2508 = vmatpush2.msra.mxu0 0.0
    %2509 = vmatprep.subr.mxu0 0.0
    %2510 = vmatpush2.msra.mxu0 0.0
    %2511 = vmatprep.subr.mxu0 0.0
    %2512 = vmatpush2.msra.mxu0 0.0
    %2513 = vmatprep.subr.mxu0 0.0
    %2514 = vmatpush2.msra.mxu0 0.0
    %2515 = vmatprep.subr.mxu0 0.0
    %2516 = vmatpush2.msra.mxu0 0.0
    %2517 = vmatprep.subr.mxu0 0.0
    %2518 = vmatpush2.msra.mxu0 0.0
    %2519 = vmatprep.subr.mxu0 0.0
    %2520 = vmatpush2.msra.mxu0 0.0
    %2521 = vmatprep.subr.mxu0 0.0
    %2522 = vmatpush2.msra.mxu0 0.0
    %2523 = vmatprep.mubr.f32.mxu0 0.0
    %2524 = vmatmul.mubr.f32.gmra.mxu0 %v2457
    %v2525 = vpop.f32.mrf.mxu0
    %v2526 = vadd.f32 %v2452, %v2525
    %v2527 = vpop.f32.mrf.mxu0
    %2528 = vdwg.mxu0
    %v2529 = vmax.f32 %v2526, 0.0
    %v2530 = vld [vmem:[#allocation10] sm:$0xff]
    %v2531 = vld [vmem:[#allocation10 + $0x8] sm:$0xff]
    %v2532 = vld [vmem:[#allocation10 + $0x10] sm:$0xff]
    %v2533 = vld [vmem:[#allocation10 + $0x18] sm:$0xff]
    %v2534 = vld [vmem:[#allocation10 + $0x20] sm:$0xff]
    %v2535 = vld [vmem:[#allocation10 + $0x28] sm:$0xff]
    %v2536 = vld [vmem:[#allocation10 + $0x30] sm:$0xff]
    %v2537 = vld [vmem:[#allocation10 + $0x38] sm:$0xff]
    %v2538 = vld [vmem:[#allocation12] sm:$0x1]
    %v2540 = vlaneseq
    %v2541 = vshrl.u32 %v2540, 7
    %v2542 = vsub.s32 0, %v2541
    %v2543 = vrot.slane %v2538, %v2542
    %vm2545 = vcmask 523264
    %v2547 = vsel %vm2545, %v2529, 0
    %2549 = vmatprep.subr.mxu0 0.0
    %2550 = vmatpush1.msra.mxu0 0.0
    %2551 = vmatprep.subr.mxu0 0.0
    %2552 = vmatpush1.msra.mxu0 0.0
    %2553 = vmatprep.subr.mxu0 0.0
    %2554 = vmatpush1.msra.mxu0 0.0
    %2555 = vmatprep.subr.mxu0 0.0
    %2556 = vmatpush1.msra.mxu0 0.0
    %2557 = vmatprep.subr.mxu0 0.0
    %2558 = vmatpush1.msra.mxu0 0.0
    %2559 = vmatprep.subr.mxu0 0.0
    %2560 = vmatpush1.msra.mxu0 0.0
    %2561 = vmatprep.subr.mxu0 0.0
    %2562 = vmatpush1.msra.mxu0 0.0
    %2563 = vmatprep.subr.mxu0 0.0
    %2564 = vmatpush1.msra.mxu0 0.0
    %2565 = vmatprep.subr.mxu0 0.0
    %2566 = vmatpush1.msra.mxu0 %v2537
    %2567 = vmatprep.subr.mxu0 0.0
    %2568 = vmatpush1.msra.mxu0 %v2536
    %2569 = vmatprep.subr.mxu0 0.0
    %2570 = vmatpush1.msra.mxu0 %v2535
    %2571 = vmatprep.subr.mxu0 0.0
    %2572 = vmatpush1.msra.mxu0 %v2534
    %2573 = vmatprep.subr.mxu0 0.0
    %2574 = vmatpush1.msra.mxu0 %v2533
    %2575 = vmatprep.subr.mxu0 0.0
    %2576 = vmatpush1.msra.mxu0 %v2532
    %2577 = vmatprep.subr.mxu0 0.0
    %2578 = vmatpush1.msra.mxu0 %v2531
    %2579 = vmatprep.subr.mxu0 0.0
    %2580 = vmatpush1.msra.mxu0 %v2530
    %2581 = vmatprep.subr.mxu0 0.0
    %2582 = vmatpush2.msra.mxu0 0.0
    %2583 = vmatprep.subr.mxu0 0.0
    %2584 = vmatpush2.msra.mxu0 0.0
    %2585 = vmatprep.subr.mxu0 0.0
    %2586 = vmatpush2.msra.mxu0 0.0
    %2587 = vmatprep.subr.mxu0 0.0
    %2588 = vmatpush2.msra.mxu0 0.0
    %2589 = vmatprep.subr.mxu0 0.0
    %2590 = vmatpush2.msra.mxu0 0.0
    %2591 = vmatprep.subr.mxu0 0.0
    %2592 = vmatpush2.msra.mxu0 0.0
    %2593 = vmatprep.subr.mxu0 0.0
    %2594 = vmatpush2.msra.mxu0 0.0
    %2595 = vmatprep.subr.mxu0 0.0
    %2596 = vmatpush2.msra.mxu0 0.0
    %2597 = vmatprep.subr.mxu0 0.0
    %2598 = vmatpush2.msra.mxu0 0.0
    %2599 = vmatprep.subr.mxu0 0.0
    %2600 = vmatpush2.msra.mxu0 0.0
    %2601 = vmatprep.subr.mxu0 0.0
    %2602 = vmatpush2.msra.mxu0 0.0
    %2603 = vmatprep.subr.mxu0 0.0
    %2604 = vmatpush2.msra.mxu0 0.0
    %2605 = vmatprep.subr.mxu0 0.0
    %2606 = vmatpush2.msra.mxu0 0.0
    %2607 = vmatprep.subr.mxu0 0.0
    %2608 = vmatpush2.msra.mxu0 0.0
    %2609 = vmatprep.subr.mxu0 0.0
    %2610 = vmatpush2.msra.mxu0 0.0
    %2611 = vmatprep.subr.mxu0 0.0
    %2612 = vmatpush2.msra.mxu0 0.0
    %2613 = vmatprep.mubr.f32.mxu0 0.0
    %2614 = vmatmul.mubr.f32.gmra.mxu0 %v2547
    %v2615 = vpop.f32.mrf.mxu0
    %v2616 = vadd.f32 %v2543, %v2615
    %v2617 = vpop.f32.mrf.mxu0
    %2618 = vdwg.mxu0
    %2619 = vst [vmem:[%s11] sm:$0x3] %v2616
    // Predicated region
    $region74: #{supermarket_rnn_forward.1} parent=1 // pred_check
      _
    $region75: #{supermarket_rnn_forward.1} parent=1 // pred_check_branch
      %2621 = sbr.rel (0) target = $region77
    $region76: #{supermarket_rnn_forward.1} parent=1 // pred_region
      _
    $region77: #{supermarket_rnn_forward.1} parent=1 // pred_fallthru
      _
    // Predicated region
    $region78: #{supermarket_rnn_forward.1} parent=1 // pred_check
      _
    $region79: #{supermarket_rnn_forward.1} parent=1 // pred_check_branch
      %2623 = sbr.rel (0) target = $region81
    $region80: #{supermarket_rnn_forward.1} parent=1 // pred_region
      _
    $region81: #{supermarket_rnn_forward.1} parent=1 // pred_fallthru
      _
    %2624 = vsyncpa [#allocation3], 1
    %2625 = vsyncpa [#allocation5], 1
    %2626 = vsyncpa [#allocation8], 1
    %2627 = vsyncpa [#allocation11], 1

</llo_original>
